<compile_context>
chip_gen: v6e
topology: v6e:2x2x1
jax: 0.10.0
libtpu: 0.0.40
codegen_flags: <defaults>
</compile_context>

<pallas_src>
import functools

import jax
import jax.numpy as jnp
from jax.experimental import pallas as pl
from jax.experimental.pallas import tpu as pltpu


# ---------------------------------------------------------------------------
# Fused conv + bias + ReLU + maxpool(2,2) kernel
# ---------------------------------------------------------------------------
def _conv_relu_pool_kernel(x_ref, w_ref, b_ref, o_ref, *, kh, kw):
    # x_ref: (1, H, W, Cin)        one NHWC image, resident in VMEM
    # w_ref: (kh*kw*Cin, Cout)     tap-major / channel-minor K ordering
    # b_ref: (1, Cout)
    # o_ref: (1, 1, PW, Cout)      pooled output row `ph` of image `b`
    ph = pl.program_id(1)
    pw_n = o_ref.shape[2]
    ow = 2 * pw_n                     # conv-output width feeding this pooled row

    # Build im2col patches for the two conv rows (2*ph, 2*ph+1) that feed
    # pooled row ph, entirely in registers: (2, OW, kh*kw*Cin).
    pieces = []
    for ki in range(kh):
        for kj in range(kw):
            pieces.append(x_ref[0, pl.ds(2 * ph + ki, 2), pl.ds(kj, ow), :])
    patches = jnp.concatenate(pieces, axis=2)

    w = w_ref[...]
    y0 = jnp.dot(patches[0], w, preferred_element_type=jnp.float32)  # (OW, Cout)
    y1 = jnp.dot(patches[1], w, preferred_element_type=jnp.float32)  # (OW, Cout)
    row = jnp.maximum(y0, y1)         # pool over the window's H direction

    # Pool over the window's W direction: max of sublane pairs (2p, 2p+1).
    cols = [jnp.max(row[2 * p:2 * p + 2, :], axis=0, keepdims=True)
            for p in range(pw_n)]
    pooled = jnp.concatenate(cols, axis=0)                 # (PW, Cout)

    # bias / ReLU commute with the max, so applying them post-pool is exact.
    out = jnp.maximum(pooled + b_ref[...], 0.0)
    o_ref[0, 0, :, :] = out.astype(o_ref.dtype)


def conv_relu_pool(x, w_k, b_k, *, kh, kw):
    """x: (B,H,W,Cin) NHWC; w_k: (kh*kw*Cin, Cout); b_k: (1, Cout).
    Returns pooled activations (B, OH//2, OW//2, Cout)."""
    B, H, W, Cin = x.shape
    OH, OW = H - kh + 1, W - kw + 1
    PH, PW = OH // 2, OW // 2
    K, Cout = w_k.shape
    assert K == kh * kw * Cin

    flops = 2 * B * OH * OW * K * Cout
    bytes_accessed = 4 * (x.size + w_k.size + b_k.size + B * PH * PW * Cout)

    return pl.pallas_call(
        functools.partial(_conv_relu_pool_kernel, kh=kh, kw=kw),
        out_shape=jax.ShapeDtypeStruct((B, PH, PW, Cout), jnp.float32),
        grid=(B, PH),
        in_specs=[
            pl.BlockSpec((1, H, W, Cin), lambda b, ph: (b, 0, 0, 0)),
            pl.BlockSpec((K, Cout), lambda b, ph: (0, 0)),
            pl.BlockSpec((1, Cout), lambda b, ph: (0, 0)),
        ],
        out_specs=pl.BlockSpec((1, 1, PW, Cout), lambda b, ph: (b, ph, 0, 0)),
        compiler_params=pltpu.CompilerParams(
            dimension_semantics=("parallel", "parallel")),
        cost_estimate=pl.CostEstimate(
            flops=flops, transcendentals=0, bytes_accessed=bytes_accessed),
    )(x, w_k, b_k)


# ---------------------------------------------------------------------------
# Fused fc1+ReLU+fc2+ReLU+fc3 kernel (intermediates stay in VMEM/vregs)
# ---------------------------------------------------------------------------
def _fc_fused_kernel(x_ref, w1_ref, b1_ref, w2_ref, b2_ref, w3_ref, b3_ref,
                     o_ref):
    h = x_ref[...]
    h = jnp.maximum(
        jnp.dot(h, w1_ref[...], preferred_element_type=jnp.float32)
        + b1_ref[...], 0.0)
    h = jnp.maximum(
        jnp.dot(h, w2_ref[...], preferred_element_type=jnp.float32)
        + b2_ref[...], 0.0)
    o = jnp.dot(h, w3_ref[...], preferred_element_type=jnp.float32) + b3_ref[...]
    o_ref[...] = o.astype(o_ref.dtype)


def fc_fused(x, w1, b1, w2, b2, w3, b3):
    M = x.shape[0]
    N = w3.shape[1]
    operands = (x, w1, b1, w2, b2, w3, b3)
    flops = 2 * M * (w1.shape[0] * w1.shape[1]
                     + w2.shape[0] * w2.shape[1]
                     + w3.shape[0] * w3.shape[1])
    bytes_accessed = 4 * (sum(op.size for op in operands) + M * N)
    return pl.pallas_call(
        _fc_fused_kernel,
        out_shape=jax.ShapeDtypeStruct((M, N), jnp.float32),
        grid=(1,),
        in_specs=[pl.BlockSpec(op.shape, lambda i: (0, 0)) for op in operands],
        out_specs=pl.BlockSpec((M, N), lambda i: (0, 0)),
        compiler_params=pltpu.CompilerParams(
            dimension_semantics=("arbitrary",)),
        cost_estimate=pl.CostEstimate(
            flops=flops, transcendentals=0, bytes_accessed=bytes_accessed),
    )(*operands)


# ---------------------------------------------------------------------------
# One-time parameter preparation (hoisted out of the forward pass)
# ---------------------------------------------------------------------------
def prepare_params(p):
    """PyTorch-layout params -> kernel-ready layouts (done once)."""
    def conv_w(w):
        # (Cout, Cin, kh, kw) -> (kh*kw*Cin, Cout), tap-major / channel-minor K.
        co, ci, kh, kw = w.shape
        return jnp.transpose(w, (2, 3, 1, 0)).reshape(kh * kw * ci, co)

    # fc1 columns are ordered (c, h, w) in PyTorch's view(-1, 256); our conv
    # activations are flattened as (h, w, c), so permute columns accordingly.
    fc1_w = p["fc1_w"].reshape(120, 16, 4, 4)
    fc1_w = jnp.transpose(fc1_w, (0, 2, 3, 1)).reshape(120, 256).T  # (256,120)

    return {
        "conv1_w": conv_w(p["conv1_w"]), "conv1_b": p["conv1_b"].reshape(1, -1),
        "conv2_w": conv_w(p["conv2_w"]), "conv2_b": p["conv2_b"].reshape(1, -1),
        "fc1_w": fc1_w,                  "fc1_b": p["fc1_b"].reshape(1, -1),
        "fc2_w": p["fc2_w"].T,           "fc2_b": p["fc2_b"].reshape(1, -1),
        "fc3_w": p["fc3_w"].T,           "fc3_b": p["fc3_b"].reshape(1, -1),
    }


# ---------------------------------------------------------------------------
# LeNet forward (3 pallas_calls + 2 trivial reshapes)
# ---------------------------------------------------------------------------
def lenet_forward(kp, x):
    # x: (B, 1, 28, 28) NCHW float32 (PyTorch layout)
    B = x.shape[0]
    x = jnp.transpose(x, (0, 2, 3, 1))                                # NHWC
    x = conv_relu_pool(x, kp["conv1_w"], kp["conv1_b"], kh=5, kw=5)   # (B,12,12,6)
    x = conv_relu_pool(x, kp["conv2_w"], kp["conv2_b"], kh=5, kw=5)   # (B,4,4,16)
    x = x.reshape(B, 4 * 4 * 16)                                      # (h,w,c) flatten
    return fc_fused(x, kp["fc1_w"], kp["fc1_b"], kp["fc2_w"], kp["fc2_b"],
                    kp["fc3_w"], kp["fc3_b"])                         # (B, 10)


# ---------------------------------------------------------------------------
# Params + pure-JAX reference (PyTorch semantics) for correctness check
# ---------------------------------------------------------------------------
def init_lenet_params(key):
    ks = jax.random.split(key, 10)
    scale = 0.1
    return {
        "conv1_w": scale * jax.random.normal(ks[0], (6, 1, 5, 5), jnp.float32),
        "conv1_b": scale * jax.random.normal(ks[1], (6,), jnp.float32),
        "conv2_w": scale * jax.random.normal(ks[2], (16, 6, 5, 5), jnp.float32),
        "conv2_b": scale * jax.random.normal(ks[3], (16,), jnp.float32),
        "fc1_w": scale * jax.random.normal(ks[4], (120, 256), jnp.float32),
        "fc1_b": scale * jax.random.normal(ks[5], (120,), jnp.float32),
        "fc2_w": scale * jax.random.normal(ks[6], (84, 120), jnp.float32),
        "fc2_b": scale * jax.random.normal(ks[7], (84,), jnp.float32),
        "fc3_w": scale * jax.random.normal(ks[8], (10, 84), jnp.float32),
        "fc3_b": scale * jax.random.normal(ks[9], (10,), jnp.float32),
    }


def lenet_reference(p, x):
    def conv(x, w, b):
        y = jax.lax.conv_general_dilated(
            x, w, window_strides=(1, 1), padding="VALID",
            dimension_numbers=("NCHW", "OIHW", "NCHW"))
        return jnp.maximum(y + b[None, :, None, None], 0.0)

    def pool(x):
        B, C, H, W = x.shape
        return jnp.max(x.reshape(B, C, H // 2, 2, W // 2, 2), axis=(3, 5))

    x = pool(conv(x, p["conv1_w"], p["conv1_b"]))
    x = pool(conv(x, p["conv2_w"], p["conv2_b"]))
    x = x.reshape(x.shape[0], 256)
    x = jnp.maximum(x @ p["fc1_w"].T + p["fc1_b"], 0.0)
    x = jnp.maximum(x @ p["fc2_w"].T + p["fc2_b"], 0.0)
    return x @ p["fc3_w"].T + p["fc3_b"]


if __name__ == "__main__":
    key = jax.random.PRNGKey(0)
    k_param, k_x = jax.random.split(key)
    params = init_lenet_params(k_param)
    kparams = prepare_params(params)          # one-time weight layout prep
    # LeNet geometry implies 28x28 single-channel input (16*4*4 = 256 fc1 in).
    x = jax.random.normal(k_x, (2, 1, 28, 28), jnp.float32)

    out = jax.block_until_ready(jax.jit(lenet_forward)(kparams, x))
    ref = jax.block_until_ready(jax.jit(lenet_reference)(params, x))

    assert out.shape == (2, 10)
    err = float(jnp.max(jnp.abs(out - ref)))
    assert jnp.allclose(out, ref, atol=1e-3, rtol=1e-3), f"max abs err {err}"
    print("KERNEL_OK")
</pallas_src>

<mosaic_0001>
module attributes {stable_mosaic.version = 11 : i64} {
  func.func @_conv_relu_pool_kernel(%arg0: i32, %arg1: i32, %arg2: memref<1x28x28x1xf32, #tpu.memory_space<vmem>>, %arg3: memref<25x6xf32, #tpu.memory_space<vmem>>, %arg4: memref<1x6xf32, #tpu.memory_space<vmem>>, %arg5: memref<1x1x12x6xf32, #tpu.memory_space<vmem>>) attributes {dimension_semantics = [#tpu.dimension_semantics<parallel>, #tpu.dimension_semantics<parallel>], iteration_bounds = array<i64: 2, 12>, scalar_prefetch = 0 : i64, scratch_operands = 0 : i64, tpu.core_type = #tpu.core_type<tc>, window_params = [{transform_indices = @transform_0, window_bounds = array<i64: 1, 28, 28, 1>}, {pipeline_mode = #tpu.pipeline_mode<synchronous>, transform_indices = @transform_1, window_bounds = array<i64: 25, 6>}, {pipeline_mode = #tpu.pipeline_mode<synchronous>, transform_indices = @transform_2, window_bounds = array<i64: 1, 6>}, {transform_indices = @transform_3, window_bounds = array<i64: 1, 1, 12, 6>}]} {
    %c2_i32 = arith.constant 2 : i32
    %0 = arith.muli %c2_i32, %arg1 : i32
    %c0_i32 = arith.constant 0 : i32
    %1 = arith.addi %0, %c0_i32 : i32
    %c0 = arith.constant 0 : index
    %2 = arith.index_cast %1 : i32 to index
    %c0_0 = arith.constant 0 : index
    %c0_1 = arith.constant 0 : index
    %3 = vector.load %arg2[%c0, %2, %c0_0, %c0_1] : memref<1x28x28x1xf32, #tpu.memory_space<vmem>>, vector<1x2x24x1xf32>
    %4 = vector.shape_cast %3 : vector<1x2x24x1xf32> to vector<2x24x1xf32>
    %c2_i32_2 = arith.constant 2 : i32
    %5 = arith.muli %c2_i32_2, %arg1 : i32
    %c0_i32_3 = arith.constant 0 : i32
    %6 = arith.addi %5, %c0_i32_3 : i32
    %c0_4 = arith.constant 0 : index
    %7 = arith.index_cast %6 : i32 to index
    %c1 = arith.constant 1 : index
    %c0_5 = arith.constant 0 : index
    %8 = vector.load %arg2[%c0_4, %7, %c1, %c0_5] : memref<1x28x28x1xf32, #tpu.memory_space<vmem>>, vector<1x2x24x1xf32>
    %9 = vector.shape_cast %8 : vector<1x2x24x1xf32> to vector<2x24x1xf32>
    %c2_i32_6 = arith.constant 2 : i32
    %10 = arith.muli %c2_i32_6, %arg1 : i32
    %c0_i32_7 = arith.constant 0 : i32
    %11 = arith.addi %10, %c0_i32_7 : i32
    %c0_8 = arith.constant 0 : index
    %12 = arith.index_cast %11 : i32 to index
    %c2 = arith.constant 2 : index
    %c0_9 = arith.constant 0 : index
    %13 = vector.load %arg2[%c0_8, %12, %c2, %c0_9] : memref<1x28x28x1xf32, #tpu.memory_space<vmem>>, vector<1x2x24x1xf32>
    %14 = vector.shape_cast %13 : vector<1x2x24x1xf32> to vector<2x24x1xf32>
    %c2_i32_10 = arith.constant 2 : i32
    %15 = arith.muli %c2_i32_10, %arg1 : i32
    %c0_i32_11 = arith.constant 0 : i32
    %16 = arith.addi %15, %c0_i32_11 : i32
    %c0_12 = arith.constant 0 : index
    %17 = arith.index_cast %16 : i32 to index
    %c3 = arith.constant 3 : index
    %c0_13 = arith.constant 0 : index
    %18 = vector.load %arg2[%c0_12, %17, %c3, %c0_13] : memref<1x28x28x1xf32, #tpu.memory_space<vmem>>, vector<1x2x24x1xf32>
    %19 = vector.shape_cast %18 : vector<1x2x24x1xf32> to vector<2x24x1xf32>
    %c2_i32_14 = arith.constant 2 : i32
    %20 = arith.muli %c2_i32_14, %arg1 : i32
    %c0_i32_15 = arith.constant 0 : i32
    %21 = arith.addi %20, %c0_i32_15 : i32
    %c0_16 = arith.constant 0 : index
    %22 = arith.index_cast %21 : i32 to index
    %c4 = arith.constant 4 : index
    %c0_17 = arith.constant 0 : index
    %23 = vector.load %arg2[%c0_16, %22, %c4, %c0_17] : memref<1x28x28x1xf32, #tpu.memory_space<vmem>>, vector<1x2x24x1xf32>
    %24 = vector.shape_cast %23 : vector<1x2x24x1xf32> to vector<2x24x1xf32>
    %c2_i32_18 = arith.constant 2 : i32
    %25 = arith.muli %c2_i32_18, %arg1 : i32
    %c1_i32 = arith.constant 1 : i32
    %26 = arith.addi %25, %c1_i32 : i32
    %c0_19 = arith.constant 0 : index
    %27 = arith.index_cast %26 : i32 to index
    %c0_20 = arith.constant 0 : index
    %c0_21 = arith.constant 0 : index
    %28 = vector.load %arg2[%c0_19, %27, %c0_20, %c0_21] : memref<1x28x28x1xf32, #tpu.memory_space<vmem>>, vector<1x2x24x1xf32>
    %29 = vector.shape_cast %28 : vector<1x2x24x1xf32> to vector<2x24x1xf32>
    %c2_i32_22 = arith.constant 2 : i32
    %30 = arith.muli %c2_i32_22, %arg1 : i32
    %c1_i32_23 = arith.constant 1 : i32
    %31 = arith.addi %30, %c1_i32_23 : i32
    %c0_24 = arith.constant 0 : index
    %32 = arith.index_cast %31 : i32 to index
    %c1_25 = arith.constant 1 : index
    %c0_26 = arith.constant 0 : index
    %33 = vector.load %arg2[%c0_24, %32, %c1_25, %c0_26] : memref<1x28x28x1xf32, #tpu.memory_space<vmem>>, vector<1x2x24x1xf32>
    %34 = vector.shape_cast %33 : vector<1x2x24x1xf32> to vector<2x24x1xf32>
    %c2_i32_27 = arith.constant 2 : i32
    %35 = arith.muli %c2_i32_27, %arg1 : i32
    %c1_i32_28 = arith.constant 1 : i32
    %36 = arith.addi %35, %c1_i32_28 : i32
    %c0_29 = arith.constant 0 : index
    %37 = arith.index_cast %36 : i32 to index
    %c2_30 = arith.constant 2 : index
    %c0_31 = arith.constant 0 : index
    %38 = vector.load %arg2[%c0_29, %37, %c2_30, %c0_31] : memref<1x28x28x1xf32, #tpu.memory_space<vmem>>, vector<1x2x24x1xf32>
    %39 = vector.shape_cast %38 : vector<1x2x24x1xf32> to vector<2x24x1xf32>
    %c2_i32_32 = arith.constant 2 : i32
    %40 = arith.muli %c2_i32_32, %arg1 : i32
    %c1_i32_33 = arith.constant 1 : i32
    %41 = arith.addi %40, %c1_i32_33 : i32
    %c0_34 = arith.constant 0 : index
    %42 = arith.index_cast %41 : i32 to index
    %c3_35 = arith.constant 3 : index
    %c0_36 = arith.constant 0 : index
    %43 = vector.load %arg2[%c0_34, %42, %c3_35, %c0_36] : memref<1x28x28x1xf32, #tpu.memory_space<vmem>>, vector<1x2x24x1xf32>
    %44 = vector.shape_cast %43 : vector<1x2x24x1xf32> to vector<2x24x1xf32>
    %c2_i32_37 = arith.constant 2 : i32
    %45 = arith.muli %c2_i32_37, %arg1 : i32
    %c1_i32_38 = arith.constant 1 : i32
    %46 = arith.addi %45, %c1_i32_38 : i32
    %c0_39 = arith.constant 0 : index
    %47 = arith.index_cast %46 : i32 to index
    %c4_40 = arith.constant 4 : index
    %c0_41 = arith.constant 0 : index
    %48 = vector.load %arg2[%c0_39, %47, %c4_40, %c0_41] : memref<1x28x28x1xf32, #tpu.memory_space<vmem>>, vector<1x2x24x1xf32>
    %49 = vector.shape_cast %48 : vector<1x2x24x1xf32> to vector<2x24x1xf32>
    %c2_i32_42 = arith.constant 2 : i32
    %50 = arith.muli %c2_i32_42, %arg1 : i32
    %c2_i32_43 = arith.constant 2 : i32
    %51 = arith.addi %50, %c2_i32_43 : i32
    %c0_44 = arith.constant 0 : index
    %52 = arith.index_cast %51 : i32 to index
    %c0_45 = arith.constant 0 : index
    %c0_46 = arith.constant 0 : index
    %53 = vector.load %arg2[%c0_44, %52, %c0_45, %c0_46] : memref<1x28x28x1xf32, #tpu.memory_space<vmem>>, vector<1x2x24x1xf32>
    %54 = vector.shape_cast %53 : vector<1x2x24x1xf32> to vector<2x24x1xf32>
    %c2_i32_47 = arith.constant 2 : i32
    %55 = arith.muli %c2_i32_47, %arg1 : i32
    %c2_i32_48 = arith.constant 2 : i32
    %56 = arith.addi %55, %c2_i32_48 : i32
    %c0_49 = arith.constant 0 : index
    %57 = arith.index_cast %56 : i32 to index
    %c1_50 = arith.constant 1 : index
    %c0_51 = arith.constant 0 : index
    %58 = vector.load %arg2[%c0_49, %57, %c1_50, %c0_51] : memref<1x28x28x1xf32, #tpu.memory_space<vmem>>, vector<1x2x24x1xf32>
    %59 = vector.shape_cast %58 : vector<1x2x24x1xf32> to vector<2x24x1xf32>
    %c2_i32_52 = arith.constant 2 : i32
    %60 = arith.muli %c2_i32_52, %arg1 : i32
    %c2_i32_53 = arith.constant 2 : i32
    %61 = arith.addi %60, %c2_i32_53 : i32
    %c0_54 = arith.constant 0 : index
    %62 = arith.index_cast %61 : i32 to index
    %c2_55 = arith.constant 2 : index
    %c0_56 = arith.constant 0 : index
    %63 = vector.load %arg2[%c0_54, %62, %c2_55, %c0_56] : memref<1x28x28x1xf32, #tpu.memory_space<vmem>>, vector<1x2x24x1xf32>
    %64 = vector.shape_cast %63 : vector<1x2x24x1xf32> to vector<2x24x1xf32>
    %c2_i32_57 = arith.constant 2 : i32
    %65 = arith.muli %c2_i32_57, %arg1 : i32
    %c2_i32_58 = arith.constant 2 : i32
    %66 = arith.addi %65, %c2_i32_58 : i32
    %c0_59 = arith.constant 0 : index
    %67 = arith.index_cast %66 : i32 to index
    %c3_60 = arith.constant 3 : index
    %c0_61 = arith.constant 0 : index
    %68 = vector.load %arg2[%c0_59, %67, %c3_60, %c0_61] : memref<1x28x28x1xf32, #tpu.memory_space<vmem>>, vector<1x2x24x1xf32>
    %69 = vector.shape_cast %68 : vector<1x2x24x1xf32> to vector<2x24x1xf32>
    %c2_i32_62 = arith.constant 2 : i32
    %70 = arith.muli %c2_i32_62, %arg1 : i32
    %c2_i32_63 = arith.constant 2 : i32
    %71 = arith.addi %70, %c2_i32_63 : i32
    %c0_64 = arith.constant 0 : index
    %72 = arith.index_cast %71 : i32 to index
    %c4_65 = arith.constant 4 : index
    %c0_66 = arith.constant 0 : index
    %73 = vector.load %arg2[%c0_64, %72, %c4_65, %c0_66] : memref<1x28x28x1xf32, #tpu.memory_space<vmem>>, vector<1x2x24x1xf32>
    %74 = vector.shape_cast %73 : vector<1x2x24x1xf32> to vector<2x24x1xf32>
    %c2_i32_67 = arith.constant 2 : i32
    %75 = arith.muli %c2_i32_67, %arg1 : i32
    %c3_i32 = arith.constant 3 : i32
    %76 = arith.addi %75, %c3_i32 : i32
    %c0_68 = arith.constant 0 : index
    %77 = arith.index_cast %76 : i32 to index
    %c0_69 = arith.constant 0 : index
    %c0_70 = arith.constant 0 : index
    %78 = vector.load %arg2[%c0_68, %77, %c0_69, %c0_70] : memref<1x28x28x1xf32, #tpu.memory_space<vmem>>, vector<1x2x24x1xf32>
    %79 = vector.shape_cast %78 : vector<1x2x24x1xf32> to vector<2x24x1xf32>
    %c2_i32_71 = arith.constant 2 : i32
    %80 = arith.muli %c2_i32_71, %arg1 : i32
    %c3_i32_72 = arith.constant 3 : i32
    %81 = arith.addi %80, %c3_i32_72 : i32
    %c0_73 = arith.constant 0 : index
    %82 = arith.index_cast %81 : i32 to index
    %c1_74 = arith.constant 1 : index
    %c0_75 = arith.constant 0 : index
    %83 = vector.load %arg2[%c0_73, %82, %c1_74, %c0_75] : memref<1x28x28x1xf32, #tpu.memory_space<vmem>>, vector<1x2x24x1xf32>
    %84 = vector.shape_cast %83 : vector<1x2x24x1xf32> to vector<2x24x1xf32>
    %c2_i32_76 = arith.constant 2 : i32
    %85 = arith.muli %c2_i32_76, %arg1 : i32
    %c3_i32_77 = arith.constant 3 : i32
    %86 = arith.addi %85, %c3_i32_77 : i32
    %c0_78 = arith.constant 0 : index
    %87 = arith.index_cast %86 : i32 to index
    %c2_79 = arith.constant 2 : index
    %c0_80 = arith.constant 0 : index
    %88 = vector.load %arg2[%c0_78, %87, %c2_79, %c0_80] : memref<1x28x28x1xf32, #tpu.memory_space<vmem>>, vector<1x2x24x1xf32>
    %89 = vector.shape_cast %88 : vector<1x2x24x1xf32> to vector<2x24x1xf32>
    %c2_i32_81 = arith.constant 2 : i32
    %90 = arith.muli %c2_i32_81, %arg1 : i32
    %c3_i32_82 = arith.constant 3 : i32
    %91 = arith.addi %90, %c3_i32_82 : i32
    %c0_83 = arith.constant 0 : index
    %92 = arith.index_cast %91 : i32 to index
    %c3_84 = arith.constant 3 : index
    %c0_85 = arith.constant 0 : index
    %93 = vector.load %arg2[%c0_83, %92, %c3_84, %c0_85] : memref<1x28x28x1xf32, #tpu.memory_space<vmem>>, vector<1x2x24x1xf32>
    %94 = vector.shape_cast %93 : vector<1x2x24x1xf32> to vector<2x24x1xf32>
    %c2_i32_86 = arith.constant 2 : i32
    %95 = arith.muli %c2_i32_86, %arg1 : i32
    %c3_i32_87 = arith.constant 3 : i32
    %96 = arith.addi %95, %c3_i32_87 : i32
    %c0_88 = arith.constant 0 : index
    %97 = arith.index_cast %96 : i32 to index
    %c4_89 = arith.constant 4 : index
    %c0_90 = arith.constant 0 : index
    %98 = vector.load %arg2[%c0_88, %97, %c4_89, %c0_90] : memref<1x28x28x1xf32, #tpu.memory_space<vmem>>, vector<1x2x24x1xf32>
    %99 = vector.shape_cast %98 : vector<1x2x24x1xf32> to vector<2x24x1xf32>
    %c2_i32_91 = arith.constant 2 : i32
    %100 = arith.muli %c2_i32_91, %arg1 : i32
    %c4_i32 = arith.constant 4 : i32
    %101 = arith.addi %100, %c4_i32 : i32
    %c0_92 = arith.constant 0 : index
    %102 = arith.index_cast %101 : i32 to index
    %c0_93 = arith.constant 0 : index
    %c0_94 = arith.constant 0 : index
    %103 = vector.load %arg2[%c0_92, %102, %c0_93, %c0_94] : memref<1x28x28x1xf32, #tpu.memory_space<vmem>>, vector<1x2x24x1xf32>
    %104 = vector.shape_cast %103 : vector<1x2x24x1xf32> to vector<2x24x1xf32>
    %c2_i32_95 = arith.constant 2 : i32
    %105 = arith.muli %c2_i32_95, %arg1 : i32
    %c4_i32_96 = arith.constant 4 : i32
    %106 = arith.addi %105, %c4_i32_96 : i32
    %c0_97 = arith.constant 0 : index
    %107 = arith.index_cast %106 : i32 to index
    %c1_98 = arith.constant 1 : index
    %c0_99 = arith.constant 0 : index
    %108 = vector.load %arg2[%c0_97, %107, %c1_98, %c0_99] : memref<1x28x28x1xf32, #tpu.memory_space<vmem>>, vector<1x2x24x1xf32>
    %109 = vector.shape_cast %108 : vector<1x2x24x1xf32> to vector<2x24x1xf32>
    %c2_i32_100 = arith.constant 2 : i32
    %110 = arith.muli %c2_i32_100, %arg1 : i32
    %c4_i32_101 = arith.constant 4 : i32
    %111 = arith.addi %110, %c4_i32_101 : i32
    %c0_102 = arith.constant 0 : index
    %112 = arith.index_cast %111 : i32 to index
    %c2_103 = arith.constant 2 : index
    %c0_104 = arith.constant 0 : index
    %113 = vector.load %arg2[%c0_102, %112, %c2_103, %c0_104] : memref<1x28x28x1xf32, #tpu.memory_space<vmem>>, vector<1x2x24x1xf32>
    %114 = vector.shape_cast %113 : vector<1x2x24x1xf32> to vector<2x24x1xf32>
    %c2_i32_105 = arith.constant 2 : i32
    %115 = arith.muli %c2_i32_105, %arg1 : i32
    %c4_i32_106 = arith.constant 4 : i32
    %116 = arith.addi %115, %c4_i32_106 : i32
    %c0_107 = arith.constant 0 : index
    %117 = arith.index_cast %116 : i32 to index
    %c3_108 = arith.constant 3 : index
    %c0_109 = arith.constant 0 : index
    %118 = vector.load %arg2[%c0_107, %117, %c3_108, %c0_109] : memref<1x28x28x1xf32, #tpu.memory_space<vmem>>, vector<1x2x24x1xf32>
    %119 = vector.shape_cast %118 : vector<1x2x24x1xf32> to vector<2x24x1xf32>
    %c2_i32_110 = arith.constant 2 : i32
    %120 = arith.muli %c2_i32_110, %arg1 : i32
    %c4_i32_111 = arith.constant 4 : i32
    %121 = arith.addi %120, %c4_i32_111 : i32
    %c0_112 = arith.constant 0 : index
    %122 = arith.index_cast %121 : i32 to index
    %c4_113 = arith.constant 4 : index
    %c0_114 = arith.constant 0 : index
    %123 = vector.load %arg2[%c0_112, %122, %c4_113, %c0_114] : memref<1x28x28x1xf32, #tpu.memory_space<vmem>>, vector<1x2x24x1xf32>
    %124 = vector.shape_cast %123 : vector<1x2x24x1xf32> to vector<2x24x1xf32>
    %125 = tpu.concatenate %4, %9, %14, %19, %24, %29, %34, %39, %44, %49, %54, %59, %64, %69, %74, %79 in 2 : vector<2x24x1xf32>, vector<2x24x1xf32>, vector<2x24x1xf32>, vector<2x24x1xf32>, vector<2x24x1xf32>, vector<2x24x1xf32>, vector<2x24x1xf32>, vector<2x24x1xf32>, vector<2x24x1xf32>, vector<2x24x1xf32>, vector<2x24x1xf32>, vector<2x24x1xf32>, vector<2x24x1xf32>, vector<2x24x1xf32>, vector<2x24x1xf32>, vector<2x24x1xf32> -> vector<2x24x16xf32>
    %126 = tpu.concatenate %84, %89, %94, %99, %104, %109, %114, %119, %124 in 2 : vector<2x24x1xf32>, vector<2x24x1xf32>, vector<2x24x1xf32>, vector<2x24x1xf32>, vector<2x24x1xf32>, vector<2x24x1xf32>, vector<2x24x1xf32>, vector<2x24x1xf32>, vector<2x24x1xf32> -> vector<2x24x9xf32>
    %127 = tpu.concatenate %125, %126 in 2 : vector<2x24x16xf32>, vector<2x24x9xf32> -> vector<2x24x25xf32>
    %c0_115 = arith.constant 0 : index
    %c0_116 = arith.constant 0 : index
    %128 = vector.load %arg3[%c0_115, %c0_116] : memref<25x6xf32, #tpu.memory_space<vmem>>, vector<25x6xf32>
    %129 = vector.extract_strided_slice %127 {offsets = [0, 0, 0], sizes = [1, 24, 25], strides = [1, 1, 1]} : vector<2x24x25xf32> to vector<1x24x25xf32>
    %130 = vector.shape_cast %129 : vector<1x24x25xf32> to vector<24x25xf32>
    %cst = arith.constant dense<0.000000e+00> : vector<24x6xf32>
    %131 = tpu.matmul %130, %128, %cst {dimension_numbers = #tpu.dot_dimension_numbers<[1], [0], [0], [1], [0, 0, 1, 1], [], []>} : vector<24x25xf32>, vector<25x6xf32>, vector<24x6xf32> -> vector<24x6xf32>
    %132 = vector.extract_strided_slice %127 {offsets = [1, 0, 0], sizes = [1, 24, 25], strides = [1, 1, 1]} : vector<2x24x25xf32> to vector<1x24x25xf32>
    %133 = vector.shape_cast %132 : vector<1x24x25xf32> to vector<24x25xf32>
    %cst_117 = arith.constant dense<0.000000e+00> : vector<24x6xf32>
    %134 = tpu.matmul %133, %128, %cst_117 {dimension_numbers = #tpu.dot_dimension_numbers<[1], [0], [0], [1], [0, 0, 1, 1], [], []>} : vector<24x25xf32>, vector<25x6xf32>, vector<24x6xf32> -> vector<24x6xf32>
    %135 = arith.maximumf %131, %134 : vector<24x6xf32>
    %136 = vector.extract_strided_slice %135 {offsets = [0, 0], sizes = [2, 6], strides = [1, 1]} : vector<24x6xf32> to vector<2x6xf32>
    %cst_118 = arith.constant dense<0xFF800000> : vector<6xf32>
    %137 = vector.multi_reduction <maximumf>, %136, %cst_118 [0] : vector<2x6xf32> to vector<6xf32>
    %138 = vector.shape_cast %137 : vector<6xf32> to vector<1x6xf32>
    %139 = vector.extract_strided_slice %135 {offsets = [2, 0], sizes = [2, 6], strides = [1, 1]} : vector<24x6xf32> to vector<2x6xf32>
    %cst_119 = arith.constant dense<0xFF800000> : vector<6xf32>
    %140 = vector.multi_reduction <maximumf>, %139, %cst_119 [0] : vector<2x6xf32> to vector<6xf32>
    %141 = vector.shape_cast %140 : vector<6xf32> to vector<1x6xf32>
    %142 = vector.extract_strided_slice %135 {offsets = [4, 0], sizes = [2, 6], strides = [1, 1]} : vector<24x6xf32> to vector<2x6xf32>
    %cst_120 = arith.constant dense<0xFF800000> : vector<6xf32>
    %143 = vector.multi_reduction <maximumf>, %142, %cst_120 [0] : vector<2x6xf32> to vector<6xf32>
    %144 = vector.shape_cast %143 : vector<6xf32> to vector<1x6xf32>
    %145 = vector.extract_strided_slice %135 {offsets = [6, 0], sizes = [2, 6], strides = [1, 1]} : vector<24x6xf32> to vector<2x6xf32>
    %cst_121 = arith.constant dense<0xFF800000> : vector<6xf32>
    %146 = vector.multi_reduction <maximumf>, %145, %cst_121 [0] : vector<2x6xf32> to vector<6xf32>
    %147 = vector.shape_cast %146 : vector<6xf32> to vector<1x6xf32>
    %148 = vector.extract_strided_slice %135 {offsets = [8, 0], sizes = [2, 6], strides = [1, 1]} : vector<24x6xf32> to vector<2x6xf32>
    %cst_122 = arith.constant dense<0xFF800000> : vector<6xf32>
    %149 = vector.multi_reduction <maximumf>, %148, %cst_122 [0] : vector<2x6xf32> to vector<6xf32>
    %150 = vector.shape_cast %149 : vector<6xf32> to vector<1x6xf32>
    %151 = vector.extract_strided_slice %135 {offsets = [10, 0], sizes = [2, 6], strides = [1, 1]} : vector<24x6xf32> to vector<2x6xf32>
    %cst_123 = arith.constant dense<0xFF800000> : vector<6xf32>
    %152 = vector.multi_reduction <maximumf>, %151, %cst_123 [0] : vector<2x6xf32> to vector<6xf32>
    %153 = vector.shape_cast %152 : vector<6xf32> to vector<1x6xf32>
    %154 = vector.extract_strided_slice %135 {offsets = [12, 0], sizes = [2, 6], strides = [1, 1]} : vector<24x6xf32> to vector<2x6xf32>
    %cst_124 = arith.constant dense<0xFF800000> : vector<6xf32>
    %155 = vector.multi_reduction <maximumf>, %154, %cst_124 [0] : vector<2x6xf32> to vector<6xf32>
    %156 = vector.shape_cast %155 : vector<6xf32> to vector<1x6xf32>
    %157 = vector.extract_strided_slice %135 {offsets = [14, 0], sizes = [2, 6], strides = [1, 1]} : vector<24x6xf32> to vector<2x6xf32>
    %cst_125 = arith.constant dense<0xFF800000> : vector<6xf32>
    %158 = vector.multi_reduction <maximumf>, %157, %cst_125 [0] : vector<2x6xf32> to vector<6xf32>
    %159 = vector.shape_cast %158 : vector<6xf32> to vector<1x6xf32>
    %160 = vector.extract_strided_slice %135 {offsets = [16, 0], sizes = [2, 6], strides = [1, 1]} : vector<24x6xf32> to vector<2x6xf32>
    %cst_126 = arith.constant dense<0xFF800000> : vector<6xf32>
    %161 = vector.multi_reduction <maximumf>, %160, %cst_126 [0] : vector<2x6xf32> to vector<6xf32>
    %162 = vector.shape_cast %161 : vector<6xf32> to vector<1x6xf32>
    %163 = vector.extract_strided_slice %135 {offsets = [18, 0], sizes = [2, 6], strides = [1, 1]} : vector<24x6xf32> to vector<2x6xf32>
    %cst_127 = arith.constant dense<0xFF800000> : vector<6xf32>
    %164 = vector.multi_reduction <maximumf>, %163, %cst_127 [0] : vector<2x6xf32> to vector<6xf32>
    %165 = vector.shape_cast %164 : vector<6xf32> to vector<1x6xf32>
    %166 = vector.extract_strided_slice %135 {offsets = [20, 0], sizes = [2, 6], strides = [1, 1]} : vector<24x6xf32> to vector<2x6xf32>
    %cst_128 = arith.constant dense<0xFF800000> : vector<6xf32>
    %167 = vector.multi_reduction <maximumf>, %166, %cst_128 [0] : vector<2x6xf32> to vector<6xf32>
    %168 = vector.shape_cast %167 : vector<6xf32> to vector<1x6xf32>
    %169 = vector.extract_strided_slice %135 {offsets = [22, 0], sizes = [2, 6], strides = [1, 1]} : vector<24x6xf32> to vector<2x6xf32>
    %cst_129 = arith.constant dense<0xFF800000> : vector<6xf32>
    %170 = vector.multi_reduction <maximumf>, %169, %cst_129 [0] : vector<2x6xf32> to vector<6xf32>
    %171 = vector.shape_cast %170 : vector<6xf32> to vector<1x6xf32>
    %172 = tpu.concatenate %138, %141, %144, %147, %150, %153, %156, %159, %162, %165, %168, %171 in 0 : vector<1x6xf32>, vector<1x6xf32>, vector<1x6xf32>, vector<1x6xf32>, vector<1x6xf32>, vector<1x6xf32>, vector<1x6xf32>, vector<1x6xf32>, vector<1x6xf32>, vector<1x6xf32>, vector<1x6xf32>, vector<1x6xf32> -> vector<12x6xf32>
    %c0_130 = arith.constant 0 : index
    %c0_131 = arith.constant 0 : index
    %173 = vector.load %arg4[%c0_130, %c0_131] : memref<1x6xf32, #tpu.memory_space<vmem>>, vector<1x6xf32>
    %174 = vector.broadcast %173 : vector<1x6xf32> to vector<12x6xf32>
    %175 = arith.addf %172, %174 : vector<12x6xf32>
    %cst_132 = arith.constant 0.000000e+00 : f32
    %176 = vector.broadcast %cst_132 : f32 to vector<12x6xf32>
    %177 = arith.maximumf %175, %176 : vector<12x6xf32>
    %c0_133 = arith.constant 0 : index
    %c0_134 = arith.constant 0 : index
    %c0_135 = arith.constant 0 : index
    %c0_136 = arith.constant 0 : index
    %178 = vector.load %arg5[%c0_133, %c0_134, %c0_135, %c0_136] : memref<1x1x12x6xf32, #tpu.memory_space<vmem>>, vector<1x1x12x6xf32>
    %179 = vector.shape_cast %178 : vector<1x1x12x6xf32> to vector<12x6xf32>
    %180 = vector.shape_cast %177 : vector<12x6xf32> to vector<1x1x12x6xf32>
    tpu.vector_store %arg5[%c0_133, %c0_134, %c0_135, %c0_136], %180 {strides = array<i32>} : memref<1x1x12x6xf32, #tpu.memory_space<vmem>>, vector<1x1x12x6xf32>,
    return
  }
  func.func @transform_0(%arg0: i32, %arg1: i32) -> (i32, i32, i32, i32) {
    %c0_i32 = arith.constant 0 : i32
    %c0_i32_0 = arith.constant 0 : i32
    %c0_i32_1 = arith.constant 0 : i32
    %c0_i32_2 = arith.constant 0 : i32
    return %arg0, %c0_i32, %c0_i32_0, %c0_i32_1 : i32, i32, i32, i32
  }
  func.func @transform_1(%arg0: i32, %arg1: i32) -> (i32, i32) {
    %c0_i32 = arith.constant 0 : i32
    %c0_i32_0 = arith.constant 0 : i32
    %c0_i32_1 = arith.constant 0 : i32
    return %c0_i32, %c0_i32_0 : i32, i32
  }
  func.func @transform_2(%arg0: i32, %arg1: i32) -> (i32, i32) {
    %c0_i32 = arith.constant 0 : i32
    %c0_i32_0 = arith.constant 0 : i32
    %c0_i32_1 = arith.constant 0 : i32
    return %c0_i32, %c0_i32_0 : i32, i32
  }
  func.func @transform_3(%arg0: i32, %arg1: i32) -> (i32, i32, i32, i32) {
    %c0_i32 = arith.constant 0 : i32
    %c0_i32_0 = arith.constant 0 : i32
    %c0_i32_1 = arith.constant 0 : i32
    return %arg0, %arg1, %c0_i32, %c0_i32_0 : i32, i32, i32, i32
  }
}

module attributes {stable_mosaic.version = 11 : i64} {
  func.func @_conv_relu_pool_kernel(%arg0: i32, %arg1: i32, %arg2: memref<1x12x12x6xf32, #tpu.memory_space<vmem>>, %arg3: memref<150x16xf32, #tpu.memory_space<vmem>>, %arg4: memref<1x16xf32, #tpu.memory_space<vmem>>, %arg5: memref<1x1x4x16xf32, #tpu.memory_space<vmem>>) attributes {dimension_semantics = [#tpu.dimension_semantics<parallel>, #tpu.dimension_semantics<parallel>], iteration_bounds = array<i64: 2, 4>, scalar_prefetch = 0 : i64, scratch_operands = 0 : i64, tpu.core_type = #tpu.core_type<tc>, window_params = [{transform_indices = @transform_0, window_bounds = array<i64: 1, 12, 12, 6>}, {pipeline_mode = #tpu.pipeline_mode<synchronous>, transform_indices = @transform_1, window_bounds = array<i64: 150, 16>}, {pipeline_mode = #tpu.pipeline_mode<synchronous>, transform_indices = @transform_2, window_bounds = array<i64: 1, 16>}, {transform_indices = @transform_3, window_bounds = array<i64: 1, 1, 4, 16>}]} {
    %c2_i32 = arith.constant 2 : i32
    %0 = arith.muli %c2_i32, %arg1 : i32
    %c0_i32 = arith.constant 0 : i32
    %1 = arith.addi %0, %c0_i32 : i32
    %c0 = arith.constant 0 : index
    %2 = arith.index_cast %1 : i32 to index
    %c0_0 = arith.constant 0 : index
    %c0_1 = arith.constant 0 : index
    %3 = vector.load %arg2[%c0, %2, %c0_0, %c0_1] : memref<1x12x12x6xf32, #tpu.memory_space<vmem>>, vector<1x2x8x6xf32>
    %4 = vector.shape_cast %3 : vector<1x2x8x6xf32> to vector<2x8x6xf32>
    %c2_i32_2 = arith.constant 2 : i32
    %5 = arith.muli %c2_i32_2, %arg1 : i32
    %c0_i32_3 = arith.constant 0 : i32
    %6 = arith.addi %5, %c0_i32_3 : i32
    %c0_4 = arith.constant 0 : index
    %7 = arith.index_cast %6 : i32 to index
    %c1 = arith.constant 1 : index
    %c0_5 = arith.constant 0 : index
    %8 = vector.load %arg2[%c0_4, %7, %c1, %c0_5] : memref<1x12x12x6xf32, #tpu.memory_space<vmem>>, vector<1x2x8x6xf32>
    %9 = vector.shape_cast %8 : vector<1x2x8x6xf32> to vector<2x8x6xf32>
    %c2_i32_6 = arith.constant 2 : i32
    %10 = arith.muli %c2_i32_6, %arg1 : i32
    %c0_i32_7 = arith.constant 0 : i32
    %11 = arith.addi %10, %c0_i32_7 : i32
    %c0_8 = arith.constant 0 : index
    %12 = arith.index_cast %11 : i32 to index
    %c2 = arith.constant 2 : index
    %c0_9 = arith.constant 0 : index
    %13 = vector.load %arg2[%c0_8, %12, %c2, %c0_9] : memref<1x12x12x6xf32, #tpu.memory_space<vmem>>, vector<1x2x8x6xf32>
    %14 = vector.shape_cast %13 : vector<1x2x8x6xf32> to vector<2x8x6xf32>
    %c2_i32_10 = arith.constant 2 : i32
    %15 = arith.muli %c2_i32_10, %arg1 : i32
    %c0_i32_11 = arith.constant 0 : i32
    %16 = arith.addi %15, %c0_i32_11 : i32
    %c0_12 = arith.constant 0 : index
    %17 = arith.index_cast %16 : i32 to index
    %c3 = arith.constant 3 : index
    %c0_13 = arith.constant 0 : index
    %18 = vector.load %arg2[%c0_12, %17, %c3, %c0_13] : memref<1x12x12x6xf32, #tpu.memory_space<vmem>>, vector<1x2x8x6xf32>
    %19 = vector.shape_cast %18 : vector<1x2x8x6xf32> to vector<2x8x6xf32>
    %c2_i32_14 = arith.constant 2 : i32
    %20 = arith.muli %c2_i32_14, %arg1 : i32
    %c0_i32_15 = arith.constant 0 : i32
    %21 = arith.addi %20, %c0_i32_15 : i32
    %c0_16 = arith.constant 0 : index
    %22 = arith.index_cast %21 : i32 to index
    %c4 = arith.constant 4 : index
    %c0_17 = arith.constant 0 : index
    %23 = vector.load %arg2[%c0_16, %22, %c4, %c0_17] : memref<1x12x12x6xf32, #tpu.memory_space<vmem>>, vector<1x2x8x6xf32>
    %24 = vector.shape_cast %23 : vector<1x2x8x6xf32> to vector<2x8x6xf32>
    %c2_i32_18 = arith.constant 2 : i32
    %25 = arith.muli %c2_i32_18, %arg1 : i32
    %c1_i32 = arith.constant 1 : i32
    %26 = arith.addi %25, %c1_i32 : i32
    %c0_19 = arith.constant 0 : index
    %27 = arith.index_cast %26 : i32 to index
    %c0_20 = arith.constant 0 : index
    %c0_21 = arith.constant 0 : index
    %28 = vector.load %arg2[%c0_19, %27, %c0_20, %c0_21] : memref<1x12x12x6xf32, #tpu.memory_space<vmem>>, vector<1x2x8x6xf32>
    %29 = vector.shape_cast %28 : vector<1x2x8x6xf32> to vector<2x8x6xf32>
    %c2_i32_22 = arith.constant 2 : i32
    %30 = arith.muli %c2_i32_22, %arg1 : i32
    %c1_i32_23 = arith.constant 1 : i32
    %31 = arith.addi %30, %c1_i32_23 : i32
    %c0_24 = arith.constant 0 : index
    %32 = arith.index_cast %31 : i32 to index
    %c1_25 = arith.constant 1 : index
    %c0_26 = arith.constant 0 : index
    %33 = vector.load %arg2[%c0_24, %32, %c1_25, %c0_26] : memref<1x12x12x6xf32, #tpu.memory_space<vmem>>, vector<1x2x8x6xf32>
    %34 = vector.shape_cast %33 : vector<1x2x8x6xf32> to vector<2x8x6xf32>
    %c2_i32_27 = arith.constant 2 : i32
    %35 = arith.muli %c2_i32_27, %arg1 : i32
    %c1_i32_28 = arith.constant 1 : i32
    %36 = arith.addi %35, %c1_i32_28 : i32
    %c0_29 = arith.constant 0 : index
    %37 = arith.index_cast %36 : i32 to index
    %c2_30 = arith.constant 2 : index
    %c0_31 = arith.constant 0 : index
    %38 = vector.load %arg2[%c0_29, %37, %c2_30, %c0_31] : memref<1x12x12x6xf32, #tpu.memory_space<vmem>>, vector<1x2x8x6xf32>
    %39 = vector.shape_cast %38 : vector<1x2x8x6xf32> to vector<2x8x6xf32>
    %c2_i32_32 = arith.constant 2 : i32
    %40 = arith.muli %c2_i32_32, %arg1 : i32
    %c1_i32_33 = arith.constant 1 : i32
    %41 = arith.addi %40, %c1_i32_33 : i32
    %c0_34 = arith.constant 0 : index
    %42 = arith.index_cast %41 : i32 to index
    %c3_35 = arith.constant 3 : index
    %c0_36 = arith.constant 0 : index
    %43 = vector.load %arg2[%c0_34, %42, %c3_35, %c0_36] : memref<1x12x12x6xf32, #tpu.memory_space<vmem>>, vector<1x2x8x6xf32>
    %44 = vector.shape_cast %43 : vector<1x2x8x6xf32> to vector<2x8x6xf32>
    %c2_i32_37 = arith.constant 2 : i32
    %45 = arith.muli %c2_i32_37, %arg1 : i32
    %c1_i32_38 = arith.constant 1 : i32
    %46 = arith.addi %45, %c1_i32_38 : i32
    %c0_39 = arith.constant 0 : index
    %47 = arith.index_cast %46 : i32 to index
    %c4_40 = arith.constant 4 : index
    %c0_41 = arith.constant 0 : index
    %48 = vector.load %arg2[%c0_39, %47, %c4_40, %c0_41] : memref<1x12x12x6xf32, #tpu.memory_space<vmem>>, vector<1x2x8x6xf32>
    %49 = vector.shape_cast %48 : vector<1x2x8x6xf32> to vector<2x8x6xf32>
    %c2_i32_42 = arith.constant 2 : i32
    %50 = arith.muli %c2_i32_42, %arg1 : i32
    %c2_i32_43 = arith.constant 2 : i32
    %51 = arith.addi %50, %c2_i32_43 : i32
    %c0_44 = arith.constant 0 : index
    %52 = arith.index_cast %51 : i32 to index
    %c0_45 = arith.constant 0 : index
    %c0_46 = arith.constant 0 : index
    %53 = vector.load %arg2[%c0_44, %52, %c0_45, %c0_46] : memref<1x12x12x6xf32, #tpu.memory_space<vmem>>, vector<1x2x8x6xf32>
    %54 = vector.shape_cast %53 : vector<1x2x8x6xf32> to vector<2x8x6xf32>
    %c2_i32_47 = arith.constant 2 : i32
    %55 = arith.muli %c2_i32_47, %arg1 : i32
    %c2_i32_48 = arith.constant 2 : i32
    %56 = arith.addi %55, %c2_i32_48 : i32
    %c0_49 = arith.constant 0 : index
    %57 = arith.index_cast %56 : i32 to index
    %c1_50 = arith.constant 1 : index
    %c0_51 = arith.constant 0 : index
    %58 = vector.load %arg2[%c0_49, %57, %c1_50, %c0_51] : memref<1x12x12x6xf32, #tpu.memory_space<vmem>>, vector<1x2x8x6xf32>
    %59 = vector.shape_cast %58 : vector<1x2x8x6xf32> to vector<2x8x6xf32>
    %c2_i32_52 = arith.constant 2 : i32
    %60 = arith.muli %c2_i32_52, %arg1 : i32
    %c2_i32_53 = arith.constant 2 : i32
    %61 = arith.addi %60, %c2_i32_53 : i32
    %c0_54 = arith.constant 0 : index
    %62 = arith.index_cast %61 : i32 to index
    %c2_55 = arith.constant 2 : index
    %c0_56 = arith.constant 0 : index
    %63 = vector.load %arg2[%c0_54, %62, %c2_55, %c0_56] : memref<1x12x12x6xf32, #tpu.memory_space<vmem>>, vector<1x2x8x6xf32>
    %64 = vector.shape_cast %63 : vector<1x2x8x6xf32> to vector<2x8x6xf32>
    %c2_i32_57 = arith.constant 2 : i32
    %65 = arith.muli %c2_i32_57, %arg1 : i32
    %c2_i32_58 = arith.constant 2 : i32
    %66 = arith.addi %65, %c2_i32_58 : i32
    %c0_59 = arith.constant 0 : index
    %67 = arith.index_cast %66 : i32 to index
    %c3_60 = arith.constant 3 : index
    %c0_61 = arith.constant 0 : index
    %68 = vector.load %arg2[%c0_59, %67, %c3_60, %c0_61] : memref<1x12x12x6xf32, #tpu.memory_space<vmem>>, vector<1x2x8x6xf32>
    %69 = vector.shape_cast %68 : vector<1x2x8x6xf32> to vector<2x8x6xf32>
    %c2_i32_62 = arith.constant 2 : i32
    %70 = arith.muli %c2_i32_62, %arg1 : i32
    %c2_i32_63 = arith.constant 2 : i32
    %71 = arith.addi %70, %c2_i32_63 : i32
    %c0_64 = arith.constant 0 : index
    %72 = arith.index_cast %71 : i32 to index
    %c4_65 = arith.constant 4 : index
    %c0_66 = arith.constant 0 : index
    %73 = vector.load %arg2[%c0_64, %72, %c4_65, %c0_66] : memref<1x12x12x6xf32, #tpu.memory_space<vmem>>, vector<1x2x8x6xf32>
    %74 = vector.shape_cast %73 : vector<1x2x8x6xf32> to vector<2x8x6xf32>
    %c2_i32_67 = arith.constant 2 : i32
    %75 = arith.muli %c2_i32_67, %arg1 : i32
    %c3_i32 = arith.constant 3 : i32
    %76 = arith.addi %75, %c3_i32 : i32
    %c0_68 = arith.constant 0 : index
    %77 = arith.index_cast %76 : i32 to index
    %c0_69 = arith.constant 0 : index
    %c0_70 = arith.constant 0 : index
    %78 = vector.load %arg2[%c0_68, %77, %c0_69, %c0_70] : memref<1x12x12x6xf32, #tpu.memory_space<vmem>>, vector<1x2x8x6xf32>
    %79 = vector.shape_cast %78 : vector<1x2x8x6xf32> to vector<2x8x6xf32>
    %c2_i32_71 = arith.constant 2 : i32
    %80 = arith.muli %c2_i32_71, %arg1 : i32
    %c3_i32_72 = arith.constant 3 : i32
    %81 = arith.addi %80, %c3_i32_72 : i32
    %c0_73 = arith.constant 0 : index
    %82 = arith.index_cast %81 : i32 to index
    %c1_74 = arith.constant 1 : index
    %c0_75 = arith.constant 0 : index
    %83 = vector.load %arg2[%c0_73, %82, %c1_74, %c0_75] : memref<1x12x12x6xf32, #tpu.memory_space<vmem>>, vector<1x2x8x6xf32>
    %84 = vector.shape_cast %83 : vector<1x2x8x6xf32> to vector<2x8x6xf32>
    %c2_i32_76 = arith.constant 2 : i32
    %85 = arith.muli %c2_i32_76, %arg1 : i32
    %c3_i32_77 = arith.constant 3 : i32
    %86 = arith.addi %85, %c3_i32_77 : i32
    %c0_78 = arith.constant 0 : index
    %87 = arith.index_cast %86 : i32 to index
    %c2_79 = arith.constant 2 : index
    %c0_80 = arith.constant 0 : index
    %88 = vector.load %arg2[%c0_78, %87, %c2_79, %c0_80] : memref<1x12x12x6xf32, #tpu.memory_space<vmem>>, vector<1x2x8x6xf32>
    %89 = vector.shape_cast %88 : vector<1x2x8x6xf32> to vector<2x8x6xf32>
    %c2_i32_81 = arith.constant 2 : i32
    %90 = arith.muli %c2_i32_81, %arg1 : i32
    %c3_i32_82 = arith.constant 3 : i32
    %91 = arith.addi %90, %c3_i32_82 : i32
    %c0_83 = arith.constant 0 : index
    %92 = arith.index_cast %91 : i32 to index
    %c3_84 = arith.constant 3 : index
    %c0_85 = arith.constant 0 : index
    %93 = vector.load %arg2[%c0_83, %92, %c3_84, %c0_85] : memref<1x12x12x6xf32, #tpu.memory_space<vmem>>, vector<1x2x8x6xf32>
    %94 = vector.shape_cast %93 : vector<1x2x8x6xf32> to vector<2x8x6xf32>
    %c2_i32_86 = arith.constant 2 : i32
    %95 = arith.muli %c2_i32_86, %arg1 : i32
    %c3_i32_87 = arith.constant 3 : i32
    %96 = arith.addi %95, %c3_i32_87 : i32
    %c0_88 = arith.constant 0 : index
    %97 = arith.index_cast %96 : i32 to index
    %c4_89 = arith.constant 4 : index
    %c0_90 = arith.constant 0 : index
    %98 = vector.load %arg2[%c0_88, %97, %c4_89, %c0_90] : memref<1x12x12x6xf32, #tpu.memory_space<vmem>>, vector<1x2x8x6xf32>
    %99 = vector.shape_cast %98 : vector<1x2x8x6xf32> to vector<2x8x6xf32>
    %c2_i32_91 = arith.constant 2 : i32
    %100 = arith.muli %c2_i32_91, %arg1 : i32
    %c4_i32 = arith.constant 4 : i32
    %101 = arith.addi %100, %c4_i32 : i32
    %c0_92 = arith.constant 0 : index
    %102 = arith.index_cast %101 : i32 to index
    %c0_93 = arith.constant 0 : index
    %c0_94 = arith.constant 0 : index
    %103 = vector.load %arg2[%c0_92, %102, %c0_93, %c0_94] : memref<1x12x12x6xf32, #tpu.memory_space<vmem>>, vector<1x2x8x6xf32>
    %104 = vector.shape_cast %103 : vector<1x2x8x6xf32> to vector<2x8x6xf32>
    %c2_i32_95 = arith.constant 2 : i32
    %105 = arith.muli %c2_i32_95, %arg1 : i32
    %c4_i32_96 = arith.constant 4 : i32
    %106 = arith.addi %105, %c4_i32_96 : i32
    %c0_97 = arith.constant 0 : index
    %107 = arith.index_cast %106 : i32 to index
    %c1_98 = arith.constant 1 : index
    %c0_99 = arith.constant 0 : index
    %108 = vector.load %arg2[%c0_97, %107, %c1_98, %c0_99] : memref<1x12x12x6xf32, #tpu.memory_space<vmem>>, vector<1x2x8x6xf32>
    %109 = vector.shape_cast %108 : vector<1x2x8x6xf32> to vector<2x8x6xf32>
    %c2_i32_100 = arith.constant 2 : i32
    %110 = arith.muli %c2_i32_100, %arg1 : i32
    %c4_i32_101 = arith.constant 4 : i32
    %111 = arith.addi %110, %c4_i32_101 : i32
    %c0_102 = arith.constant 0 : index
    %112 = arith.index_cast %111 : i32 to index
    %c2_103 = arith.constant 2 : index
    %c0_104 = arith.constant 0 : index
    %113 = vector.load %arg2[%c0_102, %112, %c2_103, %c0_104] : memref<1x12x12x6xf32, #tpu.memory_space<vmem>>, vector<1x2x8x6xf32>
    %114 = vector.shape_cast %113 : vector<1x2x8x6xf32> to vector<2x8x6xf32>
    %c2_i32_105 = arith.constant 2 : i32
    %115 = arith.muli %c2_i32_105, %arg1 : i32
    %c4_i32_106 = arith.constant 4 : i32
    %116 = arith.addi %115, %c4_i32_106 : i32
    %c0_107 = arith.constant 0 : index
    %117 = arith.index_cast %116 : i32 to index
    %c3_108 = arith.constant 3 : index
    %c0_109 = arith.constant 0 : index
    %118 = vector.load %arg2[%c0_107, %117, %c3_108, %c0_109] : memref<1x12x12x6xf32, #tpu.memory_space<vmem>>, vector<1x2x8x6xf32>
    %119 = vector.shape_cast %118 : vector<1x2x8x6xf32> to vector<2x8x6xf32>
    %c2_i32_110 = arith.constant 2 : i32
    %120 = arith.muli %c2_i32_110, %arg1 : i32
    %c4_i32_111 = arith.constant 4 : i32
    %121 = arith.addi %120, %c4_i32_111 : i32
    %c0_112 = arith.constant 0 : index
    %122 = arith.index_cast %121 : i32 to index
    %c4_113 = arith.constant 4 : index
    %c0_114 = arith.constant 0 : index
    %123 = vector.load %arg2[%c0_112, %122, %c4_113, %c0_114] : memref<1x12x12x6xf32, #tpu.memory_space<vmem>>, vector<1x2x8x6xf32>
    %124 = vector.shape_cast %123 : vector<1x2x8x6xf32> to vector<2x8x6xf32>
    %125 = tpu.concatenate %4, %9, %14, %19, %24, %29, %34, %39, %44, %49, %54, %59, %64, %69, %74, %79 in 2 : vector<2x8x6xf32>, vector<2x8x6xf32>, vector<2x8x6xf32>, vector<2x8x6xf32>, vector<2x8x6xf32>, vector<2x8x6xf32>, vector<2x8x6xf32>, vector<2x8x6xf32>, vector<2x8x6xf32>, vector<2x8x6xf32>, vector<2x8x6xf32>, vector<2x8x6xf32>, vector<2x8x6xf32>, vector<2x8x6xf32>, vector<2x8x6xf32>, vector<2x8x6xf32> -> vector<2x8x96xf32>
    %126 = tpu.concatenate %84, %89, %94, %99, %104, %109, %114, %119, %124 in 2 : vector<2x8x6xf32>, vector<2x8x6xf32>, vector<2x8x6xf32>, vector<2x8x6xf32>, vector<2x8x6xf32>, vector<2x8x6xf32>, vector<2x8x6xf32>, vector<2x8x6xf32>, vector<2x8x6xf32> -> vector<2x8x54xf32>
    %127 = tpu.concatenate %125, %126 in 2 : vector<2x8x96xf32>, vector<2x8x54xf32> -> vector<2x8x150xf32>
    %c0_115 = arith.constant 0 : index
    %c0_116 = arith.constant 0 : index
    %128 = vector.load %arg3[%c0_115, %c0_116] : memref<150x16xf32, #tpu.memory_space<vmem>>, vector<150x16xf32>
    %129 = vector.extract_strided_slice %127 {offsets = [0, 0, 0], sizes = [1, 8, 150], strides = [1, 1, 1]} : vector<2x8x150xf32> to vector<1x8x150xf32>
    %130 = vector.shape_cast %129 : vector<1x8x150xf32> to vector<8x150xf32>
    %cst = arith.constant dense<0.000000e+00> : vector<8x16xf32>
    %131 = tpu.matmul %130, %128, %cst {dimension_numbers = #tpu.dot_dimension_numbers<[1], [0], [0], [1], [0, 0, 1, 1], [], []>} : vector<8x150xf32>, vector<150x16xf32>, vector<8x16xf32> -> vector<8x16xf32>
    %132 = vector.extract_strided_slice %127 {offsets = [1, 0, 0], sizes = [1, 8, 150], strides = [1, 1, 1]} : vector<2x8x150xf32> to vector<1x8x150xf32>
    %133 = vector.shape_cast %132 : vector<1x8x150xf32> to vector<8x150xf32>
    %cst_117 = arith.constant dense<0.000000e+00> : vector<8x16xf32>
    %134 = tpu.matmul %133, %128, %cst_117 {dimension_numbers = #tpu.dot_dimension_numbers<[1], [0], [0], [1], [0, 0, 1, 1], [], []>} : vector<8x150xf32>, vector<150x16xf32>, vector<8x16xf32> -> vector<8x16xf32>
    %135 = arith.maximumf %131, %134 : vector<8x16xf32>
    %136 = vector.extract_strided_slice %135 {offsets = [0, 0], sizes = [2, 16], strides = [1, 1]} : vector<8x16xf32> to vector<2x16xf32>
    %cst_118 = arith.constant dense<0xFF800000> : vector<16xf32>
    %137 = vector.multi_reduction <maximumf>, %136, %cst_118 [0] : vector<2x16xf32> to vector<16xf32>
    %138 = vector.shape_cast %137 : vector<16xf32> to vector<1x16xf32>
    %139 = vector.extract_strided_slice %135 {offsets = [2, 0], sizes = [2, 16], strides = [1, 1]} : vector<8x16xf32> to vector<2x16xf32>
    %cst_119 = arith.constant dense<0xFF800000> : vector<16xf32>
    %140 = vector.multi_reduction <maximumf>, %139, %cst_119 [0] : vector<2x16xf32> to vector<16xf32>
    %141 = vector.shape_cast %140 : vector<16xf32> to vector<1x16xf32>
    %142 = vector.extract_strided_slice %135 {offsets = [4, 0], sizes = [2, 16], strides = [1, 1]} : vector<8x16xf32> to vector<2x16xf32>
    %cst_120 = arith.constant dense<0xFF800000> : vector<16xf32>
    %143 = vector.multi_reduction <maximumf>, %142, %cst_120 [0] : vector<2x16xf32> to vector<16xf32>
    %144 = vector.shape_cast %143 : vector<16xf32> to vector<1x16xf32>
    %145 = vector.extract_strided_slice %135 {offsets = [6, 0], sizes = [2, 16], strides = [1, 1]} : vector<8x16xf32> to vector<2x16xf32>
    %cst_121 = arith.constant dense<0xFF800000> : vector<16xf32>
    %146 = vector.multi_reduction <maximumf>, %145, %cst_121 [0] : vector<2x16xf32> to vector<16xf32>
    %147 = vector.shape_cast %146 : vector<16xf32> to vector<1x16xf32>
    %148 = tpu.concatenate %138, %141, %144, %147 in 0 : vector<1x16xf32>, vector<1x16xf32>, vector<1x16xf32>, vector<1x16xf32> -> vector<4x16xf32>
    %c0_122 = arith.constant 0 : index
    %c0_123 = arith.constant 0 : index
    %149 = vector.load %arg4[%c0_122, %c0_123] : memref<1x16xf32, #tpu.memory_space<vmem>>, vector<1x16xf32>
    %150 = vector.broadcast %149 : vector<1x16xf32> to vector<4x16xf32>
    %151 = arith.addf %148, %150 : vector<4x16xf32>
    %cst_124 = arith.constant 0.000000e+00 : f32
    %152 = vector.broadcast %cst_124 : f32 to vector<4x16xf32>
    %153 = arith.maximumf %151, %152 : vector<4x16xf32>
    %c0_125 = arith.constant 0 : index
    %c0_126 = arith.constant 0 : index
    %c0_127 = arith.constant 0 : index
    %c0_128 = arith.constant 0 : index
    %154 = vector.load %arg5[%c0_125, %c0_126, %c0_127, %c0_128] : memref<1x1x4x16xf32, #tpu.memory_space<vmem>>, vector<1x1x4x16xf32>
    %155 = vector.shape_cast %154 : vector<1x1x4x16xf32> to vector<4x16xf32>
    %156 = vector.shape_cast %153 : vector<4x16xf32> to vector<1x1x4x16xf32>
    tpu.vector_store %arg5[%c0_125, %c0_126, %c0_127, %c0_128], %156 {strides = array<i32>} : memref<1x1x4x16xf32, #tpu.memory_space<vmem>>, vector<1x1x4x16xf32>,
    return
  }
  func.func @transform_0(%arg0: i32, %arg1: i32) -> (i32, i32, i32, i32) {
    %c0_i32 = arith.constant 0 : i32
    %c0_i32_0 = arith.constant 0 : i32
    %c0_i32_1 = arith.constant 0 : i32
    %c0_i32_2 = arith.constant 0 : i32
    return %arg0, %c0_i32, %c0_i32_0, %c0_i32_1 : i32, i32, i32, i32
  }
  func.func @transform_1(%arg0: i32, %arg1: i32) -> (i32, i32) {
    %c0_i32 = arith.constant 0 : i32
    %c0_i32_0 = arith.constant 0 : i32
    %c0_i32_1 = arith.constant 0 : i32
    return %c0_i32, %c0_i32_0 : i32, i32
  }
  func.func @transform_2(%arg0: i32, %arg1: i32) -> (i32, i32) {
    %c0_i32 = arith.constant 0 : i32
    %c0_i32_0 = arith.constant 0 : i32
    %c0_i32_1 = arith.constant 0 : i32
    return %c0_i32, %c0_i32_0 : i32, i32
  }
  func.func @transform_3(%arg0: i32, %arg1: i32) -> (i32, i32, i32, i32) {
    %c0_i32 = arith.constant 0 : i32
    %c0_i32_0 = arith.constant 0 : i32
    %c0_i32_1 = arith.constant 0 : i32
    return %arg0, %arg1, %c0_i32, %c0_i32_0 : i32, i32, i32, i32
  }
}

module attributes {stable_mosaic.version = 11 : i64} {
  func.func @_fc_fused_kernel(%arg0: i32, %arg1: memref<2x256xf32, #tpu.memory_space<vmem>>, %arg2: memref<256x120xf32, #tpu.memory_space<vmem>>, %arg3: memref<1x120xf32, #tpu.memory_space<vmem>>, %arg4: memref<120x84xf32, #tpu.memory_space<vmem>>, %arg5: memref<1x84xf32, #tpu.memory_space<vmem>>, %arg6: memref<84x10xf32, #tpu.memory_space<vmem>>, %arg7: memref<1x10xf32, #tpu.memory_space<vmem>>, %arg8: memref<2x10xf32, #tpu.memory_space<vmem>>) attributes {dimension_semantics = [#tpu.dimension_semantics<arbitrary>], iteration_bounds = array<i64: 1>, scalar_prefetch = 0 : i64, scratch_operands = 0 : i64, tpu.core_type = #tpu.core_type<tc>, window_params = [{pipeline_mode = #tpu.pipeline_mode<synchronous>, transform_indices = @transform_0, window_bounds = array<i64: 2, 256>}, {pipeline_mode = #tpu.pipeline_mode<synchronous>, transform_indices = @transform_1, window_bounds = array<i64: 256, 120>}, {pipeline_mode = #tpu.pipeline_mode<synchronous>, transform_indices = @transform_2, window_bounds = array<i64: 1, 120>}, {pipeline_mode = #tpu.pipeline_mode<synchronous>, transform_indices = @transform_3, window_bounds = array<i64: 120, 84>}, {pipeline_mode = #tpu.pipeline_mode<synchronous>, transform_indices = @transform_4, window_bounds = array<i64: 1, 84>}, {pipeline_mode = #tpu.pipeline_mode<synchronous>, transform_indices = @transform_5, window_bounds = array<i64: 84, 10>}, {pipeline_mode = #tpu.pipeline_mode<synchronous>, transform_indices = @transform_6, window_bounds = array<i64: 1, 10>}, {pipeline_mode = #tpu.pipeline_mode<synchronous>, transform_indices = @transform_7, window_bounds = array<i64: 2, 10>}]} {
    %c0 = arith.constant 0 : index
    %c0_0 = arith.constant 0 : index
    %0 = vector.load %arg1[%c0, %c0_0] : memref<2x256xf32, #tpu.memory_space<vmem>>, vector<2x256xf32>
    %c0_1 = arith.constant 0 : index
    %c0_2 = arith.constant 0 : index
    %1 = vector.load %arg2[%c0_1, %c0_2] : memref<256x120xf32, #tpu.memory_space<vmem>>, vector<256x120xf32>
    %cst = arith.constant dense<0.000000e+00> : vector<2x120xf32>
    %2 = tpu.matmul %0, %1, %cst {dimension_numbers = #tpu.dot_dimension_numbers<[1], [0], [0], [1], [0, 0, 1, 1], [], []>} : vector<2x256xf32>, vector<256x120xf32>, vector<2x120xf32> -> vector<2x120xf32>
    %c0_3 = arith.constant 0 : index
    %c0_4 = arith.constant 0 : index
    %3 = vector.load %arg3[%c0_3, %c0_4] : memref<1x120xf32, #tpu.memory_space<vmem>>, vector<1x120xf32>
    %4 = vector.broadcast %3 : vector<1x120xf32> to vector<2x120xf32>
    %5 = arith.addf %2, %4 : vector<2x120xf32>
    %cst_5 = arith.constant 0.000000e+00 : f32
    %6 = vector.broadcast %cst_5 : f32 to vector<2x120xf32>
    %7 = arith.maximumf %5, %6 : vector<2x120xf32>
    %c0_6 = arith.constant 0 : index
    %c0_7 = arith.constant 0 : index
    %8 = vector.load %arg4[%c0_6, %c0_7] : memref<120x84xf32, #tpu.memory_space<vmem>>, vector<120x84xf32>
    %cst_8 = arith.constant dense<0.000000e+00> : vector<2x84xf32>
    %9 = tpu.matmul %7, %8, %cst_8 {dimension_numbers = #tpu.dot_dimension_numbers<[1], [0], [0], [1], [0, 0, 1, 1], [], []>} : vector<2x120xf32>, vector<120x84xf32>, vector<2x84xf32> -> vector<2x84xf32>
    %c0_9 = arith.constant 0 : index
    %c0_10 = arith.constant 0 : index
    %10 = vector.load %arg5[%c0_9, %c0_10] : memref<1x84xf32, #tpu.memory_space<vmem>>, vector<1x84xf32>
    %11 = vector.broadcast %10 : vector<1x84xf32> to vector<2x84xf32>
    %12 = arith.addf %9, %11 : vector<2x84xf32>
    %cst_11 = arith.constant 0.000000e+00 : f32
    %13 = vector.broadcast %cst_11 : f32 to vector<2x84xf32>
    %14 = arith.maximumf %12, %13 : vector<2x84xf32>
    %c0_12 = arith.constant 0 : index
    %c0_13 = arith.constant 0 : index
    %15 = vector.load %arg6[%c0_12, %c0_13] : memref<84x10xf32, #tpu.memory_space<vmem>>, vector<84x10xf32>
    %cst_14 = arith.constant dense<0.000000e+00> : vector<2x10xf32>
    %16 = tpu.matmul %14, %15, %cst_14 {dimension_numbers = #tpu.dot_dimension_numbers<[1], [0], [0], [1], [0, 0, 1, 1], [], []>} : vector<2x84xf32>, vector<84x10xf32>, vector<2x10xf32> -> vector<2x10xf32>
    %c0_15 = arith.constant 0 : index
    %c0_16 = arith.constant 0 : index
    %17 = vector.load %arg7[%c0_15, %c0_16] : memref<1x10xf32, #tpu.memory_space<vmem>>, vector<1x10xf32>
    %18 = vector.broadcast %17 : vector<1x10xf32> to vector<2x10xf32>
    %19 = arith.addf %16, %18 : vector<2x10xf32>
    %c0_17 = arith.constant 0 : index
    %c0_18 = arith.constant 0 : index
    %20 = vector.load %arg8[%c0_17, %c0_18] : memref<2x10xf32, #tpu.memory_space<vmem>>, vector<2x10xf32>
    tpu.vector_store %arg8[%c0_17, %c0_18], %19 {strides = array<i32>} : memref<2x10xf32, #tpu.memory_space<vmem>>, vector<2x10xf32>,
    return
  }
  func.func @transform_0(%arg0: i32) -> (i32, i32) {
    %c0_i32 = arith.constant 0 : i32
    %c0_i32_0 = arith.constant 0 : i32
    %c0_i32_1 = arith.constant 0 : i32
    return %c0_i32, %c0_i32_0 : i32, i32
  }
  func.func @transform_1(%arg0: i32) -> (i32, i32) {
    %c0_i32 = arith.constant 0 : i32
    %c0_i32_0 = arith.constant 0 : i32
    %c0_i32_1 = arith.constant 0 : i32
    return %c0_i32, %c0_i32_0 : i32, i32
  }
  func.func @transform_2(%arg0: i32) -> (i32, i32) {
    %c0_i32 = arith.constant 0 : i32
    %c0_i32_0 = arith.constant 0 : i32
    %c0_i32_1 = arith.constant 0 : i32
    return %c0_i32, %c0_i32_0 : i32, i32
  }
  func.func @transform_3(%arg0: i32) -> (i32, i32) {
    %c0_i32 = arith.constant 0 : i32
    %c0_i32_0 = arith.constant 0 : i32
    %c0_i32_1 = arith.constant 0 : i32
    return %c0_i32, %c0_i32_0 : i32, i32
  }
  func.func @transform_4(%arg0: i32) -> (i32, i32) {
    %c0_i32 = arith.constant 0 : i32
    %c0_i32_0 = arith.constant 0 : i32
    %c0_i32_1 = arith.constant 0 : i32
    return %c0_i32, %c0_i32_0 : i32, i32
  }
  func.func @transform_5(%arg0: i32) -> (i32, i32) {
    %c0_i32 = arith.constant 0 : i32
    %c0_i32_0 = arith.constant 0 : i32
    %c0_i32_1 = arith.constant 0 : i32
    return %c0_i32, %c0_i32_0 : i32, i32
  }
  func.func @transform_6(%arg0: i32) -> (i32, i32) {
    %c0_i32 = arith.constant 0 : i32
    %c0_i32_0 = arith.constant 0 : i32
    %c0_i32_1 = arith.constant 0 : i32
    return %c0_i32, %c0_i32_0 : i32, i32
  }
  func.func @transform_7(%arg0: i32) -> (i32, i32) {
    %c0_i32 = arith.constant 0 : i32
    %c0_i32_0 = arith.constant 0 : i32
    %c0_i32_1 = arith.constant 0 : i32
    return %c0_i32, %c0_i32_0 : i32, i32
  }
}

</mosaic_0001>

<llo_original>
// kernel: lenet_forward.4
$region0: #{lenet_forward.4}
  #allocation0 [shape = 'u32[]', space=smem, size = 0x4, offset = 0x4, fixed_abs, tag = 'smem constant byte address 0x4 - core index']
  #allocation1 [shape = 'u32[144,128]{1,0:T(1,128)}', space=vmem, size = 0x12000, scoped, tag = 'internal scratch']
  %s0 = inlined_call_operand.vmem [shape: f32[2,12,12,6], index: 0, kind: input, shape index: {}]
  %s1 = inlined_call_operand.vmem [shape: f32[150,16], index: 1, kind: input, shape index: {}]
  %s2 = inlined_call_operand.vmem [shape: f32[1,16], index: 2, kind: input, shape index: {}]
  %s3 = inlined_call_operand.vmem [shape: f32[2,4,4,16], index: 3, kind: output, shape index: {}]
  %s4 = sld [smem:[#allocation0]]
  $region45: #{lenet_forward.4} parent=0
    _
  %s6 = ssub.s32 1, %s4
  %s7 = scalar_select 0, %s6, %s4
  loop: start=0, step=1, limit=10
  $region2: #{lenet_forward.4} parent=0 // loop_pre_header
    _
  $region3: #{lenet_forward.4} parent=0 // loop_header
    %s9 = sphi 0, %s13
    %p10 = scmp.ge.s32.totalorder %s9, 10
    %s16 = sphi 0, %s28
    %s17 = sphi 0, %s24
    %s18 = sphi 0, %s16
    %s19 = sphi 0, %s17
    %s20 = sphi 0, %s18
    %s21 = sphi 0, %s19
    %s31 = sphi 0, %s33
    %s34 = sphi 0, %s31
    %s35 = sphi 0, %s34
    %s51 = sphi 0, %s35
    %s55 = sphi 0, %s55
    %s57 = sphi 0, %s55
    %s58 = sphi 0, %s57
    %s72 = sphi 0, %s58
    %s76 = sphi 0, %s76
    %s78 = sphi 0, %s76
    %s79 = sphi 0, %s78
    %s93 = sphi 0, %s79
    %s101 = sphi 0, %s103
    %s104 = sphi 0, %s101
    %s105 = sphi 0, %s104
    %s121 = sphi 0, %s105
  $region4: #{lenet_forward.4} parent=0 // loop_header_branch
    %12 = sbr.rel (%p10) target = $region8
  $region5: #{lenet_forward.4} parent=0 // loop_body
    %s14 = ssub.s32 %s9, 1
    %s15 = ssub.s32 %s9, 2
    %s22 = sadd.s32 1, %s17
    %p23 = scmp.ge.s32.totalorder %s22, 4
    %s24 = scalar_select %p23, 0, %s22
    %s25 = sadd.s32 1, %s16
    %s26 = scalar_select %p23, %s25, %s16
    %p27 = scmp.ge.s32.totalorder %s26, 2
    %s28 = scalar_select %p27, 0, %s26
    %s29 = ssub.s32 %s16, %s28
    %p30 = scmp.eq.s32.totalorder %s29, 0
    %s32 = sadd.s32 %s31, 1
    %s33 = scalar_select %p30, %s31, %s32
    %p36 = pneg %p30
    %p37 = scmp.eq.s32.totalorder %s9, 7
    %p38 = por %p36, %p37
    %p39 = scmp.ne.s32.totalorder %s31, %s34
    %p40 = scmp.eq.s32.totalorder %s9, 0
    %p41 = por %p39, %p40
    %p42 = scmp.ne.s32.totalorder %s31, %s34
    %p43 = scmp.eq.s32.totalorder %s14, 7
    %p44 = por %p42, %p43
    %p45 = scmp.ne.s32.totalorder %s34, %s35
    %p46 = scmp.eq.s32.totalorder %s14, 0
    %p47 = por %p45, %p46
    %p48 = scmp.ne.s32.totalorder %s34, %s35
    %p49 = scmp.eq.s32.totalorder %s15, 7
    %p50 = por %p48, %p49
    %p52 = scmp.ne.s32.totalorder %s35, %s51
    %p53 = scmp.eq.s32.totalorder %s15, 0
    %p54 = por %p52, %p53
    %s56 = sadd.s32 %s55, 1
    %p59 = scmp.eq.s32.totalorder %s9, 7
    %p60 = scmp.ne.s32.totalorder %s55, %s57
    %p61 = scmp.eq.s32.totalorder %s9, 0
    %p62 = por %p60, %p61
    %p63 = scmp.ne.s32.totalorder %s55, %s57
    %p64 = scmp.eq.s32.totalorder %s14, 7
    %p65 = por %p63, %p64
    %p66 = scmp.ne.s32.totalorder %s57, %s58
    %p67 = scmp.eq.s32.totalorder %s14, 0
    %p68 = por %p66, %p67
    %p69 = scmp.ne.s32.totalorder %s57, %s58
    %p70 = scmp.eq.s32.totalorder %s15, 7
    %p71 = por %p69, %p70
    %p73 = scmp.ne.s32.totalorder %s58, %s72
    %p74 = scmp.eq.s32.totalorder %s15, 0
    %p75 = por %p73, %p74
    %s77 = sadd.s32 %s76, 1
    %p80 = scmp.eq.s32.totalorder %s9, 7
    %p81 = scmp.ne.s32.totalorder %s76, %s78
    %p82 = scmp.eq.s32.totalorder %s9, 0
    %p83 = por %p81, %p82
    %p84 = scmp.ne.s32.totalorder %s76, %s78
    %p85 = scmp.eq.s32.totalorder %s14, 7
    %p86 = por %p84, %p85
    %p87 = scmp.ne.s32.totalorder %s78, %s79
    %p88 = scmp.eq.s32.totalorder %s14, 0
    %p89 = por %p87, %p88
    %p90 = scmp.ne.s32.totalorder %s78, %s79
    %p91 = scmp.eq.s32.totalorder %s15, 7
    %p92 = por %p90, %p91
    %p94 = scmp.ne.s32.totalorder %s79, %s93
    %p95 = scmp.eq.s32.totalorder %s15, 0
    %p96 = por %p94, %p95
    %s97 = ssub.s32 %s16, %s28
    %s98 = ssub.s32 %s17, %s24
    %s99 = sor.u32 %s97, %s98
    %p100 = scmp.eq.s32.totalorder %s99, 0
    %s102 = sadd.s32 %s101, 1
    %s103 = scalar_select %p100, %s101, %s102
    %p106 = pneg %p100
    %p107 = scmp.eq.s32.totalorder %s9, 7
    %p108 = por %p106, %p107
    %p109 = scmp.ne.s32.totalorder %s101, %s104
    %p110 = scmp.eq.s32.totalorder %s9, 0
    %p111 = por %p109, %p110
    %p112 = scmp.ne.s32.totalorder %s101, %s104
    %p113 = scmp.eq.s32.totalorder %s14, 7
    %p114 = por %p112, %p113
    %p115 = scmp.ne.s32.totalorder %s104, %s105
    %p116 = scmp.eq.s32.totalorder %s14, 0
    %p117 = por %p115, %p116
    %p118 = scmp.ne.s32.totalorder %s104, %s105
    %p119 = scmp.eq.s32.totalorder %s15, 7
    %p120 = por %p118, %p119
    %p122 = scmp.ne.s32.totalorder %s105, %s121
    %p123 = scmp.eq.s32.totalorder %s15, 0
    %p124 = por %p122, %p123
    %p125 = scmp.le.s32.totalorder 1, %s9
    %p126 = scmp.lt.s32.totalorder %s9, 9
    %p127 = pnand %p125, %p126
    %p128 = pneg %p127
    // Predicated region
    $region9: #{lenet_forward.4} parent=5 // pred_check
      _
    $region10: #{lenet_forward.4} parent=5 // pred_check_branch
      %130 = sbr.rel (%p127) target = $region12
    $region11: #{lenet_forward.4} parent=5 // pred_region
      %s131 = ssub.s32 %s9, 1
      // Predicated region
      $region13: #{lenet_forward.4} parent=11 // pred_check
        %p132 = pneg %p68
      $region14: #{lenet_forward.4} parent=11 // pred_check_branch
        %134 = sbr.rel (%p132) target = $region16
      $region15: #{lenet_forward.4} parent=11 // pred_region
        _
      $region16: #{lenet_forward.4} parent=11 // pred_fallthru
        _
      // Predicated region
      $region17: #{lenet_forward.4} parent=11 // pred_check
        %p135 = pneg %p89
      $region18: #{lenet_forward.4} parent=11 // pred_check_branch
        %137 = sbr.rel (%p135) target = $region20
      $region19: #{lenet_forward.4} parent=11 // pred_region
        _
      $region20: #{lenet_forward.4} parent=11 // pred_fallthru
        _
    $region12: #{lenet_forward.4} parent=5 // pred_fallthru
      _
    %p138 = scmp.lt.s32.totalorder %s9, 8
    // Predicated region
    $region21: #{lenet_forward.4} parent=5 // pred_check
      %p139 = pneg %p138
    $region22: #{lenet_forward.4} parent=5 // pred_check_branch
      %141 = sbr.rel (%p139) target = $region24
    $region23: #{lenet_forward.4} parent=5 // pred_region
      // Predicated region
      $region25: #{lenet_forward.4} parent=23 // pred_check
        %p142 = pneg %p41
      $region26: #{lenet_forward.4} parent=23 // pred_check_branch
        %144 = sbr.rel (%p142) target = $region28
      $region27: #{lenet_forward.4} parent=23 // pred_region
        %p145 = scmp.lt.s32.totalorder %s16, 1
        %s146 = scalar_select %p145, %s16, 1
        %s147 = smul.addr %s146, 24
        %s148 = smul.addr %s147, 8
        %s149 = scalar_lea.vmem %s0, %s148
      $region28: #{lenet_forward.4} parent=23 // pred_fallthru
        _
    $region24: #{lenet_forward.4} parent=5 // pred_fallthru
      _
    %p150 = scmp.le.s32.totalorder 1, %s9
    %p151 = scmp.lt.s32.totalorder %s9, 9
    %p152 = pnand %p150, %p151
    %p153 = pneg %p152
    // Predicated region
    $region29: #{lenet_forward.4} parent=5 // pred_check
      _
    $region30: #{lenet_forward.4} parent=5 // pred_check_branch
      %155 = sbr.rel (%p152) target = $region32
    $region31: #{lenet_forward.4} parent=5 // pred_region
      %s156 = ssub.s32 %s9, 1
      %p157 = scmp.lt.s32.totalorder %s18, 1
      %s158 = scalar_select %p157, %s18, 1
      %s159 = smul.addr %s158, 24
      %s160 = smul.addr %s159, 8
      %s161 = scalar_lea.vmem %s0, %s160
      %p162 = pneg %p47
      %p163 = pneg %p44
      %p164 = pneg %p68
      %p165 = pneg %p65
      %p166 = pneg %p89
      %p167 = pneg %p86
      %p168 = pneg %p117
      %p169 = pneg %p114
      %p170 = scmp.lt.s32.totalorder %s18, 1
      %s171 = scalar_select %p170, %s18, 1
      %p172 = scmp.lt.s32.totalorder %s19, 3
      %s173 = scalar_select %p172, %s19, 3
      %s174 = smul.addr %s171, 4
      %s175 = sadd.s32 %s173, %s174
      %s176 = smul.addr %s175, 4
      %s177 = scalar_lea.vmem %s3, %s176
      %p178 = scmp.lt.s32.totalorder %s18, 1
      %s179 = scalar_select %p178, %s18, 1
      %s180 = smul.addr %s179, 24
      %s181 = smul.addr %s180, 8
      %s182 = scalar_lea.vmem %s0, %s181
      %p183 = scmp.lt.s32.totalorder %s18, 1
      %s184 = scalar_select %p183, %s18, 1
      %p185 = scmp.lt.s32.totalorder %s19, 3
      %s186 = scalar_select %p185, %s19, 3
      %s187 = smul.addr %s184, 4
      %s188 = sadd.s32 %s186, %s187
      %s189 = smul.addr %s188, 4
      %s190 = scalar_lea.vmem %s3, %s189
      %s191 = smul.u32 %s19, 2
      %s192 = smul.u32 %s191, 16
      %s193 = scalar_lea.vmem %s182, %s192
      %v194 = vld [vmem:[%s193] sm:$0xff]
      %v195 = vld [vmem:[%s193 + $0x10] sm:$0xff]
      %v196 = vld [vmem:[%s193 + $0x1] sm:$0xff]
      %v197 = vld [vmem:[%s193 + $0x11] sm:$0xff]
      %v198 = vld [vmem:[%s193 + $0x2] sm:$0xff]
      %v199 = vld [vmem:[%s193 + $0x12] sm:$0xff]
      %v200 = vld [vmem:[%s193 + $0x3] sm:$0xff]
      %v201 = vld [vmem:[%s193 + $0x13] sm:$0xff]
      %v202 = vld [vmem:[%s193 + $0x4] sm:$0xff]
      %v203 = vld [vmem:[%s193 + $0x14] sm:$0xff]
      %s204 = sadd.s32 %s191, 1
      %s205 = smul.u32 %s204, 16
      %s206 = scalar_lea.vmem %s182, %s205
      %v207 = vld [vmem:[%s206] sm:$0xff]
      %v208 = vld [vmem:[%s206 + $0x10] sm:$0xff]
      %v209 = vld [vmem:[%s206 + $0x1] sm:$0xff]
      %v210 = vld [vmem:[%s206 + $0x11] sm:$0xff]
      %v211 = vld [vmem:[%s206 + $0x2] sm:$0xff]
      %v212 = vld [vmem:[%s206 + $0x12] sm:$0xff]
      %v213 = vld [vmem:[%s206 + $0x3] sm:$0xff]
      %v214 = vld [vmem:[%s206 + $0x13] sm:$0xff]
      %v215 = vld [vmem:[%s206 + $0x4] sm:$0xff]
      %v216 = vld [vmem:[%s206 + $0x14] sm:$0xff]
      %s217 = sadd.s32 %s191, 2
      %s218 = smul.u32 %s217, 16
      %s219 = scalar_lea.vmem %s182, %s218
      %v220 = vld [vmem:[%s219] sm:$0xff]
      %v221 = vld [vmem:[%s219 + $0x10] sm:$0xff]
      %v222 = vld [vmem:[%s219 + $0x1] sm:$0xff]
      %v223 = vld [vmem:[%s219 + $0x11] sm:$0xff]
      %v224 = vld [vmem:[%s219 + $0x2] sm:$0xff]
      %v225 = vld [vmem:[%s219 + $0x12] sm:$0xff]
      %v226 = vld [vmem:[%s219 + $0x3] sm:$0xff]
      %v227 = vld [vmem:[%s219 + $0x13] sm:$0xff]
      %v228 = vld [vmem:[%s219 + $0x4] sm:$0xff]
      %v229 = vld [vmem:[%s219 + $0x14] sm:$0xff]
      %s230 = sadd.s32 %s191, 3
      %s231 = smul.u32 %s230, 16
      %s232 = scalar_lea.vmem %s182, %s231
      %v233 = vld [vmem:[%s232] sm:$0xff]
      %v234 = vld [vmem:[%s232 + $0x10] sm:$0xff]
      %v235 = vld [vmem:[%s232 + $0x1] sm:$0xff]
      %v236 = vld [vmem:[%s232 + $0x11] sm:$0xff]
      %v237 = vld [vmem:[%s232 + $0x2] sm:$0xff]
      %v238 = vld [vmem:[%s232 + $0x12] sm:$0xff]
      %v239 = vld [vmem:[%s232 + $0x3] sm:$0xff]
      %v240 = vld [vmem:[%s232 + $0x13] sm:$0xff]
      %v241 = vld [vmem:[%s232 + $0x4] sm:$0xff]
      %v242 = vld [vmem:[%s232 + $0x14] sm:$0xff]
      %s243 = sadd.s32 %s191, 4
      %s244 = smul.u32 %s243, 16
      %s245 = scalar_lea.vmem %s182, %s244
      %v246 = vld [vmem:[%s245] sm:$0xff]
      %v247 = vld [vmem:[%s245 + $0x10] sm:$0xff]
      %v248 = vld [vmem:[%s245 + $0x1] sm:$0xff]
      %v249 = vld [vmem:[%s245 + $0x11] sm:$0xff]
      %v250 = vld [vmem:[%s245 + $0x2] sm:$0xff]
      %v251 = vld [vmem:[%s245 + $0x12] sm:$0xff]
      %v252 = vld [vmem:[%s245 + $0x3] sm:$0xff]
      %v253 = vld [vmem:[%s245 + $0x13] sm:$0xff]
      %v254 = vld [vmem:[%s245 + $0x4] sm:$0xff]
      %v255 = vld [vmem:[%s245 + $0x14] sm:$0xff]
      %258 = vrot.lane.b32.xlu0 %v196, 6
      %v259 = vpop.permute.xlu0 %258
      %260 = vrot.lane.b32.xlu0 %v197, 6
      %v261 = vpop.permute.xlu0 %260
      %266 = vrot.lane.b32.xlu0 %v198, 12
      %v267 = vpop.permute.xlu0 %266
      %268 = vrot.lane.b32.xlu0 %v199, 12
      %v269 = vpop.permute.xlu0 %268
      %274 = vrot.lane.b32.xlu0 %v200, 18
      %v275 = vpop.permute.xlu0 %274
      %276 = vrot.lane.b32.xlu0 %v201, 18
      %v277 = vpop.permute.xlu0 %276
      %282 = vrot.lane.b32.xlu0 %v202, 24
      %v283 = vpop.permute.xlu0 %282
      %284 = vrot.lane.b32.xlu0 %v203, 24
      %v285 = vpop.permute.xlu0 %284
      %290 = vrot.lane.b32.xlu0 %v207, 30
      %v291 = vpop.permute.xlu0 %290
      %292 = vrot.lane.b32.xlu0 %v208, 30
      %v293 = vpop.permute.xlu0 %292
      %298 = vrot.lane.b32.xlu0 %v209, 36
      %v299 = vpop.permute.xlu0 %298
      %300 = vrot.lane.b32.xlu0 %v210, 36
      %v301 = vpop.permute.xlu0 %300
      %306 = vrot.lane.b32.xlu0 %v211, 42
      %v307 = vpop.permute.xlu0 %306
      %308 = vrot.lane.b32.xlu0 %v212, 42
      %v309 = vpop.permute.xlu0 %308
      %314 = vrot.lane.b32.xlu0 %v213, 48
      %v315 = vpop.permute.xlu0 %314
      %316 = vrot.lane.b32.xlu0 %v214, 48
      %v317 = vpop.permute.xlu0 %316
      %322 = vrot.lane.b32.xlu0 %v215, 54
      %v323 = vpop.permute.xlu0 %322
      %324 = vrot.lane.b32.xlu0 %v216, 54
      %v325 = vpop.permute.xlu0 %324
      %330 = vrot.lane.b32.xlu0 %v220, 60
      %v331 = vpop.permute.xlu0 %330
      %332 = vrot.lane.b32.xlu0 %v221, 60
      %v333 = vpop.permute.xlu0 %332
      %338 = vrot.lane.b32.xlu0 %v222, 66
      %v339 = vpop.permute.xlu0 %338
      %340 = vrot.lane.b32.xlu0 %v223, 66
      %v341 = vpop.permute.xlu0 %340
      %346 = vrot.lane.b32.xlu0 %v224, 72
      %v347 = vpop.permute.xlu0 %346
      %348 = vrot.lane.b32.xlu0 %v225, 72
      %v349 = vpop.permute.xlu0 %348
      %354 = vrot.lane.b32.xlu0 %v226, 78
      %v355 = vpop.permute.xlu0 %354
      %356 = vrot.lane.b32.xlu0 %v227, 78
      %v357 = vpop.permute.xlu0 %356
      %362 = vrot.lane.b32.xlu0 %v228, 84
      %v363 = vpop.permute.xlu0 %362
      %364 = vrot.lane.b32.xlu0 %v229, 84
      %v365 = vpop.permute.xlu0 %364
      %370 = vrot.lane.b32.xlu0 %v233, 90
      %v371 = vpop.permute.xlu0 %370
      %372 = vrot.lane.b32.xlu0 %v234, 90
      %v373 = vpop.permute.xlu0 %372
      %vm376 = vcmask 48128
      %v377 = vsel %vm376, %v194, %v259
      %v378 = vsel %vm376, %v195, %v261
      %vm379 = vcmask 97280
      %v380 = vsel %vm379, %v377, %v267
      %v381 = vsel %vm379, %v378, %v269
      %vm382 = vcmask 146432
      %v383 = vsel %vm382, %v380, %v275
      %v384 = vsel %vm382, %v381, %v277
      %vm385 = vcmask 195584
      %v386 = vsel %vm385, %v383, %v283
      %v387 = vsel %vm385, %v384, %v285
      %vm388 = vcmask 244736
      %v389 = vsel %vm388, %v386, %v291
      %v390 = vsel %vm388, %v387, %v293
      %vm391 = vcmask 293888
      %v392 = vsel %vm391, %v389, %v299
      %v393 = vsel %vm391, %v390, %v301
      %vm394 = vcmask 343040
      %v395 = vsel %vm394, %v392, %v307
      %v396 = vsel %vm394, %v393, %v309
      %vm397 = vcmask 392192
      %v398 = vsel %vm397, %v395, %v315
      %v399 = vsel %vm397, %v396, %v317
      %vm400 = vcmask 441344
      %v401 = vsel %vm400, %v398, %v323
      %v402 = vsel %vm400, %v399, %v325
      %vm403 = vcmask 490496
      %v404 = vsel %vm403, %v401, %v331
      %v405 = vsel %vm403, %v402, %v333
      %vm406 = vcmask 539648
      %v407 = vsel %vm406, %v404, %v339
      %v408 = vsel %vm406, %v405, %v341
      %vm409 = vcmask 588800
      %v410 = vsel %vm409, %v407, %v347
      %v411 = vsel %vm409, %v408, %v349
      %vm412 = vcmask 637952
      %v413 = vsel %vm412, %v410, %v355
      %v414 = vsel %vm412, %v411, %v357
      %vm415 = vcmask 687104
      %v416 = vsel %vm415, %v413, %v363
      %v417 = vsel %vm415, %v414, %v365
      %vm418 = vcmask 736256
      %v419 = vsel %vm418, %v416, %v371
      %v420 = vsel %vm418, %v417, %v373
      %423 = vrot.lane.b32.xlu0 %v237, 6
      %v424 = vpop.permute.xlu0 %423
      %425 = vrot.lane.b32.xlu0 %v238, 6
      %v426 = vpop.permute.xlu0 %425
      %431 = vrot.lane.b32.xlu0 %v239, 12
      %v432 = vpop.permute.xlu0 %431
      %433 = vrot.lane.b32.xlu0 %v240, 12
      %v434 = vpop.permute.xlu0 %433
      %439 = vrot.lane.b32.xlu0 %v241, 18
      %v440 = vpop.permute.xlu0 %439
      %441 = vrot.lane.b32.xlu0 %v242, 18
      %v442 = vpop.permute.xlu0 %441
      %447 = vrot.lane.b32.xlu0 %v246, 24
      %v448 = vpop.permute.xlu0 %447
      %449 = vrot.lane.b32.xlu0 %v247, 24
      %v450 = vpop.permute.xlu0 %449
      %455 = vrot.lane.b32.xlu0 %v248, 30
      %v456 = vpop.permute.xlu0 %455
      %457 = vrot.lane.b32.xlu0 %v249, 30
      %v458 = vpop.permute.xlu0 %457
      %463 = vrot.lane.b32.xlu0 %v250, 36
      %v464 = vpop.permute.xlu0 %463
      %465 = vrot.lane.b32.xlu0 %v251, 36
      %v466 = vpop.permute.xlu0 %465
      %471 = vrot.lane.b32.xlu0 %v252, 42
      %v472 = vpop.permute.xlu0 %471
      %473 = vrot.lane.b32.xlu0 %v253, 42
      %v474 = vpop.permute.xlu0 %473
      %479 = vrot.lane.b32.xlu0 %v254, 48
      %v480 = vpop.permute.xlu0 %479
      %481 = vrot.lane.b32.xlu0 %v255, 48
      %v482 = vpop.permute.xlu0 %481
      %v485 = vsel %vm376, %v235, %v424
      %v486 = vsel %vm376, %v236, %v426
      %v487 = vsel %vm379, %v485, %v432
      %v488 = vsel %vm379, %v486, %v434
      %v489 = vsel %vm382, %v487, %v440
      %v490 = vsel %vm382, %v488, %v442
      %v491 = vsel %vm385, %v489, %v448
      %v492 = vsel %vm385, %v490, %v450
      %v493 = vsel %vm388, %v491, %v456
      %v494 = vsel %vm388, %v492, %v458
      %v495 = vsel %vm391, %v493, %v464
      %v496 = vsel %vm391, %v494, %v466
      %v497 = vsel %vm394, %v495, %v472
      %v498 = vsel %vm394, %v496, %v474
      %v499 = vsel %vm397, %v497, %v480
      %v500 = vsel %vm397, %v498, %v482
      %503 = vrot.lane.b32.xlu0 %v499, 96
      %v504 = vpop.permute.xlu0 %503
      %505 = vrot.lane.b32.xlu0 %v500, 96
      %v506 = vpop.permute.xlu0 %505
      %vm509 = vcmask 785408
      %v510 = vsel %vm509, %v419, %v504
      %v511 = vsel %vm509, %v420, %v506
      %v512 = vld [vmem:[%s1] sm:$0xff]
      %v513 = vld [vmem:[%s1 + $0x8] sm:$0xff]
      %v514 = vld [vmem:[%s1 + $0x10] sm:$0xff]
      %v515 = vld [vmem:[%s1 + $0x18] sm:$0xff]
      %v516 = vld [vmem:[%s1 + $0x20] sm:$0xff]
      %v517 = vld [vmem:[%s1 + $0x28] sm:$0xff]
      %v518 = vld [vmem:[%s1 + $0x30] sm:$0xff]
      %v519 = vld [vmem:[%s1 + $0x38] sm:$0xff]
      %v520 = vld [vmem:[%s1 + $0x40] sm:$0xff]
      %v521 = vld [vmem:[%s1 + $0x48] sm:$0xff]
      %v522 = vld [vmem:[%s1 + $0x50] sm:$0xff]
      %v523 = vld [vmem:[%s1 + $0x58] sm:$0xff]
      %v524 = vld [vmem:[%s1 + $0x60] sm:$0xff]
      %v525 = vld [vmem:[%s1 + $0x68] sm:$0xff]
      %v526 = vld [vmem:[%s1 + $0x70] sm:$0xff]
      %v527 = vld [vmem:[%s1 + $0x78] sm:$0xff]
      %v528 = vld [vmem:[%s1 + $0x80] sm:$0xff]
      %v529 = vld [vmem:[%s1 + $0x88] sm:$0xff]
      %v530 = vld [vmem:[%s1 + $0x90] sm:$0x3f]
      %vm531 = vcmask 179200
      %v532 = vsel %vm531, %v504, 0
      %vm534 = vcmask 1045504
      %v536 = vsel %vm534, %v530, 0
      %538 = vmatprep.subr.mxu0 0.0
      %539 = vmatpush1.msra.mxu0 %v527
      %540 = vmatprep.subr.mxu0 0.0
      %541 = vmatpush1.msra.mxu0 %v526
      %542 = vmatprep.subr.mxu0 0.0
      %543 = vmatpush1.msra.mxu0 %v525
      %544 = vmatprep.subr.mxu0 0.0
      %545 = vmatpush1.msra.mxu0 %v524
      %546 = vmatprep.subr.mxu0 0.0
      %547 = vmatpush1.msra.mxu0 %v523
      %548 = vmatprep.subr.mxu0 0.0
      %549 = vmatpush1.msra.mxu0 %v522
      %550 = vmatprep.subr.mxu0 0.0
      %551 = vmatpush1.msra.mxu0 %v521
      %552 = vmatprep.subr.mxu0 0.0
      %553 = vmatpush1.msra.mxu0 %v520
      %554 = vmatprep.subr.mxu0 0.0
      %555 = vmatpush1.msra.mxu0 %v519
      %556 = vmatprep.subr.mxu0 0.0
      %557 = vmatpush1.msra.mxu0 %v518
      %558 = vmatprep.subr.mxu0 0.0
      %559 = vmatpush1.msra.mxu0 %v517
      %560 = vmatprep.subr.mxu0 0.0
      %561 = vmatpush1.msra.mxu0 %v516
      %562 = vmatprep.subr.mxu0 0.0
      %563 = vmatpush1.msra.mxu0 %v515
      %564 = vmatprep.subr.mxu0 0.0
      %565 = vmatpush1.msra.mxu0 %v514
      %566 = vmatprep.subr.mxu0 0.0
      %567 = vmatpush1.msra.mxu0 %v513
      %568 = vmatprep.subr.mxu0 0.0
      %569 = vmatpush1.msra.mxu0 %v512
      %570 = vmatprep.subr.mxu0 0.0
      %571 = vmatpush2.msra.mxu0 0.0
      %572 = vmatprep.subr.mxu0 0.0
      %573 = vmatpush2.msra.mxu0 0.0
      %574 = vmatprep.subr.mxu0 0.0
      %575 = vmatpush2.msra.mxu0 0.0
      %576 = vmatprep.subr.mxu0 0.0
      %577 = vmatpush2.msra.mxu0 0.0
      %578 = vmatprep.subr.mxu0 0.0
      %579 = vmatpush2.msra.mxu0 0.0
      %580 = vmatprep.subr.mxu0 0.0
      %581 = vmatpush2.msra.mxu0 0.0
      %582 = vmatprep.subr.mxu0 0.0
      %583 = vmatpush2.msra.mxu0 0.0
      %584 = vmatprep.subr.mxu0 0.0
      %585 = vmatpush2.msra.mxu0 0.0
      %586 = vmatprep.subr.mxu0 0.0
      %587 = vmatpush2.msra.mxu0 0.0
      %588 = vmatprep.subr.mxu0 0.0
      %589 = vmatpush2.msra.mxu0 0.0
      %590 = vmatprep.subr.mxu0 0.0
      %591 = vmatpush2.msra.mxu0 0.0
      %592 = vmatprep.subr.mxu0 0.0
      %593 = vmatpush2.msra.mxu0 0.0
      %594 = vmatprep.subr.mxu0 0.0
      %595 = vmatpush2.msra.mxu0 0.0
      %596 = vmatprep.subr.mxu0 0.0
      %597 = vmatpush2.msra.mxu0 %v536
      %598 = vmatprep.subr.mxu0 0.0
      %599 = vmatpush2.msra.mxu0 %v529
      %600 = vmatprep.subr.mxu0 0.0
      %601 = vmatpush2.msra.mxu0 %v528
      %602 = vmatprep.mubr.f32.mxu0 %v532
      %603 = vmatmul.mubr.f32.gmra.mxu0 %v510
      %v604 = vpop.f32.mrf.mxu0
      %v605 = vadd.f32 0.0, %v604
      %v606 = vpop.f32.mrf.mxu0
      %607 = vdwg.mxu0
      %v608 = vsel %vm531, %v506, 0
      %610 = vmatprep.subr.mxu0 0.0
      %611 = vmatpush1.msra.mxu0 %v527
      %612 = vmatprep.subr.mxu0 0.0
      %613 = vmatpush1.msra.mxu0 %v526
      %614 = vmatprep.subr.mxu0 0.0
      %615 = vmatpush1.msra.mxu0 %v525
      %616 = vmatprep.subr.mxu0 0.0
      %617 = vmatpush1.msra.mxu0 %v524
      %618 = vmatprep.subr.mxu0 0.0
      %619 = vmatpush1.msra.mxu0 %v523
      %620 = vmatprep.subr.mxu0 0.0
      %621 = vmatpush1.msra.mxu0 %v522
      %622 = vmatprep.subr.mxu0 0.0
      %623 = vmatpush1.msra.mxu0 %v521
      %624 = vmatprep.subr.mxu0 0.0
      %625 = vmatpush1.msra.mxu0 %v520
      %626 = vmatprep.subr.mxu0 0.0
      %627 = vmatpush1.msra.mxu0 %v519
      %628 = vmatprep.subr.mxu0 0.0
      %629 = vmatpush1.msra.mxu0 %v518
      %630 = vmatprep.subr.mxu0 0.0
      %631 = vmatpush1.msra.mxu0 %v517
      %632 = vmatprep.subr.mxu0 0.0
      %633 = vmatpush1.msra.mxu0 %v516
      %634 = vmatprep.subr.mxu0 0.0
      %635 = vmatpush1.msra.mxu0 %v515
      %636 = vmatprep.subr.mxu0 0.0
      %637 = vmatpush1.msra.mxu0 %v514
      %638 = vmatprep.subr.mxu0 0.0
      %639 = vmatpush1.msra.mxu0 %v513
      %640 = vmatprep.subr.mxu0 0.0
      %641 = vmatpush1.msra.mxu0 %v512
      %642 = vmatprep.subr.mxu0 0.0
      %643 = vmatpush2.msra.mxu0 0.0
      %644 = vmatprep.subr.mxu0 0.0
      %645 = vmatpush2.msra.mxu0 0.0
      %646 = vmatprep.subr.mxu0 0.0
      %647 = vmatpush2.msra.mxu0 0.0
      %648 = vmatprep.subr.mxu0 0.0
      %649 = vmatpush2.msra.mxu0 0.0
      %650 = vmatprep.subr.mxu0 0.0
      %651 = vmatpush2.msra.mxu0 0.0
      %652 = vmatprep.subr.mxu0 0.0
      %653 = vmatpush2.msra.mxu0 0.0
      %654 = vmatprep.subr.mxu0 0.0
      %655 = vmatpush2.msra.mxu0 0.0
      %656 = vmatprep.subr.mxu0 0.0
      %657 = vmatpush2.msra.mxu0 0.0
      %658 = vmatprep.subr.mxu0 0.0
      %659 = vmatpush2.msra.mxu0 0.0
      %660 = vmatprep.subr.mxu0 0.0
      %661 = vmatpush2.msra.mxu0 0.0
      %662 = vmatprep.subr.mxu0 0.0
      %663 = vmatpush2.msra.mxu0 0.0
      %664 = vmatprep.subr.mxu0 0.0
      %665 = vmatpush2.msra.mxu0 0.0
      %666 = vmatprep.subr.mxu0 0.0
      %667 = vmatpush2.msra.mxu0 0.0
      %668 = vmatprep.subr.mxu0 0.0
      %669 = vmatpush2.msra.mxu0 %v536
      %670 = vmatprep.subr.mxu0 0.0
      %671 = vmatpush2.msra.mxu0 %v529
      %672 = vmatprep.subr.mxu0 0.0
      %673 = vmatpush2.msra.mxu0 %v528
      %674 = vmatprep.mubr.f32.mxu0 %v608
      %675 = vmatmul.mubr.f32.gmra.mxu0 %v511
      %v676 = vpop.f32.mrf.mxu0
      %v677 = vadd.f32 0.0, %v676
      %v678 = vpop.f32.mrf.mxu0
      %679 = vdwg.mxu0
      %v680 = vmax.f32 %v605, %v677
      %vm681 = vcmask 123904
      %v682 = vsel %vm681, %v680, -inf
      %v683 = vrot.slane %v682, 4
      %v684 = vmax.f32 %v682, %v683
      %v685 = vrot.slane %v684, 2
      %v686 = vmax.f32 %v684, %v685
      %v687 = vrot.slane %v686, 1
      %v688 = vmax.f32 %v686, %v687
      %vm689 = vcmask 125954
      %v690 = vsel %vm689, %v680, -inf
      %v691 = vrot.slane %v690, 4
      %v692 = vmax.f32 %v690, %v691
      %v693 = vrot.slane %v692, 2
      %v694 = vmax.f32 %v692, %v693
      %v695 = vrot.slane %v694, 1
      %v696 = vmax.f32 %v694, %v695
      %vm697 = vcmask 128004
      %v698 = vsel %vm697, %v680, -inf
      %v699 = vrot.slane %v698, 4
      %v700 = vmax.f32 %v698, %v699
      %v701 = vrot.slane %v700, 2
      %v702 = vmax.f32 %v700, %v701
      %v703 = vrot.slane %v702, 1
      %v704 = vmax.f32 %v702, %v703
      %vm705 = vcmask 130054
      %v706 = vsel %vm705, %v680, -inf
      %v707 = vrot.slane %v706, 4
      %v708 = vmax.f32 %v706, %v707
      %v709 = vrot.slane %v708, 2
      %v710 = vmax.f32 %v708, %v709
      %v711 = vrot.slane %v710, 1
      %v712 = vmax.f32 %v710, %v711
      %vm713 = vcmask 1040384
      %v714 = vsel %vm713, %v688, %v696
      %vm715 = vcmask 1041408
      %v716 = vsel %vm715, %v714, %v704
      %vm717 = vcmask 1042432
      %v718 = vsel %vm717, %v716, %v712
      %v719 = vld [vmem:[%s2] sm:$0x1]
      %v721 = vlaneseq
      %v722 = vshrl.u32 %v721, 7
      %v723 = vsub.s32 0, %v722
      %v724 = vrot.slane %v719, %v723
      %v726 = vadd.f32 %v718, %v724
      %v727 = vmax.f32 %v726, 0.0
      %vm728 = vcmask 125952
      %729 = vst.msk [vmem:[%s190] sm:$0xf] %vm728, %v727
      %p730 = scmp.lt.s32.totalorder %s18, 1
      %s731 = scalar_select %p730, %s18, 1
      %p732 = scmp.lt.s32.totalorder %s19, 3
      %s733 = scalar_select %p732, %s19, 3
      %s734 = smul.addr %s731, 4
      %s735 = sadd.s32 %s733, %s734
      %s736 = smul.addr %s735, 4
      %s737 = scalar_lea.vmem %s3, %s736
      // Predicated region
      $region33: #{lenet_forward.4} parent=31 // pred_check
        %p738 = pneg %p114
      $region34: #{lenet_forward.4} parent=31 // pred_check_branch
        %740 = sbr.rel (%p738) target = $region36
      $region35: #{lenet_forward.4} parent=31 // pred_region
        _
      $region36: #{lenet_forward.4} parent=31 // pred_fallthru
        _
    $region32: #{lenet_forward.4} parent=5 // pred_fallthru
      _
    %p741 = scmp.le.s32.totalorder 2, %s9
    // Predicated region
    $region37: #{lenet_forward.4} parent=5 // pred_check
      %p742 = pneg %p741
    $region38: #{lenet_forward.4} parent=5 // pred_check_branch
      %744 = sbr.rel (%p742) target = $region40
    $region39: #{lenet_forward.4} parent=5 // pred_region
      %s745 = ssub.s32 %s9, 2
      // Predicated region
      $region41: #{lenet_forward.4} parent=39 // pred_check
        %p746 = pneg %p120
      $region42: #{lenet_forward.4} parent=39 // pred_check_branch
        %748 = sbr.rel (%p746) target = $region44
      $region43: #{lenet_forward.4} parent=39 // pred_region
        %p749 = scmp.lt.s32.totalorder %s20, 1
        %s750 = scalar_select %p749, %s20, 1
        %p751 = scmp.lt.s32.totalorder %s21, 3
        %s752 = scalar_select %p751, %s21, 3
        %s753 = smul.addr %s750, 4
        %s754 = sadd.s32 %s752, %s753
        %s755 = smul.addr %s754, 4
        %s756 = scalar_lea.vmem %s3, %s755
      $region44: #{lenet_forward.4} parent=39 // pred_fallthru
        _
    $region40: #{lenet_forward.4} parent=5 // pred_fallthru
      _
  $region6: #{lenet_forward.4} parent=0 // loop_footer
    %s13 = sadd.s32 1, %s9
  $region7: #{lenet_forward.4} parent=0 // loop_footer_branch
    %8 = sbr.rel target = $region3
  $region8: #{lenet_forward.4} parent=0 // loop_exit
    _

// kernel: lenet_forward.5
$region0: #{lenet_forward.5}
  #allocation0 [shape = 'u32[]', space=smem, size = 0x4, offset = 0x4, fixed_abs, tag = 'smem constant byte address 0x4 - core index']
  #allocation1 [shape = 'u32[144,128]{1,0:T(1,128)}', space=vmem, size = 0x12000, scoped, tag = 'internal scratch']
  %s0 = inlined_call_operand.vmem [shape: f32[2,256], index: 0, kind: input, shape index: {}]
  %s1 = inlined_call_operand.vmem [shape: f32[256,120], index: 1, kind: input, shape index: {}]
  %s2 = inlined_call_operand.vmem [shape: f32[1,120], index: 2, kind: input, shape index: {}]
  %s3 = inlined_call_operand.vmem [shape: f32[120,84], index: 3, kind: input, shape index: {}]
  %s4 = inlined_call_operand.vmem [shape: f32[1,84], index: 4, kind: input, shape index: {}]
  %s5 = inlined_call_operand.vmem [shape: f32[84,10], index: 5, kind: input, shape index: {}]
  %s6 = inlined_call_operand.vmem [shape: f32[1,10], index: 6, kind: input, shape index: {}]
  %s7 = inlined_call_operand.hbm [shape: f32[2,10], index: 7, kind: output, shape index: {}]
  %s8 = sld [smem:[#allocation0]]
  $region38: #{lenet_forward.5} parent=0
    _
  %s10 = ssub.s32 1, %s8
  %s11 = scalar_select 0, %s10, %s8
  $region1: #{lenet_forward.5} parent=0
    #allocation2 [shape = 'u8[1024]{0}', space=vmem, size = 0x400, scoped, tag = 'output window, operand 0, single buffered']
    #allocation3 [shape = 's32[1]{0}', space=sflag, size = 0x4, scoped, tag = 'scoped memory for lenet_forward.5']
    %12 = vsyncpa [#allocation3], 0
    // Predicated region
    $region2: #{lenet_forward.5} parent=1 // pred_check
      _
    $region3: #{lenet_forward.5} parent=1 // pred_check_branch
      %14 = sbr.rel (0) target = $region5
    $region4: #{lenet_forward.5} parent=1 // pred_region
      _
    $region5: #{lenet_forward.5} parent=1 // pred_fallthru
      _
    // Predicated region
    $region6: #{lenet_forward.5} parent=1 // pred_check
      _
    $region7: #{lenet_forward.5} parent=1 // pred_check_branch
      %16 = sbr.rel (0) target = $region9
    $region8: #{lenet_forward.5} parent=1 // pred_region
      _
    $region9: #{lenet_forward.5} parent=1 // pred_fallthru
      _
    // Predicated region
    $region10: #{lenet_forward.5} parent=1 // pred_check
      _
    $region11: #{lenet_forward.5} parent=1 // pred_check_branch
      %18 = sbr.rel (0) target = $region13
    $region12: #{lenet_forward.5} parent=1 // pred_region
      _
    $region13: #{lenet_forward.5} parent=1 // pred_fallthru
      _
    // Predicated region
    $region14: #{lenet_forward.5} parent=1 // pred_check
      _
    $region15: #{lenet_forward.5} parent=1 // pred_check_branch
      %20 = sbr.rel (0) target = $region17
    $region16: #{lenet_forward.5} parent=1 // pred_region
      _
    $region17: #{lenet_forward.5} parent=1 // pred_fallthru
      _
    // Predicated region
    $region18: #{lenet_forward.5} parent=1 // pred_check
      _
    $region19: #{lenet_forward.5} parent=1 // pred_check_branch
      %22 = sbr.rel (0) target = $region21
    $region20: #{lenet_forward.5} parent=1 // pred_region
      _
    $region21: #{lenet_forward.5} parent=1 // pred_fallthru
      _
    // Predicated region
    $region22: #{lenet_forward.5} parent=1 // pred_check
      _
    $region23: #{lenet_forward.5} parent=1 // pred_check_branch
      %24 = sbr.rel (0) target = $region25
    $region24: #{lenet_forward.5} parent=1 // pred_region
      _
    $region25: #{lenet_forward.5} parent=1 // pred_fallthru
      _
    // Predicated region
    $region26: #{lenet_forward.5} parent=1 // pred_check
      _
    $region27: #{lenet_forward.5} parent=1 // pred_check_branch
      %26 = sbr.rel (0) target = $region29
    $region28: #{lenet_forward.5} parent=1 // pred_region
      _
    $region29: #{lenet_forward.5} parent=1 // pred_fallthru
      _
    %v27 = vld [vmem:[%s0] sm:$0xf]
    %v28 = vld [vmem:[%s1] sm:$0xff]
    %v29 = vld [vmem:[%s1 + $0x8] sm:$0xff]
    %v30 = vld [vmem:[%s1 + $0x10] sm:$0xff]
    %v31 = vld [vmem:[%s1 + $0x18] sm:$0xff]
    %v32 = vld [vmem:[%s1 + $0x20] sm:$0xff]
    %v33 = vld [vmem:[%s1 + $0x28] sm:$0xff]
    %v34 = vld [vmem:[%s1 + $0x30] sm:$0xff]
    %v35 = vld [vmem:[%s1 + $0x38] sm:$0xff]
    %v36 = vld [vmem:[%s1 + $0x40] sm:$0xff]
    %v37 = vld [vmem:[%s1 + $0x48] sm:$0xff]
    %v38 = vld [vmem:[%s1 + $0x50] sm:$0xff]
    %v39 = vld [vmem:[%s1 + $0x58] sm:$0xff]
    %v40 = vld [vmem:[%s1 + $0x60] sm:$0xff]
    %v41 = vld [vmem:[%s1 + $0x68] sm:$0xff]
    %v42 = vld [vmem:[%s1 + $0x70] sm:$0xff]
    %v43 = vld [vmem:[%s1 + $0x78] sm:$0xff]
    %v44 = vld [vmem:[%s1 + $0x80] sm:$0xff]
    %v45 = vld [vmem:[%s1 + $0x88] sm:$0xff]
    %v46 = vld [vmem:[%s1 + $0x90] sm:$0xff]
    %v47 = vld [vmem:[%s1 + $0x98] sm:$0xff]
    %v48 = vld [vmem:[%s1 + $0xa0] sm:$0xff]
    %v49 = vld [vmem:[%s1 + $0xa8] sm:$0xff]
    %v50 = vld [vmem:[%s1 + $0xb0] sm:$0xff]
    %v51 = vld [vmem:[%s1 + $0xb8] sm:$0xff]
    %v52 = vld [vmem:[%s1 + $0xc0] sm:$0xff]
    %v53 = vld [vmem:[%s1 + $0xc8] sm:$0xff]
    %v54 = vld [vmem:[%s1 + $0xd0] sm:$0xff]
    %v55 = vld [vmem:[%s1 + $0xd8] sm:$0xff]
    %v56 = vld [vmem:[%s1 + $0xe0] sm:$0xff]
    %v57 = vld [vmem:[%s1 + $0xe8] sm:$0xff]
    %v58 = vld [vmem:[%s1 + $0xf0] sm:$0xff]
    %v59 = vld [vmem:[%s1 + $0xf8] sm:$0xff]
    %v60 = vld [vmem:[%s2] sm:$0x1]
    %v62 = vlaneseq
    %v63 = vshrl.u32 %v62, 7
    %v64 = vsub.s32 0, %v63
    %v65 = vrot.slane %v60, %v64
    %v69 = vunpack.c.l.s4 1983009808
    %v70 = vunpack.c.0.s8 %v69
    %v71 = vlaneseq
    %v72 = vshrl.u32 %v71, 7
    %v73 = vsub.s32 %v70, %v72
    %v74 = vrot.slane %v27, %v73
    %v75 = vcombine.high %v74, %v74
    %78 = vmatprep.subr.mxu0 0.0
    %79 = vmatpush1.msra.mxu0 %v43
    %80 = vmatprep.subr.mxu0 0.0
    %81 = vmatpush1.msra.mxu0 %v42
    %82 = vmatprep.subr.mxu0 0.0
    %83 = vmatpush1.msra.mxu0 %v41
    %84 = vmatprep.subr.mxu0 0.0
    %85 = vmatpush1.msra.mxu0 %v40
    %86 = vmatprep.subr.mxu0 0.0
    %87 = vmatpush1.msra.mxu0 %v39
    %88 = vmatprep.subr.mxu0 0.0
    %89 = vmatpush1.msra.mxu0 %v38
    %90 = vmatprep.subr.mxu0 0.0
    %91 = vmatpush1.msra.mxu0 %v37
    %92 = vmatprep.subr.mxu0 0.0
    %93 = vmatpush1.msra.mxu0 %v36
    %94 = vmatprep.subr.mxu0 0.0
    %95 = vmatpush1.msra.mxu0 %v35
    %96 = vmatprep.subr.mxu0 0.0
    %97 = vmatpush1.msra.mxu0 %v34
    %98 = vmatprep.subr.mxu0 0.0
    %99 = vmatpush1.msra.mxu0 %v33
    %100 = vmatprep.subr.mxu0 0.0
    %101 = vmatpush1.msra.mxu0 %v32
    %102 = vmatprep.subr.mxu0 0.0
    %103 = vmatpush1.msra.mxu0 %v31
    %104 = vmatprep.subr.mxu0 0.0
    %105 = vmatpush1.msra.mxu0 %v30
    %106 = vmatprep.subr.mxu0 0.0
    %107 = vmatpush1.msra.mxu0 %v29
    %108 = vmatprep.subr.mxu0 0.0
    %109 = vmatpush1.msra.mxu0 %v28
    %110 = vmatprep.subr.mxu0 0.0
    %111 = vmatpush2.msra.mxu0 %v59
    %112 = vmatprep.subr.mxu0 0.0
    %113 = vmatpush2.msra.mxu0 %v58
    %114 = vmatprep.subr.mxu0 0.0
    %115 = vmatpush2.msra.mxu0 %v57
    %116 = vmatprep.subr.mxu0 0.0
    %117 = vmatpush2.msra.mxu0 %v56
    %118 = vmatprep.subr.mxu0 0.0
    %119 = vmatpush2.msra.mxu0 %v55
    %120 = vmatprep.subr.mxu0 0.0
    %121 = vmatpush2.msra.mxu0 %v54
    %122 = vmatprep.subr.mxu0 0.0
    %123 = vmatpush2.msra.mxu0 %v53
    %124 = vmatprep.subr.mxu0 0.0
    %125 = vmatpush2.msra.mxu0 %v52
    %126 = vmatprep.subr.mxu0 0.0
    %127 = vmatpush2.msra.mxu0 %v51
    %128 = vmatprep.subr.mxu0 0.0
    %129 = vmatpush2.msra.mxu0 %v50
    %130 = vmatprep.subr.mxu0 0.0
    %131 = vmatpush2.msra.mxu0 %v49
    %132 = vmatprep.subr.mxu0 0.0
    %133 = vmatpush2.msra.mxu0 %v48
    %134 = vmatprep.subr.mxu0 0.0
    %135 = vmatpush2.msra.mxu0 %v47
    %136 = vmatprep.subr.mxu0 0.0
    %137 = vmatpush2.msra.mxu0 %v46
    %138 = vmatprep.subr.mxu0 0.0
    %139 = vmatpush2.msra.mxu0 %v45
    %140 = vmatprep.subr.mxu0 0.0
    %141 = vmatpush2.msra.mxu0 %v44
    %142 = vmatprep.mubr.f32.mxu0 %v75
    %143 = vmatmul.mubr.f32.gmra.mxu0 %v74
    %v144 = vpop.f32.mrf.mxu0
    %v145 = vadd.f32 %v65, %v144
    %v146 = vpop.f32.mrf.mxu0
    %147 = vdwg.mxu0
    %v148 = vmax.f32 %v145, 0.0
    %v149 = vld [vmem:[%s3] sm:$0xff]
    %v150 = vld [vmem:[%s3 + $0x8] sm:$0xff]
    %v151 = vld [vmem:[%s3 + $0x10] sm:$0xff]
    %v152 = vld [vmem:[%s3 + $0x18] sm:$0xff]
    %v153 = vld [vmem:[%s3 + $0x20] sm:$0xff]
    %v154 = vld [vmem:[%s3 + $0x28] sm:$0xff]
    %v155 = vld [vmem:[%s3 + $0x30] sm:$0xff]
    %v156 = vld [vmem:[%s3 + $0x38] sm:$0xff]
    %v157 = vld [vmem:[%s3 + $0x40] sm:$0xff]
    %v158 = vld [vmem:[%s3 + $0x48] sm:$0xff]
    %v159 = vld [vmem:[%s3 + $0x50] sm:$0xff]
    %v160 = vld [vmem:[%s3 + $0x58] sm:$0xff]
    %v161 = vld [vmem:[%s3 + $0x60] sm:$0xff]
    %v162 = vld [vmem:[%s3 + $0x68] sm:$0xff]
    %v163 = vld [vmem:[%s3 + $0x70] sm:$0xff]
    %v164 = vld [vmem:[%s4] sm:$0x1]
    %v166 = vlaneseq
    %v167 = vshrl.u32 %v166, 7
    %v168 = vsub.s32 0, %v167
    %v169 = vrot.slane %v164, %v168
    %vm171 = vcmask 982016
    %v173 = vsel %vm171, %v148, 0
    %175 = vmatprep.subr.mxu0 0.0
    %176 = vmatpush1.msra.mxu0 0.0
    %177 = vmatprep.subr.mxu0 0.0
    %178 = vmatpush1.msra.mxu0 %v163
    %179 = vmatprep.subr.mxu0 0.0
    %180 = vmatpush1.msra.mxu0 %v162
    %181 = vmatprep.subr.mxu0 0.0
    %182 = vmatpush1.msra.mxu0 %v161
    %183 = vmatprep.subr.mxu0 0.0
    %184 = vmatpush1.msra.mxu0 %v160
    %185 = vmatprep.subr.mxu0 0.0
    %186 = vmatpush1.msra.mxu0 %v159
    %187 = vmatprep.subr.mxu0 0.0
    %188 = vmatpush1.msra.mxu0 %v158
    %189 = vmatprep.subr.mxu0 0.0
    %190 = vmatpush1.msra.mxu0 %v157
    %191 = vmatprep.subr.mxu0 0.0
    %192 = vmatpush1.msra.mxu0 %v156
    %193 = vmatprep.subr.mxu0 0.0
    %194 = vmatpush1.msra.mxu0 %v155
    %195 = vmatprep.subr.mxu0 0.0
    %196 = vmatpush1.msra.mxu0 %v154
    %197 = vmatprep.subr.mxu0 0.0
    %198 = vmatpush1.msra.mxu0 %v153
    %199 = vmatprep.subr.mxu0 0.0
    %200 = vmatpush1.msra.mxu0 %v152
    %201 = vmatprep.subr.mxu0 0.0
    %202 = vmatpush1.msra.mxu0 %v151
    %203 = vmatprep.subr.mxu0 0.0
    %204 = vmatpush1.msra.mxu0 %v150
    %205 = vmatprep.subr.mxu0 0.0
    %206 = vmatpush1.msra.mxu0 %v149
    %207 = vmatprep.subr.mxu0 0.0
    %208 = vmatpush2.msra.mxu0 0.0
    %209 = vmatprep.subr.mxu0 0.0
    %210 = vmatpush2.msra.mxu0 0.0
    %211 = vmatprep.subr.mxu0 0.0
    %212 = vmatpush2.msra.mxu0 0.0
    %213 = vmatprep.subr.mxu0 0.0
    %214 = vmatpush2.msra.mxu0 0.0
    %215 = vmatprep.subr.mxu0 0.0
    %216 = vmatpush2.msra.mxu0 0.0
    %217 = vmatprep.subr.mxu0 0.0
    %218 = vmatpush2.msra.mxu0 0.0
    %219 = vmatprep.subr.mxu0 0.0
    %220 = vmatpush2.msra.mxu0 0.0
    %221 = vmatprep.subr.mxu0 0.0
    %222 = vmatpush2.msra.mxu0 0.0
    %223 = vmatprep.subr.mxu0 0.0
    %224 = vmatpush2.msra.mxu0 0.0
    %225 = vmatprep.subr.mxu0 0.0
    %226 = vmatpush2.msra.mxu0 0.0
    %227 = vmatprep.subr.mxu0 0.0
    %228 = vmatpush2.msra.mxu0 0.0
    %229 = vmatprep.subr.mxu0 0.0
    %230 = vmatpush2.msra.mxu0 0.0
    %231 = vmatprep.subr.mxu0 0.0
    %232 = vmatpush2.msra.mxu0 0.0
    %233 = vmatprep.subr.mxu0 0.0
    %234 = vmatpush2.msra.mxu0 0.0
    %235 = vmatprep.subr.mxu0 0.0
    %236 = vmatpush2.msra.mxu0 0.0
    %237 = vmatprep.subr.mxu0 0.0
    %238 = vmatpush2.msra.mxu0 0.0
    %239 = vmatprep.mubr.f32.mxu0 0.0
    %240 = vmatmul.mubr.f32.gmra.mxu0 %v173
    %v241 = vpop.f32.mrf.mxu0
    %v242 = vadd.f32 %v169, %v241
    %v243 = vpop.f32.mrf.mxu0
    %244 = vdwg.mxu0
    %v245 = vmax.f32 %v242, 0.0
    %v246 = vld [vmem:[%s5] sm:$0xff]
    %v247 = vld [vmem:[%s5 + $0x8] sm:$0xff]
    %v248 = vld [vmem:[%s5 + $0x10] sm:$0xff]
    %v249 = vld [vmem:[%s5 + $0x18] sm:$0xff]
    %v250 = vld [vmem:[%s5 + $0x20] sm:$0xff]
    %v251 = vld [vmem:[%s5 + $0x28] sm:$0xff]
    %v252 = vld [vmem:[%s5 + $0x30] sm:$0xff]
    %v253 = vld [vmem:[%s5 + $0x38] sm:$0xff]
    %v254 = vld [vmem:[%s5 + $0x40] sm:$0xff]
    %v255 = vld [vmem:[%s5 + $0x48] sm:$0xff]
    %v256 = vld [vmem:[%s5 + $0x50] sm:$0xf]
    %v257 = vld [vmem:[%s6] sm:$0x1]
    %v259 = vlaneseq
    %v260 = vshrl.u32 %v259, 7
    %v261 = vsub.s32 0, %v260
    %v262 = vrot.slane %v257, %v261
    %vm264 = vcmask 687104
    %v266 = vsel %vm264, %v245, 0
    %vm268 = vcmask 1043456
    %v270 = vsel %vm268, %v256, 0
    %272 = vmatprep.subr.mxu0 0.0
    %273 = vmatpush1.msra.mxu0 0.0
    %274 = vmatprep.subr.mxu0 0.0
    %275 = vmatpush1.msra.mxu0 0.0
    %276 = vmatprep.subr.mxu0 0.0
    %277 = vmatpush1.msra.mxu0 0.0
    %278 = vmatprep.subr.mxu0 0.0
    %279 = vmatpush1.msra.mxu0 0.0
    %280 = vmatprep.subr.mxu0 0.0
    %281 = vmatpush1.msra.mxu0 0.0
    %282 = vmatprep.subr.mxu0 0.0
    %283 = vmatpush1.msra.mxu0 %v270
    %284 = vmatprep.subr.mxu0 0.0
    %285 = vmatpush1.msra.mxu0 %v255
    %286 = vmatprep.subr.mxu0 0.0
    %287 = vmatpush1.msra.mxu0 %v254
    %288 = vmatprep.subr.mxu0 0.0
    %289 = vmatpush1.msra.mxu0 %v253
    %290 = vmatprep.subr.mxu0 0.0
    %291 = vmatpush1.msra.mxu0 %v252
    %292 = vmatprep.subr.mxu0 0.0
    %293 = vmatpush1.msra.mxu0 %v251
    %294 = vmatprep.subr.mxu0 0.0
    %295 = vmatpush1.msra.mxu0 %v250
    %296 = vmatprep.subr.mxu0 0.0
    %297 = vmatpush1.msra.mxu0 %v249
    %298 = vmatprep.subr.mxu0 0.0
    %299 = vmatpush1.msra.mxu0 %v248
    %300 = vmatprep.subr.mxu0 0.0
    %301 = vmatpush1.msra.mxu0 %v247
    %302 = vmatprep.subr.mxu0 0.0
    %303 = vmatpush1.msra.mxu0 %v246
    %304 = vmatprep.subr.mxu0 0.0
    %305 = vmatpush2.msra.mxu0 0.0
    %306 = vmatprep.subr.mxu0 0.0
    %307 = vmatpush2.msra.mxu0 0.0
    %308 = vmatprep.subr.mxu0 0.0
    %309 = vmatpush2.msra.mxu0 0.0
    %310 = vmatprep.subr.mxu0 0.0
    %311 = vmatpush2.msra.mxu0 0.0
    %312 = vmatprep.subr.mxu0 0.0
    %313 = vmatpush2.msra.mxu0 0.0
    %314 = vmatprep.subr.mxu0 0.0
    %315 = vmatpush2.msra.mxu0 0.0
    %316 = vmatprep.subr.mxu0 0.0
    %317 = vmatpush2.msra.mxu0 0.0
    %318 = vmatprep.subr.mxu0 0.0
    %319 = vmatpush2.msra.mxu0 0.0
    %320 = vmatprep.subr.mxu0 0.0
    %321 = vmatpush2.msra.mxu0 0.0
    %322 = vmatprep.subr.mxu0 0.0
    %323 = vmatpush2.msra.mxu0 0.0
    %324 = vmatprep.subr.mxu0 0.0
    %325 = vmatpush2.msra.mxu0 0.0
    %326 = vmatprep.subr.mxu0 0.0
    %327 = vmatpush2.msra.mxu0 0.0
    %328 = vmatprep.subr.mxu0 0.0
    %329 = vmatpush2.msra.mxu0 0.0
    %330 = vmatprep.subr.mxu0 0.0
    %331 = vmatpush2.msra.mxu0 0.0
    %332 = vmatprep.subr.mxu0 0.0
    %333 = vmatpush2.msra.mxu0 0.0
    %334 = vmatprep.subr.mxu0 0.0
    %335 = vmatpush2.msra.mxu0 0.0
    %336 = vmatprep.mubr.f32.mxu0 0.0
    %337 = vmatmul.mubr.f32.gmra.mxu0 %v266
    %v338 = vpop.f32.mrf.mxu0
    %v339 = vadd.f32 %v262, %v338
    %v340 = vpop.f32.mrf.mxu0
    %341 = vdwg.mxu0
    %vm342 = vcmask 74752
    %343 = vst.msk [vmem:[#allocation2] sm:$0x3] %vm342, %v339
    // Predicated region
    $region30: #{lenet_forward.5} parent=1 // pred_check
      _
    $region31: #{lenet_forward.5} parent=1 // pred_check_branch
      %345 = sbr.rel (0) target = $region33
    $region32: #{lenet_forward.5} parent=1 // pred_region
      %s347 = ssub.s32 32, 32
      %348 = vsyncadd [#allocation3], %s347
      %s350 = sshll.u32 [#allocation2], 4
      %s351 = int_to_ptr.vmem [resolvable:$true] %s350
      %353 = dma.vmem_to_hbm [thread:$0]  %s351, 32, %s7, [#allocation3]
    $region33: #{lenet_forward.5} parent=1 // pred_fallthru
      _
    // Predicated region
    $region34: #{lenet_forward.5} parent=1 // pred_check
      _
    $region35: #{lenet_forward.5} parent=1 // pred_check_branch
      %355 = sbr.rel (0) target = $region37
    $region36: #{lenet_forward.5} parent=1 // pred_region
      %356 = dma.done [#allocation3], 32
    $region37: #{lenet_forward.5} parent=1 // pred_fallthru
      _
    %357 = vsyncpa [#allocation3], 1

// kernel: lenet_forward.3
$region0: #{lenet_forward.3}
  #allocation0 [shape = 'u32[]', space=smem, size = 0x4, offset = 0x4, fixed_abs, tag = 'smem constant byte address 0x4 - core index']
  #allocation1 [shape = 'u32[144,128]{1,0:T(1,128)}', space=vmem, size = 0x12000, scoped, tag = 'internal scratch']
  %s0 = inlined_call_operand.vmem [shape: f32[2,28,28,1], index: 0, kind: input, shape index: {}]
  %s1 = inlined_call_operand.vmem [shape: f32[25,6], index: 1, kind: input, shape index: {}]
  %s2 = inlined_call_operand.vmem [shape: f32[1,6], index: 2, kind: input, shape index: {}]
  %s3 = inlined_call_operand.vmem [shape: f32[2,12,12,6], index: 3, kind: output, shape index: {}]
  %s4 = sld [smem:[#allocation0]]
  $region45: #{lenet_forward.3} parent=0
    _
  %s6 = ssub.s32 1, %s4
  %s7 = scalar_select 0, %s6, %s4
  loop: start=0, step=1, limit=26
  $region2: #{lenet_forward.3} parent=0 // loop_pre_header
    _
  $region3: #{lenet_forward.3} parent=0 // loop_header
    %s9 = sphi 0, %s13
    %p10 = scmp.ge.s32.totalorder %s9, 26
    %s16 = sphi 0, %s28
    %s17 = sphi 0, %s24
    %s18 = sphi 0, %s16
    %s19 = sphi 0, %s17
    %s20 = sphi 0, %s18
    %s21 = sphi 0, %s19
    %s31 = sphi 0, %s33
    %s34 = sphi 0, %s31
    %s35 = sphi 0, %s34
    %s51 = sphi 0, %s35
    %s55 = sphi 0, %s55
    %s57 = sphi 0, %s55
    %s58 = sphi 0, %s57
    %s72 = sphi 0, %s58
    %s76 = sphi 0, %s76
    %s78 = sphi 0, %s76
    %s79 = sphi 0, %s78
    %s93 = sphi 0, %s79
    %s101 = sphi 0, %s103
    %s104 = sphi 0, %s101
    %s105 = sphi 0, %s104
    %s121 = sphi 0, %s105
  $region4: #{lenet_forward.3} parent=0 // loop_header_branch
    %12 = sbr.rel (%p10) target = $region8
  $region5: #{lenet_forward.3} parent=0 // loop_body
    %s14 = ssub.s32 %s9, 1
    %s15 = ssub.s32 %s9, 2
    %s22 = sadd.s32 1, %s17
    %p23 = scmp.ge.s32.totalorder %s22, 12
    %s24 = scalar_select %p23, 0, %s22
    %s25 = sadd.s32 1, %s16
    %s26 = scalar_select %p23, %s25, %s16
    %p27 = scmp.ge.s32.totalorder %s26, 2
    %s28 = scalar_select %p27, 0, %s26
    %s29 = ssub.s32 %s16, %s28
    %p30 = scmp.eq.s32.totalorder %s29, 0
    %s32 = sadd.s32 %s31, 1
    %s33 = scalar_select %p30, %s31, %s32
    %p36 = pneg %p30
    %p37 = scmp.eq.s32.totalorder %s9, 23
    %p38 = por %p36, %p37
    %p39 = scmp.ne.s32.totalorder %s31, %s34
    %p40 = scmp.eq.s32.totalorder %s9, 0
    %p41 = por %p39, %p40
    %p42 = scmp.ne.s32.totalorder %s31, %s34
    %p43 = scmp.eq.s32.totalorder %s14, 23
    %p44 = por %p42, %p43
    %p45 = scmp.ne.s32.totalorder %s34, %s35
    %p46 = scmp.eq.s32.totalorder %s14, 0
    %p47 = por %p45, %p46
    %p48 = scmp.ne.s32.totalorder %s34, %s35
    %p49 = scmp.eq.s32.totalorder %s15, 23
    %p50 = por %p48, %p49
    %p52 = scmp.ne.s32.totalorder %s35, %s51
    %p53 = scmp.eq.s32.totalorder %s15, 0
    %p54 = por %p52, %p53
    %s56 = sadd.s32 %s55, 1
    %p59 = scmp.eq.s32.totalorder %s9, 23
    %p60 = scmp.ne.s32.totalorder %s55, %s57
    %p61 = scmp.eq.s32.totalorder %s9, 0
    %p62 = por %p60, %p61
    %p63 = scmp.ne.s32.totalorder %s55, %s57
    %p64 = scmp.eq.s32.totalorder %s14, 23
    %p65 = por %p63, %p64
    %p66 = scmp.ne.s32.totalorder %s57, %s58
    %p67 = scmp.eq.s32.totalorder %s14, 0
    %p68 = por %p66, %p67
    %p69 = scmp.ne.s32.totalorder %s57, %s58
    %p70 = scmp.eq.s32.totalorder %s15, 23
    %p71 = por %p69, %p70
    %p73 = scmp.ne.s32.totalorder %s58, %s72
    %p74 = scmp.eq.s32.totalorder %s15, 0
    %p75 = por %p73, %p74
    %s77 = sadd.s32 %s76, 1
    %p80 = scmp.eq.s32.totalorder %s9, 23
    %p81 = scmp.ne.s32.totalorder %s76, %s78
    %p82 = scmp.eq.s32.totalorder %s9, 0
    %p83 = por %p81, %p82
    %p84 = scmp.ne.s32.totalorder %s76, %s78
    %p85 = scmp.eq.s32.totalorder %s14, 23
    %p86 = por %p84, %p85
    %p87 = scmp.ne.s32.totalorder %s78, %s79
    %p88 = scmp.eq.s32.totalorder %s14, 0
    %p89 = por %p87, %p88
    %p90 = scmp.ne.s32.totalorder %s78, %s79
    %p91 = scmp.eq.s32.totalorder %s15, 23
    %p92 = por %p90, %p91
    %p94 = scmp.ne.s32.totalorder %s79, %s93
    %p95 = scmp.eq.s32.totalorder %s15, 0
    %p96 = por %p94, %p95
    %s97 = ssub.s32 %s16, %s28
    %s98 = ssub.s32 %s17, %s24
    %s99 = sor.u32 %s97, %s98
    %p100 = scmp.eq.s32.totalorder %s99, 0
    %s102 = sadd.s32 %s101, 1
    %s103 = scalar_select %p100, %s101, %s102
    %p106 = pneg %p100
    %p107 = scmp.eq.s32.totalorder %s9, 23
    %p108 = por %p106, %p107
    %p109 = scmp.ne.s32.totalorder %s101, %s104
    %p110 = scmp.eq.s32.totalorder %s9, 0
    %p111 = por %p109, %p110
    %p112 = scmp.ne.s32.totalorder %s101, %s104
    %p113 = scmp.eq.s32.totalorder %s14, 23
    %p114 = por %p112, %p113
    %p115 = scmp.ne.s32.totalorder %s104, %s105
    %p116 = scmp.eq.s32.totalorder %s14, 0
    %p117 = por %p115, %p116
    %p118 = scmp.ne.s32.totalorder %s104, %s105
    %p119 = scmp.eq.s32.totalorder %s15, 23
    %p120 = por %p118, %p119
    %p122 = scmp.ne.s32.totalorder %s105, %s121
    %p123 = scmp.eq.s32.totalorder %s15, 0
    %p124 = por %p122, %p123
    %p125 = scmp.le.s32.totalorder 1, %s9
    %p126 = scmp.lt.s32.totalorder %s9, 25
    %p127 = pnand %p125, %p126
    %p128 = pneg %p127
    // Predicated region
    $region9: #{lenet_forward.3} parent=5 // pred_check
      _
    $region10: #{lenet_forward.3} parent=5 // pred_check_branch
      %130 = sbr.rel (%p127) target = $region12
    $region11: #{lenet_forward.3} parent=5 // pred_region
      %s131 = ssub.s32 %s9, 1
      // Predicated region
      $region13: #{lenet_forward.3} parent=11 // pred_check
        %p132 = pneg %p68
      $region14: #{lenet_forward.3} parent=11 // pred_check_branch
        %134 = sbr.rel (%p132) target = $region16
      $region15: #{lenet_forward.3} parent=11 // pred_region
        _
      $region16: #{lenet_forward.3} parent=11 // pred_fallthru
        _
      // Predicated region
      $region17: #{lenet_forward.3} parent=11 // pred_check
        %p135 = pneg %p89
      $region18: #{lenet_forward.3} parent=11 // pred_check_branch
        %137 = sbr.rel (%p135) target = $region20
      $region19: #{lenet_forward.3} parent=11 // pred_region
        _
      $region20: #{lenet_forward.3} parent=11 // pred_fallthru
        _
    $region12: #{lenet_forward.3} parent=5 // pred_fallthru
      _
    %p138 = scmp.lt.s32.totalorder %s9, 24
    // Predicated region
    $region21: #{lenet_forward.3} parent=5 // pred_check
      %p139 = pneg %p138
    $region22: #{lenet_forward.3} parent=5 // pred_check_branch
      %141 = sbr.rel (%p139) target = $region24
    $region23: #{lenet_forward.3} parent=5 // pred_region
      // Predicated region
      $region25: #{lenet_forward.3} parent=23 // pred_check
        %p142 = pneg %p41
      $region26: #{lenet_forward.3} parent=23 // pred_check_branch
        %144 = sbr.rel (%p142) target = $region28
      $region27: #{lenet_forward.3} parent=23 // pred_region
        %p145 = scmp.lt.s32.totalorder %s16, 1
        %s146 = scalar_select %p145, %s16, 1
        %s147 = smul.addr %s146, 112
        %s148 = smul.addr %s147, 8
        %s149 = scalar_lea.vmem %s0, %s148
      $region28: #{lenet_forward.3} parent=23 // pred_fallthru
        _
    $region24: #{lenet_forward.3} parent=5 // pred_fallthru
      _
    %p150 = scmp.le.s32.totalorder 1, %s9
    %p151 = scmp.lt.s32.totalorder %s9, 25
    %p152 = pnand %p150, %p151
    %p153 = pneg %p152
    // Predicated region
    $region29: #{lenet_forward.3} parent=5 // pred_check
      _
    $region30: #{lenet_forward.3} parent=5 // pred_check_branch
      %155 = sbr.rel (%p152) target = $region32
    $region31: #{lenet_forward.3} parent=5 // pred_region
      %s156 = ssub.s32 %s9, 1
      %p157 = scmp.lt.s32.totalorder %s18, 1
      %s158 = scalar_select %p157, %s18, 1
      %s159 = smul.addr %s158, 112
      %s160 = smul.addr %s159, 8
      %s161 = scalar_lea.vmem %s0, %s160
      %p162 = pneg %p47
      %p163 = pneg %p44
      %p164 = pneg %p68
      %p165 = pneg %p65
      %p166 = pneg %p89
      %p167 = pneg %p86
      %p168 = pneg %p117
      %p169 = pneg %p114
      %p170 = scmp.lt.s32.totalorder %s18, 1
      %s171 = scalar_select %p170, %s18, 1
      %p172 = scmp.lt.s32.totalorder %s19, 11
      %s173 = scalar_select %p172, %s19, 11
      %s174 = smul.addr %s173, 2
      %s175 = smul.addr %s171, 24
      %s176 = sadd.s32 %s174, %s175
      %s177 = smul.addr %s176, 8
      %s178 = scalar_lea.vmem %s3, %s177
      %p179 = scmp.lt.s32.totalorder %s18, 1
      %s180 = scalar_select %p179, %s18, 1
      %s181 = smul.addr %s180, 112
      %s182 = smul.addr %s181, 8
      %s183 = scalar_lea.vmem %s0, %s182
      %p184 = scmp.lt.s32.totalorder %s18, 1
      %s185 = scalar_select %p184, %s18, 1
      %p186 = scmp.lt.s32.totalorder %s19, 11
      %s187 = scalar_select %p186, %s19, 11
      %s188 = smul.addr %s187, 2
      %s189 = smul.addr %s185, 24
      %s190 = sadd.s32 %s188, %s189
      %s191 = smul.addr %s190, 8
      %s192 = scalar_lea.vmem %s3, %s191
      %s193 = smul.u32 %s19, 2
      %s194 = smul.u32 %s193, 32
      %s195 = scalar_lea.vmem %s183, %s194
      %v196 = vld [vmem:[%s195] sm:$0xff]
      %v197 = vld [vmem:[%s195 + $0x8] sm:$0xff]
      %v198 = vld [vmem:[%s195 + $0x10] sm:$0xff]
      %v199 = vld [vmem:[%s195 + $0x20] sm:$0xff]
      %v200 = vld [vmem:[%s195 + $0x28] sm:$0xff]
      %v201 = vld [vmem:[%s195 + $0x30] sm:$0xff]
      %v202 = vld [vmem:[%s195 + $0x1] sm:$0xff]
      %v203 = vld [vmem:[%s195 + $0x9] sm:$0xff]
      %v204 = vld [vmem:[%s195 + $0x11] sm:$0xff]
      %v205 = vld [vmem:[%s195 + $0x21] sm:$0xff]
      %v206 = vld [vmem:[%s195 + $0x29] sm:$0xff]
      %v207 = vld [vmem:[%s195 + $0x31] sm:$0xff]
      %v208 = vld [vmem:[%s195 + $0x2] sm:$0xff]
      %v209 = vld [vmem:[%s195 + $0xa] sm:$0xff]
      %v210 = vld [vmem:[%s195 + $0x12] sm:$0xff]
      %v211 = vld [vmem:[%s195 + $0x22] sm:$0xff]
      %v212 = vld [vmem:[%s195 + $0x2a] sm:$0xff]
      %v213 = vld [vmem:[%s195 + $0x32] sm:$0xff]
      %v214 = vld [vmem:[%s195 + $0x3] sm:$0xff]
      %v215 = vld [vmem:[%s195 + $0xb] sm:$0xff]
      %v216 = vld [vmem:[%s195 + $0x13] sm:$0xff]
      %v217 = vld [vmem:[%s195 + $0x23] sm:$0xff]
      %v218 = vld [vmem:[%s195 + $0x2b] sm:$0xff]
      %v219 = vld [vmem:[%s195 + $0x33] sm:$0xff]
      %v220 = vld [vmem:[%s195 + $0x4] sm:$0xff]
      %v221 = vld [vmem:[%s195 + $0xc] sm:$0xff]
      %v222 = vld [vmem:[%s195 + $0x14] sm:$0xff]
      %v223 = vld [vmem:[%s195 + $0x24] sm:$0xff]
      %v224 = vld [vmem:[%s195 + $0x2c] sm:$0xff]
      %v225 = vld [vmem:[%s195 + $0x34] sm:$0xff]
      %s226 = sadd.s32 %s193, 1
      %s227 = smul.u32 %s226, 32
      %s228 = scalar_lea.vmem %s183, %s227
      %v229 = vld [vmem:[%s228] sm:$0xff]
      %v230 = vld [vmem:[%s228 + $0x8] sm:$0xff]
      %v231 = vld [vmem:[%s228 + $0x10] sm:$0xff]
      %v232 = vld [vmem:[%s228 + $0x20] sm:$0xff]
      %v233 = vld [vmem:[%s228 + $0x28] sm:$0xff]
      %v234 = vld [vmem:[%s228 + $0x30] sm:$0xff]
      %v235 = vld [vmem:[%s228 + $0x1] sm:$0xff]
      %v236 = vld [vmem:[%s228 + $0x9] sm:$0xff]
      %v237 = vld [vmem:[%s228 + $0x11] sm:$0xff]
      %v238 = vld [vmem:[%s228 + $0x21] sm:$0xff]
      %v239 = vld [vmem:[%s228 + $0x29] sm:$0xff]
      %v240 = vld [vmem:[%s228 + $0x31] sm:$0xff]
      %v241 = vld [vmem:[%s228 + $0x2] sm:$0xff]
      %v242 = vld [vmem:[%s228 + $0xa] sm:$0xff]
      %v243 = vld [vmem:[%s228 + $0x12] sm:$0xff]
      %v244 = vld [vmem:[%s228 + $0x22] sm:$0xff]
      %v245 = vld [vmem:[%s228 + $0x2a] sm:$0xff]
      %v246 = vld [vmem:[%s228 + $0x32] sm:$0xff]
      %v247 = vld [vmem:[%s228 + $0x3] sm:$0xff]
      %v248 = vld [vmem:[%s228 + $0xb] sm:$0xff]
      %v249 = vld [vmem:[%s228 + $0x13] sm:$0xff]
      %v250 = vld [vmem:[%s228 + $0x23] sm:$0xff]
      %v251 = vld [vmem:[%s228 + $0x2b] sm:$0xff]
      %v252 = vld [vmem:[%s228 + $0x33] sm:$0xff]
      %v253 = vld [vmem:[%s228 + $0x4] sm:$0xff]
      %v254 = vld [vmem:[%s228 + $0xc] sm:$0xff]
      %v255 = vld [vmem:[%s228 + $0x14] sm:$0xff]
      %v256 = vld [vmem:[%s228 + $0x24] sm:$0xff]
      %v257 = vld [vmem:[%s228 + $0x2c] sm:$0xff]
      %v258 = vld [vmem:[%s228 + $0x34] sm:$0xff]
      %s259 = sadd.s32 %s193, 2
      %s260 = smul.u32 %s259, 32
      %s261 = scalar_lea.vmem %s183, %s260
      %v262 = vld [vmem:[%s261] sm:$0xff]
      %v263 = vld [vmem:[%s261 + $0x8] sm:$0xff]
      %v264 = vld [vmem:[%s261 + $0x10] sm:$0xff]
      %v265 = vld [vmem:[%s261 + $0x20] sm:$0xff]
      %v266 = vld [vmem:[%s261 + $0x28] sm:$0xff]
      %v267 = vld [vmem:[%s261 + $0x30] sm:$0xff]
      %v268 = vld [vmem:[%s261 + $0x1] sm:$0xff]
      %v269 = vld [vmem:[%s261 + $0x9] sm:$0xff]
      %v270 = vld [vmem:[%s261 + $0x11] sm:$0xff]
      %v271 = vld [vmem:[%s261 + $0x21] sm:$0xff]
      %v272 = vld [vmem:[%s261 + $0x29] sm:$0xff]
      %v273 = vld [vmem:[%s261 + $0x31] sm:$0xff]
      %v274 = vld [vmem:[%s261 + $0x2] sm:$0xff]
      %v275 = vld [vmem:[%s261 + $0xa] sm:$0xff]
      %v276 = vld [vmem:[%s261 + $0x12] sm:$0xff]
      %v277 = vld [vmem:[%s261 + $0x22] sm:$0xff]
      %v278 = vld [vmem:[%s261 + $0x2a] sm:$0xff]
      %v279 = vld [vmem:[%s261 + $0x32] sm:$0xff]
      %v280 = vld [vmem:[%s261 + $0x3] sm:$0xff]
      %v281 = vld [vmem:[%s261 + $0xb] sm:$0xff]
      %v282 = vld [vmem:[%s261 + $0x13] sm:$0xff]
      %v283 = vld [vmem:[%s261 + $0x23] sm:$0xff]
      %v284 = vld [vmem:[%s261 + $0x2b] sm:$0xff]
      %v285 = vld [vmem:[%s261 + $0x33] sm:$0xff]
      %v286 = vld [vmem:[%s261 + $0x4] sm:$0xff]
      %v287 = vld [vmem:[%s261 + $0xc] sm:$0xff]
      %v288 = vld [vmem:[%s261 + $0x14] sm:$0xff]
      %v289 = vld [vmem:[%s261 + $0x24] sm:$0xff]
      %v290 = vld [vmem:[%s261 + $0x2c] sm:$0xff]
      %v291 = vld [vmem:[%s261 + $0x34] sm:$0xff]
      %s292 = sadd.s32 %s193, 3
      %s293 = smul.u32 %s292, 32
      %s294 = scalar_lea.vmem %s183, %s293
      %v295 = vld [vmem:[%s294] sm:$0xff]
      %v296 = vld [vmem:[%s294 + $0x8] sm:$0xff]
      %v297 = vld [vmem:[%s294 + $0x10] sm:$0xff]
      %v298 = vld [vmem:[%s294 + $0x20] sm:$0xff]
      %v299 = vld [vmem:[%s294 + $0x28] sm:$0xff]
      %v300 = vld [vmem:[%s294 + $0x30] sm:$0xff]
      %v301 = vld [vmem:[%s294 + $0x1] sm:$0xff]
      %v302 = vld [vmem:[%s294 + $0x9] sm:$0xff]
      %v303 = vld [vmem:[%s294 + $0x11] sm:$0xff]
      %v304 = vld [vmem:[%s294 + $0x21] sm:$0xff]
      %v305 = vld [vmem:[%s294 + $0x29] sm:$0xff]
      %v306 = vld [vmem:[%s294 + $0x31] sm:$0xff]
      %v307 = vld [vmem:[%s294 + $0x2] sm:$0xff]
      %v308 = vld [vmem:[%s294 + $0xa] sm:$0xff]
      %v309 = vld [vmem:[%s294 + $0x12] sm:$0xff]
      %v310 = vld [vmem:[%s294 + $0x22] sm:$0xff]
      %v311 = vld [vmem:[%s294 + $0x2a] sm:$0xff]
      %v312 = vld [vmem:[%s294 + $0x32] sm:$0xff]
      %v313 = vld [vmem:[%s294 + $0x3] sm:$0xff]
      %v314 = vld [vmem:[%s294 + $0xb] sm:$0xff]
      %v315 = vld [vmem:[%s294 + $0x13] sm:$0xff]
      %v316 = vld [vmem:[%s294 + $0x23] sm:$0xff]
      %v317 = vld [vmem:[%s294 + $0x2b] sm:$0xff]
      %v318 = vld [vmem:[%s294 + $0x33] sm:$0xff]
      %v319 = vld [vmem:[%s294 + $0x4] sm:$0xff]
      %v320 = vld [vmem:[%s294 + $0xc] sm:$0xff]
      %v321 = vld [vmem:[%s294 + $0x14] sm:$0xff]
      %v322 = vld [vmem:[%s294 + $0x24] sm:$0xff]
      %v323 = vld [vmem:[%s294 + $0x2c] sm:$0xff]
      %v324 = vld [vmem:[%s294 + $0x34] sm:$0xff]
      %s325 = sadd.s32 %s193, 4
      %s326 = smul.u32 %s325, 32
      %s327 = scalar_lea.vmem %s183, %s326
      %v328 = vld [vmem:[%s327] sm:$0xff]
      %v329 = vld [vmem:[%s327 + $0x8] sm:$0xff]
      %v330 = vld [vmem:[%s327 + $0x10] sm:$0xff]
      %v331 = vld [vmem:[%s327 + $0x20] sm:$0xff]
      %v332 = vld [vmem:[%s327 + $0x28] sm:$0xff]
      %v333 = vld [vmem:[%s327 + $0x30] sm:$0xff]
      %v334 = vld [vmem:[%s327 + $0x1] sm:$0xff]
      %v335 = vld [vmem:[%s327 + $0x9] sm:$0xff]
      %v336 = vld [vmem:[%s327 + $0x11] sm:$0xff]
      %v337 = vld [vmem:[%s327 + $0x21] sm:$0xff]
      %v338 = vld [vmem:[%s327 + $0x29] sm:$0xff]
      %v339 = vld [vmem:[%s327 + $0x31] sm:$0xff]
      %v340 = vld [vmem:[%s327 + $0x2] sm:$0xff]
      %v341 = vld [vmem:[%s327 + $0xa] sm:$0xff]
      %v342 = vld [vmem:[%s327 + $0x12] sm:$0xff]
      %v343 = vld [vmem:[%s327 + $0x22] sm:$0xff]
      %v344 = vld [vmem:[%s327 + $0x2a] sm:$0xff]
      %v345 = vld [vmem:[%s327 + $0x32] sm:$0xff]
      %v346 = vld [vmem:[%s327 + $0x3] sm:$0xff]
      %v347 = vld [vmem:[%s327 + $0xb] sm:$0xff]
      %v348 = vld [vmem:[%s327 + $0x13] sm:$0xff]
      %v349 = vld [vmem:[%s327 + $0x23] sm:$0xff]
      %v350 = vld [vmem:[%s327 + $0x2b] sm:$0xff]
      %v351 = vld [vmem:[%s327 + $0x33] sm:$0xff]
      %v352 = vld [vmem:[%s327 + $0x4] sm:$0xff]
      %v353 = vld [vmem:[%s327 + $0xc] sm:$0xff]
      %v354 = vld [vmem:[%s327 + $0x14] sm:$0xff]
      %v355 = vld [vmem:[%s327 + $0x24] sm:$0xff]
      %v356 = vld [vmem:[%s327 + $0x2c] sm:$0xff]
      %v357 = vld [vmem:[%s327 + $0x34] sm:$0xff]
      %364 = vrot.lane.b32.xlu0 %v202, 1
      %v365 = vpop.permute.xlu0 %364
      %366 = vrot.lane.b32.xlu0 %v203, 1
      %v367 = vpop.permute.xlu0 %366
      %368 = vrot.lane.b32.xlu0 %v204, 1
      %v369 = vpop.permute.xlu0 %368
      %370 = vrot.lane.b32.xlu0 %v205, 1
      %v371 = vpop.permute.xlu0 %370
      %372 = vrot.lane.b32.xlu0 %v206, 1
      %v373 = vpop.permute.xlu0 %372
      %374 = vrot.lane.b32.xlu0 %v207, 1
      %v375 = vpop.permute.xlu0 %374
      %388 = vrot.lane.b32.xlu0 %v208, 2
      %v389 = vpop.permute.xlu0 %388
      %390 = vrot.lane.b32.xlu0 %v209, 2
      %v391 = vpop.permute.xlu0 %390
      %392 = vrot.lane.b32.xlu0 %v210, 2
      %v393 = vpop.permute.xlu0 %392
      %394 = vrot.lane.b32.xlu0 %v211, 2
      %v395 = vpop.permute.xlu0 %394
      %396 = vrot.lane.b32.xlu0 %v212, 2
      %v397 = vpop.permute.xlu0 %396
      %398 = vrot.lane.b32.xlu0 %v213, 2
      %v399 = vpop.permute.xlu0 %398
      %412 = vrot.lane.b32.xlu0 %v214, 3
      %v413 = vpop.permute.xlu0 %412
      %414 = vrot.lane.b32.xlu0 %v215, 3
      %v415 = vpop.permute.xlu0 %414
      %416 = vrot.lane.b32.xlu0 %v216, 3
      %v417 = vpop.permute.xlu0 %416
      %418 = vrot.lane.b32.xlu0 %v217, 3
      %v419 = vpop.permute.xlu0 %418
      %420 = vrot.lane.b32.xlu0 %v218, 3
      %v421 = vpop.permute.xlu0 %420
      %422 = vrot.lane.b32.xlu0 %v219, 3
      %v423 = vpop.permute.xlu0 %422
      %436 = vrot.lane.b32.xlu0 %v220, 4
      %v437 = vpop.permute.xlu0 %436
      %438 = vrot.lane.b32.xlu0 %v221, 4
      %v439 = vpop.permute.xlu0 %438
      %440 = vrot.lane.b32.xlu0 %v222, 4
      %v441 = vpop.permute.xlu0 %440
      %442 = vrot.lane.b32.xlu0 %v223, 4
      %v443 = vpop.permute.xlu0 %442
      %444 = vrot.lane.b32.xlu0 %v224, 4
      %v445 = vpop.permute.xlu0 %444
      %446 = vrot.lane.b32.xlu0 %v225, 4
      %v447 = vpop.permute.xlu0 %446
      %460 = vrot.lane.b32.xlu0 %v229, 5
      %v461 = vpop.permute.xlu0 %460
      %462 = vrot.lane.b32.xlu0 %v230, 5
      %v463 = vpop.permute.xlu0 %462
      %464 = vrot.lane.b32.xlu0 %v231, 5
      %v465 = vpop.permute.xlu0 %464
      %466 = vrot.lane.b32.xlu0 %v232, 5
      %v467 = vpop.permute.xlu0 %466
      %468 = vrot.lane.b32.xlu0 %v233, 5
      %v469 = vpop.permute.xlu0 %468
      %470 = vrot.lane.b32.xlu0 %v234, 5
      %v471 = vpop.permute.xlu0 %470
      %484 = vrot.lane.b32.xlu0 %v235, 6
      %v485 = vpop.permute.xlu0 %484
      %486 = vrot.lane.b32.xlu0 %v236, 6
      %v487 = vpop.permute.xlu0 %486
      %488 = vrot.lane.b32.xlu0 %v237, 6
      %v489 = vpop.permute.xlu0 %488
      %490 = vrot.lane.b32.xlu0 %v238, 6
      %v491 = vpop.permute.xlu0 %490
      %492 = vrot.lane.b32.xlu0 %v239, 6
      %v493 = vpop.permute.xlu0 %492
      %494 = vrot.lane.b32.xlu0 %v240, 6
      %v495 = vpop.permute.xlu0 %494
      %508 = vrot.lane.b32.xlu0 %v241, 7
      %v509 = vpop.permute.xlu0 %508
      %510 = vrot.lane.b32.xlu0 %v242, 7
      %v511 = vpop.permute.xlu0 %510
      %512 = vrot.lane.b32.xlu0 %v243, 7
      %v513 = vpop.permute.xlu0 %512
      %514 = vrot.lane.b32.xlu0 %v244, 7
      %v515 = vpop.permute.xlu0 %514
      %516 = vrot.lane.b32.xlu0 %v245, 7
      %v517 = vpop.permute.xlu0 %516
      %518 = vrot.lane.b32.xlu0 %v246, 7
      %v519 = vpop.permute.xlu0 %518
      %532 = vrot.lane.b32.xlu0 %v247, 8
      %v533 = vpop.permute.xlu0 %532
      %534 = vrot.lane.b32.xlu0 %v248, 8
      %v535 = vpop.permute.xlu0 %534
      %536 = vrot.lane.b32.xlu0 %v249, 8
      %v537 = vpop.permute.xlu0 %536
      %538 = vrot.lane.b32.xlu0 %v250, 8
      %v539 = vpop.permute.xlu0 %538
      %540 = vrot.lane.b32.xlu0 %v251, 8
      %v541 = vpop.permute.xlu0 %540
      %542 = vrot.lane.b32.xlu0 %v252, 8
      %v543 = vpop.permute.xlu0 %542
      %556 = vrot.lane.b32.xlu0 %v253, 9
      %v557 = vpop.permute.xlu0 %556
      %558 = vrot.lane.b32.xlu0 %v254, 9
      %v559 = vpop.permute.xlu0 %558
      %560 = vrot.lane.b32.xlu0 %v255, 9
      %v561 = vpop.permute.xlu0 %560
      %562 = vrot.lane.b32.xlu0 %v256, 9
      %v563 = vpop.permute.xlu0 %562
      %564 = vrot.lane.b32.xlu0 %v257, 9
      %v565 = vpop.permute.xlu0 %564
      %566 = vrot.lane.b32.xlu0 %v258, 9
      %v567 = vpop.permute.xlu0 %566
      %580 = vrot.lane.b32.xlu0 %v262, 10
      %v581 = vpop.permute.xlu0 %580
      %582 = vrot.lane.b32.xlu0 %v263, 10
      %v583 = vpop.permute.xlu0 %582
      %584 = vrot.lane.b32.xlu0 %v264, 10
      %v585 = vpop.permute.xlu0 %584
      %586 = vrot.lane.b32.xlu0 %v265, 10
      %v587 = vpop.permute.xlu0 %586
      %588 = vrot.lane.b32.xlu0 %v266, 10
      %v589 = vpop.permute.xlu0 %588
      %590 = vrot.lane.b32.xlu0 %v267, 10
      %v591 = vpop.permute.xlu0 %590
      %604 = vrot.lane.b32.xlu0 %v268, 11
      %v605 = vpop.permute.xlu0 %604
      %606 = vrot.lane.b32.xlu0 %v269, 11
      %v607 = vpop.permute.xlu0 %606
      %608 = vrot.lane.b32.xlu0 %v270, 11
      %v609 = vpop.permute.xlu0 %608
      %610 = vrot.lane.b32.xlu0 %v271, 11
      %v611 = vpop.permute.xlu0 %610
      %612 = vrot.lane.b32.xlu0 %v272, 11
      %v613 = vpop.permute.xlu0 %612
      %614 = vrot.lane.b32.xlu0 %v273, 11
      %v615 = vpop.permute.xlu0 %614
      %628 = vrot.lane.b32.xlu0 %v274, 12
      %v629 = vpop.permute.xlu0 %628
      %630 = vrot.lane.b32.xlu0 %v275, 12
      %v631 = vpop.permute.xlu0 %630
      %632 = vrot.lane.b32.xlu0 %v276, 12
      %v633 = vpop.permute.xlu0 %632
      %634 = vrot.lane.b32.xlu0 %v277, 12
      %v635 = vpop.permute.xlu0 %634
      %636 = vrot.lane.b32.xlu0 %v278, 12
      %v637 = vpop.permute.xlu0 %636
      %638 = vrot.lane.b32.xlu0 %v279, 12
      %v639 = vpop.permute.xlu0 %638
      %652 = vrot.lane.b32.xlu0 %v280, 13
      %v653 = vpop.permute.xlu0 %652
      %654 = vrot.lane.b32.xlu0 %v281, 13
      %v655 = vpop.permute.xlu0 %654
      %656 = vrot.lane.b32.xlu0 %v282, 13
      %v657 = vpop.permute.xlu0 %656
      %658 = vrot.lane.b32.xlu0 %v283, 13
      %v659 = vpop.permute.xlu0 %658
      %660 = vrot.lane.b32.xlu0 %v284, 13
      %v661 = vpop.permute.xlu0 %660
      %662 = vrot.lane.b32.xlu0 %v285, 13
      %v663 = vpop.permute.xlu0 %662
      %676 = vrot.lane.b32.xlu0 %v286, 14
      %v677 = vpop.permute.xlu0 %676
      %678 = vrot.lane.b32.xlu0 %v287, 14
      %v679 = vpop.permute.xlu0 %678
      %680 = vrot.lane.b32.xlu0 %v288, 14
      %v681 = vpop.permute.xlu0 %680
      %682 = vrot.lane.b32.xlu0 %v289, 14
      %v683 = vpop.permute.xlu0 %682
      %684 = vrot.lane.b32.xlu0 %v290, 14
      %v685 = vpop.permute.xlu0 %684
      %686 = vrot.lane.b32.xlu0 %v291, 14
      %v687 = vpop.permute.xlu0 %686
      %700 = vrot.lane.b32.xlu0 %v295, 15
      %v701 = vpop.permute.xlu0 %700
      %702 = vrot.lane.b32.xlu0 %v296, 15
      %v703 = vpop.permute.xlu0 %702
      %704 = vrot.lane.b32.xlu0 %v297, 15
      %v705 = vpop.permute.xlu0 %704
      %706 = vrot.lane.b32.xlu0 %v298, 15
      %v707 = vpop.permute.xlu0 %706
      %708 = vrot.lane.b32.xlu0 %v299, 15
      %v709 = vpop.permute.xlu0 %708
      %710 = vrot.lane.b32.xlu0 %v300, 15
      %v711 = vpop.permute.xlu0 %710
      %vm718 = vcmask 7168
      %v719 = vsel %vm718, %v196, %v365
      %v720 = vsel %vm718, %v197, %v367
      %v721 = vsel %vm718, %v198, %v369
      %v722 = vsel %vm718, %v199, %v371
      %v723 = vsel %vm718, %v200, %v373
      %v724 = vsel %vm718, %v201, %v375
      %vm725 = vcmask 15360
      %v726 = vsel %vm725, %v719, %v389
      %v727 = vsel %vm725, %v720, %v391
      %v728 = vsel %vm725, %v721, %v393
      %v729 = vsel %vm725, %v722, %v395
      %v730 = vsel %vm725, %v723, %v397
      %v731 = vsel %vm725, %v724, %v399
      %vm732 = vcmask 23552
      %v733 = vsel %vm732, %v726, %v413
      %v734 = vsel %vm732, %v727, %v415
      %v735 = vsel %vm732, %v728, %v417
      %v736 = vsel %vm732, %v729, %v419
      %v737 = vsel %vm732, %v730, %v421
      %v738 = vsel %vm732, %v731, %v423
      %vm739 = vcmask 31744
      %v740 = vsel %vm739, %v733, %v437
      %v741 = vsel %vm739, %v734, %v439
      %v742 = vsel %vm739, %v735, %v441
      %v743 = vsel %vm739, %v736, %v443
      %v744 = vsel %vm739, %v737, %v445
      %v745 = vsel %vm739, %v738, %v447
      %vm746 = vcmask 39936
      %v747 = vsel %vm746, %v740, %v461
      %v748 = vsel %vm746, %v741, %v463
      %v749 = vsel %vm746, %v742, %v465
      %v750 = vsel %vm746, %v743, %v467
      %v751 = vsel %vm746, %v744, %v469
      %v752 = vsel %vm746, %v745, %v471
      %vm753 = vcmask 48128
      %v754 = vsel %vm753, %v747, %v485
      %v755 = vsel %vm753, %v748, %v487
      %v756 = vsel %vm753, %v749, %v489
      %v757 = vsel %vm753, %v750, %v491
      %v758 = vsel %vm753, %v751, %v493
      %v759 = vsel %vm753, %v752, %v495
      %vm760 = vcmask 56320
      %v761 = vsel %vm760, %v754, %v509
      %v762 = vsel %vm760, %v755, %v511
      %v763 = vsel %vm760, %v756, %v513
      %v764 = vsel %vm760, %v757, %v515
      %v765 = vsel %vm760, %v758, %v517
      %v766 = vsel %vm760, %v759, %v519
      %vm767 = vcmask 64512
      %v768 = vsel %vm767, %v761, %v533
      %v769 = vsel %vm767, %v762, %v535
      %v770 = vsel %vm767, %v763, %v537
      %v771 = vsel %vm767, %v764, %v539
      %v772 = vsel %vm767, %v765, %v541
      %v773 = vsel %vm767, %v766, %v543
      %vm774 = vcmask 72704
      %v775 = vsel %vm774, %v768, %v557
      %v776 = vsel %vm774, %v769, %v559
      %v777 = vsel %vm774, %v770, %v561
      %v778 = vsel %vm774, %v771, %v563
      %v779 = vsel %vm774, %v772, %v565
      %v780 = vsel %vm774, %v773, %v567
      %vm781 = vcmask 80896
      %v782 = vsel %vm781, %v775, %v581
      %v783 = vsel %vm781, %v776, %v583
      %v784 = vsel %vm781, %v777, %v585
      %v785 = vsel %vm781, %v778, %v587
      %v786 = vsel %vm781, %v779, %v589
      %v787 = vsel %vm781, %v780, %v591
      %vm788 = vcmask 89088
      %v789 = vsel %vm788, %v782, %v605
      %v790 = vsel %vm788, %v783, %v607
      %v791 = vsel %vm788, %v784, %v609
      %v792 = vsel %vm788, %v785, %v611
      %v793 = vsel %vm788, %v786, %v613
      %v794 = vsel %vm788, %v787, %v615
      %vm795 = vcmask 97280
      %v796 = vsel %vm795, %v789, %v629
      %v797 = vsel %vm795, %v790, %v631
      %v798 = vsel %vm795, %v791, %v633
      %v799 = vsel %vm795, %v792, %v635
      %v800 = vsel %vm795, %v793, %v637
      %v801 = vsel %vm795, %v794, %v639
      %vm802 = vcmask 105472
      %v803 = vsel %vm802, %v796, %v653
      %v804 = vsel %vm802, %v797, %v655
      %v805 = vsel %vm802, %v798, %v657
      %v806 = vsel %vm802, %v799, %v659
      %v807 = vsel %vm802, %v800, %v661
      %v808 = vsel %vm802, %v801, %v663
      %vm809 = vcmask 113664
      %v810 = vsel %vm809, %v803, %v677
      %v811 = vsel %vm809, %v804, %v679
      %v812 = vsel %vm809, %v805, %v681
      %v813 = vsel %vm809, %v806, %v683
      %v814 = vsel %vm809, %v807, %v685
      %v815 = vsel %vm809, %v808, %v687
      %vm816 = vcmask 121856
      %v817 = vsel %vm816, %v810, %v701
      %v818 = vsel %vm816, %v811, %v703
      %v819 = vsel %vm816, %v812, %v705
      %v820 = vsel %vm816, %v813, %v707
      %v821 = vsel %vm816, %v814, %v709
      %v822 = vsel %vm816, %v815, %v711
      %829 = vrot.lane.b32.xlu0 %v307, 1
      %v830 = vpop.permute.xlu0 %829
      %831 = vrot.lane.b32.xlu0 %v308, 1
      %v832 = vpop.permute.xlu0 %831
      %833 = vrot.lane.b32.xlu0 %v309, 1
      %v834 = vpop.permute.xlu0 %833
      %835 = vrot.lane.b32.xlu0 %v310, 1
      %v836 = vpop.permute.xlu0 %835
      %837 = vrot.lane.b32.xlu0 %v311, 1
      %v838 = vpop.permute.xlu0 %837
      %839 = vrot.lane.b32.xlu0 %v312, 1
      %v840 = vpop.permute.xlu0 %839
      %853 = vrot.lane.b32.xlu0 %v313, 2
      %v854 = vpop.permute.xlu0 %853
      %855 = vrot.lane.b32.xlu0 %v314, 2
      %v856 = vpop.permute.xlu0 %855
      %857 = vrot.lane.b32.xlu0 %v315, 2
      %v858 = vpop.permute.xlu0 %857
      %859 = vrot.lane.b32.xlu0 %v316, 2
      %v860 = vpop.permute.xlu0 %859
      %861 = vrot.lane.b32.xlu0 %v317, 2
      %v862 = vpop.permute.xlu0 %861
      %863 = vrot.lane.b32.xlu0 %v318, 2
      %v864 = vpop.permute.xlu0 %863
      %877 = vrot.lane.b32.xlu0 %v319, 3
      %v878 = vpop.permute.xlu0 %877
      %879 = vrot.lane.b32.xlu0 %v320, 3
      %v880 = vpop.permute.xlu0 %879
      %881 = vrot.lane.b32.xlu0 %v321, 3
      %v882 = vpop.permute.xlu0 %881
      %883 = vrot.lane.b32.xlu0 %v322, 3
      %v884 = vpop.permute.xlu0 %883
      %885 = vrot.lane.b32.xlu0 %v323, 3
      %v886 = vpop.permute.xlu0 %885
      %887 = vrot.lane.b32.xlu0 %v324, 3
      %v888 = vpop.permute.xlu0 %887
      %901 = vrot.lane.b32.xlu0 %v328, 4
      %v902 = vpop.permute.xlu0 %901
      %903 = vrot.lane.b32.xlu0 %v329, 4
      %v904 = vpop.permute.xlu0 %903
      %905 = vrot.lane.b32.xlu0 %v330, 4
      %v906 = vpop.permute.xlu0 %905
      %907 = vrot.lane.b32.xlu0 %v331, 4
      %v908 = vpop.permute.xlu0 %907
      %909 = vrot.lane.b32.xlu0 %v332, 4
      %v910 = vpop.permute.xlu0 %909
      %911 = vrot.lane.b32.xlu0 %v333, 4
      %v912 = vpop.permute.xlu0 %911
      %925 = vrot.lane.b32.xlu0 %v334, 5
      %v926 = vpop.permute.xlu0 %925
      %927 = vrot.lane.b32.xlu0 %v335, 5
      %v928 = vpop.permute.xlu0 %927
      %929 = vrot.lane.b32.xlu0 %v336, 5
      %v930 = vpop.permute.xlu0 %929
      %931 = vrot.lane.b32.xlu0 %v337, 5
      %v932 = vpop.permute.xlu0 %931
      %933 = vrot.lane.b32.xlu0 %v338, 5
      %v934 = vpop.permute.xlu0 %933
      %935 = vrot.lane.b32.xlu0 %v339, 5
      %v936 = vpop.permute.xlu0 %935
      %949 = vrot.lane.b32.xlu0 %v340, 6
      %v950 = vpop.permute.xlu0 %949
      %951 = vrot.lane.b32.xlu0 %v341, 6
      %v952 = vpop.permute.xlu0 %951
      %953 = vrot.lane.b32.xlu0 %v342, 6
      %v954 = vpop.permute.xlu0 %953
      %955 = vrot.lane.b32.xlu0 %v343, 6
      %v956 = vpop.permute.xlu0 %955
      %957 = vrot.lane.b32.xlu0 %v344, 6
      %v958 = vpop.permute.xlu0 %957
      %959 = vrot.lane.b32.xlu0 %v345, 6
      %v960 = vpop.permute.xlu0 %959
      %973 = vrot.lane.b32.xlu0 %v346, 7
      %v974 = vpop.permute.xlu0 %973
      %975 = vrot.lane.b32.xlu0 %v347, 7
      %v976 = vpop.permute.xlu0 %975
      %977 = vrot.lane.b32.xlu0 %v348, 7
      %v978 = vpop.permute.xlu0 %977
      %979 = vrot.lane.b32.xlu0 %v349, 7
      %v980 = vpop.permute.xlu0 %979
      %981 = vrot.lane.b32.xlu0 %v350, 7
      %v982 = vpop.permute.xlu0 %981
      %983 = vrot.lane.b32.xlu0 %v351, 7
      %v984 = vpop.permute.xlu0 %983
      %997 = vrot.lane.b32.xlu0 %v352, 8
      %v998 = vpop.permute.xlu0 %997
      %999 = vrot.lane.b32.xlu0 %v353, 8
      %v1000 = vpop.permute.xlu0 %999
      %1001 = vrot.lane.b32.xlu0 %v354, 8
      %v1002 = vpop.permute.xlu0 %1001
      %1003 = vrot.lane.b32.xlu0 %v355, 8
      %v1004 = vpop.permute.xlu0 %1003
      %1005 = vrot.lane.b32.xlu0 %v356, 8
      %v1006 = vpop.permute.xlu0 %1005
      %1007 = vrot.lane.b32.xlu0 %v357, 8
      %v1008 = vpop.permute.xlu0 %1007
      %v1015 = vsel %vm718, %v301, %v830
      %v1016 = vsel %vm718, %v302, %v832
      %v1017 = vsel %vm718, %v303, %v834
      %v1018 = vsel %vm718, %v304, %v836
      %v1019 = vsel %vm718, %v305, %v838
      %v1020 = vsel %vm718, %v306, %v840
      %v1021 = vsel %vm725, %v1015, %v854
      %v1022 = vsel %vm725, %v1016, %v856
      %v1023 = vsel %vm725, %v1017, %v858
      %v1024 = vsel %vm725, %v1018, %v860
      %v1025 = vsel %vm725, %v1019, %v862
      %v1026 = vsel %vm725, %v1020, %v864
      %v1027 = vsel %vm732, %v1021, %v878
      %v1028 = vsel %vm732, %v1022, %v880
      %v1029 = vsel %vm732, %v1023, %v882
      %v1030 = vsel %vm732, %v1024, %v884
      %v1031 = vsel %vm732, %v1025, %v886
      %v1032 = vsel %vm732, %v1026, %v888
      %v1033 = vsel %vm739, %v1027, %v902
      %v1034 = vsel %vm739, %v1028, %v904
      %v1035 = vsel %vm739, %v1029, %v906
      %v1036 = vsel %vm739, %v1030, %v908
      %v1037 = vsel %vm739, %v1031, %v910
      %v1038 = vsel %vm739, %v1032, %v912
      %v1039 = vsel %vm746, %v1033, %v926
      %v1040 = vsel %vm746, %v1034, %v928
      %v1041 = vsel %vm746, %v1035, %v930
      %v1042 = vsel %vm746, %v1036, %v932
      %v1043 = vsel %vm746, %v1037, %v934
      %v1044 = vsel %vm746, %v1038, %v936
      %v1045 = vsel %vm753, %v1039, %v950
      %v1046 = vsel %vm753, %v1040, %v952
      %v1047 = vsel %vm753, %v1041, %v954
      %v1048 = vsel %vm753, %v1042, %v956
      %v1049 = vsel %vm753, %v1043, %v958
      %v1050 = vsel %vm753, %v1044, %v960
      %v1051 = vsel %vm760, %v1045, %v974
      %v1052 = vsel %vm760, %v1046, %v976
      %v1053 = vsel %vm760, %v1047, %v978
      %v1054 = vsel %vm760, %v1048, %v980
      %v1055 = vsel %vm760, %v1049, %v982
      %v1056 = vsel %vm760, %v1050, %v984
      %v1057 = vsel %vm767, %v1051, %v998
      %v1058 = vsel %vm767, %v1052, %v1000
      %v1059 = vsel %vm767, %v1053, %v1002
      %v1060 = vsel %vm767, %v1054, %v1004
      %v1061 = vsel %vm767, %v1055, %v1006
      %v1062 = vsel %vm767, %v1056, %v1008
      %1069 = vrot.lane.b32.xlu0 %v1057, 16
      %v1070 = vpop.permute.xlu0 %1069
      %1071 = vrot.lane.b32.xlu0 %v1058, 16
      %v1072 = vpop.permute.xlu0 %1071
      %1073 = vrot.lane.b32.xlu0 %v1059, 16
      %v1074 = vpop.permute.xlu0 %1073
      %1075 = vrot.lane.b32.xlu0 %v1060, 16
      %v1076 = vpop.permute.xlu0 %1075
      %1077 = vrot.lane.b32.xlu0 %v1061, 16
      %v1078 = vpop.permute.xlu0 %1077
      %1079 = vrot.lane.b32.xlu0 %v1062, 16
      %v1080 = vpop.permute.xlu0 %1079
      %vm1087 = vcmask 130048
      %v1088 = vsel %vm1087, %v817, %v1070
      %v1089 = vsel %vm1087, %v818, %v1072
      %v1090 = vsel %vm1087, %v819, %v1074
      %v1091 = vsel %vm1087, %v820, %v1076
      %v1092 = vsel %vm1087, %v821, %v1078
      %v1093 = vsel %vm1087, %v822, %v1080
      %v1094 = vld [vmem:[%s1] sm:$0xff]
      %v1095 = vld [vmem:[%s1 + $0x8] sm:$0xff]
      %v1096 = vld [vmem:[%s1 + $0x10] sm:$0xff]
      %v1097 = vld [vmem:[%s1 + $0x18] sm:$0x1]
      %vm1098 = vcmask 203776
      %v1100 = vsel %vm1098, %v1088, 0
      %v1103 = vsel %vm1098, %v1089, 0
      %v1106 = vsel %vm1098, %v1090, 0
      %vm1108 = vcmask 1040384
      %v1110 = vsel %vm1108, %v1097, 0
      %1112 = vmatprep.subr.mxu0 0.0
      %1113 = vmatpush1.msra.mxu0 0.0
      %1114 = vmatprep.subr.mxu0 0.0
      %1115 = vmatpush1.msra.mxu0 0.0
      %1116 = vmatprep.subr.mxu0 0.0
      %1117 = vmatpush1.msra.mxu0 0.0
      %1118 = vmatprep.subr.mxu0 0.0
      %1119 = vmatpush1.msra.mxu0 0.0
      %1120 = vmatprep.subr.mxu0 0.0
      %1121 = vmatpush1.msra.mxu0 0.0
      %1122 = vmatprep.subr.mxu0 0.0
      %1123 = vmatpush1.msra.mxu0 0.0
      %1124 = vmatprep.subr.mxu0 0.0
      %1125 = vmatpush1.msra.mxu0 0.0
      %1126 = vmatprep.subr.mxu0 0.0
      %1127 = vmatpush1.msra.mxu0 0.0
      %1128 = vmatprep.subr.mxu0 0.0
      %1129 = vmatpush1.msra.mxu0 0.0
      %1130 = vmatprep.subr.mxu0 0.0
      %1131 = vmatpush1.msra.mxu0 0.0
      %1132 = vmatprep.subr.mxu0 0.0
      %1133 = vmatpush1.msra.mxu0 0.0
      %1134 = vmatprep.subr.mxu0 0.0
      %1135 = vmatpush1.msra.mxu0 0.0
      %1136 = vmatprep.subr.mxu0 0.0
      %1137 = vmatpush1.msra.mxu0 %v1110
      %1138 = vmatprep.subr.mxu0 0.0
      %1139 = vmatpush1.msra.mxu0 %v1096
      %1140 = vmatprep.subr.mxu0 0.0
      %1141 = vmatpush1.msra.mxu0 %v1095
      %1142 = vmatprep.subr.mxu0 0.0
      %1143 = vmatpush1.msra.mxu0 %v1094
      %1144 = vmatprep.subr.mxu0 0.0
      %1145 = vmatpush2.msra.mxu0 0.0
      %1146 = vmatprep.subr.mxu0 0.0
      %1147 = vmatpush2.msra.mxu0 0.0
      %1148 = vmatprep.subr.mxu0 0.0
      %1149 = vmatpush2.msra.mxu0 0.0
      %1150 = vmatprep.subr.mxu0 0.0
      %1151 = vmatpush2.msra.mxu0 0.0
      %1152 = vmatprep.subr.mxu0 0.0
      %1153 = vmatpush2.msra.mxu0 0.0
      %1154 = vmatprep.subr.mxu0 0.0
      %1155 = vmatpush2.msra.mxu0 0.0
      %1156 = vmatprep.subr.mxu0 0.0
      %1157 = vmatpush2.msra.mxu0 0.0
      %1158 = vmatprep.subr.mxu0 0.0
      %1159 = vmatpush2.msra.mxu0 0.0
      %1160 = vmatprep.subr.mxu0 0.0
      %1161 = vmatpush2.msra.mxu0 0.0
      %1162 = vmatprep.subr.mxu0 0.0
      %1163 = vmatpush2.msra.mxu0 0.0
      %1164 = vmatprep.subr.mxu0 0.0
      %1165 = vmatpush2.msra.mxu0 0.0
      %1166 = vmatprep.subr.mxu0 0.0
      %1167 = vmatpush2.msra.mxu0 0.0
      %1168 = vmatprep.subr.mxu0 0.0
      %1169 = vmatpush2.msra.mxu0 0.0
      %1170 = vmatprep.subr.mxu0 0.0
      %1171 = vmatpush2.msra.mxu0 0.0
      %1172 = vmatprep.subr.mxu0 0.0
      %1173 = vmatpush2.msra.mxu0 0.0
      %1174 = vmatprep.subr.mxu0 0.0
      %1175 = vmatpush2.msra.mxu0 0.0
      %1176 = vmatprep.mubr.f32.mxu0 0.0
      %1177 = vmatmul.mubr.f32.gmra.mxu0 %v1100
      %v1178 = vpop.f32.mrf.mxu0
      %v1179 = vadd.f32 0.0, %v1178
      %v1180 = vpop.f32.mrf.mxu0
      %1181 = vmatprep.mubr.f32.mxu0 0.0
      %1182 = vmatmul.mubr.f32.gmra.mxu0 %v1103
      %v1183 = vpop.f32.mrf.mxu0
      %v1184 = vadd.f32 0.0, %v1183
      %v1185 = vpop.f32.mrf.mxu0
      %1186 = vmatprep.mubr.f32.mxu0 0.0
      %1187 = vmatmul.mubr.f32.gmra.mxu0 %v1106
      %v1188 = vpop.f32.mrf.mxu0
      %v1189 = vadd.f32 0.0, %v1188
      %v1190 = vpop.f32.mrf.mxu0
      %1191 = vdwg.mxu0
      %v1193 = vsel %vm1098, %v1091, 0
      %v1196 = vsel %vm1098, %v1092, 0
      %v1199 = vsel %vm1098, %v1093, 0
      %1201 = vmatprep.subr.mxu0 0.0
      %1202 = vmatpush1.msra.mxu0 0.0
      %1203 = vmatprep.subr.mxu0 0.0
      %1204 = vmatpush1.msra.mxu0 0.0
      %1205 = vmatprep.subr.mxu0 0.0
      %1206 = vmatpush1.msra.mxu0 0.0
      %1207 = vmatprep.subr.mxu0 0.0
      %1208 = vmatpush1.msra.mxu0 0.0
      %1209 = vmatprep.subr.mxu0 0.0
      %1210 = vmatpush1.msra.mxu0 0.0
      %1211 = vmatprep.subr.mxu0 0.0
      %1212 = vmatpush1.msra.mxu0 0.0
      %1213 = vmatprep.subr.mxu0 0.0
      %1214 = vmatpush1.msra.mxu0 0.0
      %1215 = vmatprep.subr.mxu0 0.0
      %1216 = vmatpush1.msra.mxu0 0.0
      %1217 = vmatprep.subr.mxu0 0.0
      %1218 = vmatpush1.msra.mxu0 0.0
      %1219 = vmatprep.subr.mxu0 0.0
      %1220 = vmatpush1.msra.mxu0 0.0
      %1221 = vmatprep.subr.mxu0 0.0
      %1222 = vmatpush1.msra.mxu0 0.0
      %1223 = vmatprep.subr.mxu0 0.0
      %1224 = vmatpush1.msra.mxu0 0.0
      %1225 = vmatprep.subr.mxu0 0.0
      %1226 = vmatpush1.msra.mxu0 %v1110
      %1227 = vmatprep.subr.mxu0 0.0
      %1228 = vmatpush1.msra.mxu0 %v1096
      %1229 = vmatprep.subr.mxu0 0.0
      %1230 = vmatpush1.msra.mxu0 %v1095
      %1231 = vmatprep.subr.mxu0 0.0
      %1232 = vmatpush1.msra.mxu0 %v1094
      %1233 = vmatprep.subr.mxu0 0.0
      %1234 = vmatpush2.msra.mxu0 0.0
      %1235 = vmatprep.subr.mxu0 0.0
      %1236 = vmatpush2.msra.mxu0 0.0
      %1237 = vmatprep.subr.mxu0 0.0
      %1238 = vmatpush2.msra.mxu0 0.0
      %1239 = vmatprep.subr.mxu0 0.0
      %1240 = vmatpush2.msra.mxu0 0.0
      %1241 = vmatprep.subr.mxu0 0.0
      %1242 = vmatpush2.msra.mxu0 0.0
      %1243 = vmatprep.subr.mxu0 0.0
      %1244 = vmatpush2.msra.mxu0 0.0
      %1245 = vmatprep.subr.mxu0 0.0
      %1246 = vmatpush2.msra.mxu0 0.0
      %1247 = vmatprep.subr.mxu0 0.0
      %1248 = vmatpush2.msra.mxu0 0.0
      %1249 = vmatprep.subr.mxu0 0.0
      %1250 = vmatpush2.msra.mxu0 0.0
      %1251 = vmatprep.subr.mxu0 0.0
      %1252 = vmatpush2.msra.mxu0 0.0
      %1253 = vmatprep.subr.mxu0 0.0
      %1254 = vmatpush2.msra.mxu0 0.0
      %1255 = vmatprep.subr.mxu0 0.0
      %1256 = vmatpush2.msra.mxu0 0.0
      %1257 = vmatprep.subr.mxu0 0.0
      %1258 = vmatpush2.msra.mxu0 0.0
      %1259 = vmatprep.subr.mxu0 0.0
      %1260 = vmatpush2.msra.mxu0 0.0
      %1261 = vmatprep.subr.mxu0 0.0
      %1262 = vmatpush2.msra.mxu0 0.0
      %1263 = vmatprep.subr.mxu0 0.0
      %1264 = vmatpush2.msra.mxu0 0.0
      %1265 = vmatprep.mubr.f32.mxu0 0.0
      %1266 = vmatmul.mubr.f32.gmra.mxu0 %v1193
      %v1267 = vpop.f32.mrf.mxu0
      %v1268 = vadd.f32 0.0, %v1267
      %v1269 = vpop.f32.mrf.mxu0
      %1270 = vmatprep.mubr.f32.mxu0 0.0
      %1271 = vmatmul.mubr.f32.gmra.mxu0 %v1196
      %v1272 = vpop.f32.mrf.mxu0
      %v1273 = vadd.f32 0.0, %v1272
      %v1274 = vpop.f32.mrf.mxu0
      %1275 = vmatprep.mubr.f32.mxu0 0.0
      %1276 = vmatmul.mubr.f32.gmra.mxu0 %v1199
      %v1277 = vpop.f32.mrf.mxu0
      %v1278 = vadd.f32 0.0, %v1277
      %v1279 = vpop.f32.mrf.mxu0
      %1280 = vdwg.mxu0
      %v1281 = vmax.f32 %v1179, %v1268
      %v1282 = vmax.f32 %v1184, %v1273
      %v1283 = vmax.f32 %v1189, %v1278
      %vm1284 = vcmask 41984
      %v1285 = vsel %vm1284, %v1281, -inf
      %v1286 = vrot.slane %v1285, 4
      %v1287 = vmax.f32 %v1285, %v1286
      %v1288 = vrot.slane %v1287, 2
      %v1289 = vmax.f32 %v1287, %v1288
      %v1290 = vrot.slane %v1289, 1
      %v1291 = vmax.f32 %v1289, %v1290
      %vm1292 = vcmask 44034
      %v1293 = vsel %vm1292, %v1281, -inf
      %v1294 = vrot.slane %v1293, 4
      %v1295 = vmax.f32 %v1293, %v1294
      %v1296 = vrot.slane %v1295, 2
      %v1297 = vmax.f32 %v1295, %v1296
      %v1298 = vrot.slane %v1297, 1
      %v1299 = vmax.f32 %v1297, %v1298
      %vm1300 = vcmask 46084
      %v1301 = vsel %vm1300, %v1281, -inf
      %v1302 = vrot.slane %v1301, 4
      %v1303 = vmax.f32 %v1301, %v1302
      %v1304 = vrot.slane %v1303, 2
      %v1305 = vmax.f32 %v1303, %v1304
      %v1306 = vrot.slane %v1305, 1
      %v1307 = vmax.f32 %v1305, %v1306
      %vm1308 = vcmask 48134
      %v1309 = vsel %vm1308, %v1281, -inf
      %v1310 = vrot.slane %v1309, 4
      %v1311 = vmax.f32 %v1309, %v1310
      %v1312 = vrot.slane %v1311, 2
      %v1313 = vmax.f32 %v1311, %v1312
      %v1314 = vrot.slane %v1313, 1
      %v1315 = vmax.f32 %v1313, %v1314
      %v1316 = vsel %vm1284, %v1282, -inf
      %v1317 = vrot.slane %v1316, 4
      %v1318 = vmax.f32 %v1316, %v1317
      %v1319 = vrot.slane %v1318, 2
      %v1320 = vmax.f32 %v1318, %v1319
      %v1321 = vrot.slane %v1320, 1
      %v1322 = vmax.f32 %v1320, %v1321
      %v1323 = vsel %vm1292, %v1282, -inf
      %v1324 = vrot.slane %v1323, 4
      %v1325 = vmax.f32 %v1323, %v1324
      %v1326 = vrot.slane %v1325, 2
      %v1327 = vmax.f32 %v1325, %v1326
      %v1328 = vrot.slane %v1327, 1
      %v1329 = vmax.f32 %v1327, %v1328
      %v1330 = vsel %vm1300, %v1282, -inf
      %v1331 = vrot.slane %v1330, 4
      %v1332 = vmax.f32 %v1330, %v1331
      %v1333 = vrot.slane %v1332, 2
      %v1334 = vmax.f32 %v1332, %v1333
      %v1335 = vrot.slane %v1334, 1
      %v1336 = vmax.f32 %v1334, %v1335
      %v1337 = vsel %vm1308, %v1282, -inf
      %v1338 = vrot.slane %v1337, 4
      %v1339 = vmax.f32 %v1337, %v1338
      %v1340 = vrot.slane %v1339, 2
      %v1341 = vmax.f32 %v1339, %v1340
      %v1342 = vrot.slane %v1341, 1
      %v1343 = vmax.f32 %v1341, %v1342
      %v1344 = vsel %vm1284, %v1283, -inf
      %v1345 = vrot.slane %v1344, 4
      %v1346 = vmax.f32 %v1344, %v1345
      %v1347 = vrot.slane %v1346, 2
      %v1348 = vmax.f32 %v1346, %v1347
      %v1349 = vrot.slane %v1348, 1
      %v1350 = vmax.f32 %v1348, %v1349
      %v1351 = vsel %vm1292, %v1283, -inf
      %v1352 = vrot.slane %v1351, 4
      %v1353 = vmax.f32 %v1351, %v1352
      %v1354 = vrot.slane %v1353, 2
      %v1355 = vmax.f32 %v1353, %v1354
      %v1356 = vrot.slane %v1355, 1
      %v1357 = vmax.f32 %v1355, %v1356
      %v1358 = vsel %vm1300, %v1283, -inf
      %v1359 = vrot.slane %v1358, 4
      %v1360 = vmax.f32 %v1358, %v1359
      %v1361 = vrot.slane %v1360, 2
      %v1362 = vmax.f32 %v1360, %v1361
      %v1363 = vrot.slane %v1362, 1
      %v1364 = vmax.f32 %v1362, %v1363
      %v1365 = vsel %vm1308, %v1283, -inf
      %v1366 = vrot.slane %v1365, 4
      %v1367 = vmax.f32 %v1365, %v1366
      %v1368 = vrot.slane %v1367, 2
      %v1369 = vmax.f32 %v1367, %v1368
      %v1370 = vrot.slane %v1369, 1
      %v1371 = vmax.f32 %v1369, %v1370
      %v1372 = vsel %vm1108, %v1291, %v1299
      %vm1373 = vcmask 1041408
      %v1374 = vsel %vm1373, %v1372, %v1307
      %vm1375 = vcmask 1042432
      %v1376 = vsel %vm1375, %v1374, %v1315
      %vm1377 = vcmask 1043456
      %v1378 = vsel %vm1377, %v1376, %v1322
      %vm1379 = vcmask 1044480
      %v1380 = vsel %vm1379, %v1378, %v1329
      %vm1381 = vcmask 1045504
      %v1382 = vsel %vm1381, %v1380, %v1336
      %vm1383 = vcmask 1046528
      %v1384 = vsel %vm1383, %v1382, %v1343
      %v1385 = vsel %vm1108, %v1350, %v1357
      %v1386 = vsel %vm1373, %v1385, %v1364
      %v1387 = vsel %vm1375, %v1386, %v1371
      %v1388 = vld [vmem:[%s2] sm:$0x1]
      %v1390 = vlaneseq
      %v1391 = vshrl.u32 %v1390, 7
      %v1392 = vsub.s32 0, %v1391
      %v1393 = vrot.slane %v1388, %v1392
      %v1395 = vadd.f32 %v1384, %v1393
      %v1396 = vadd.f32 %v1387, %v1393
      %v1397 = vmax.f32 %v1395, 0.0
      %v1398 = vmax.f32 %v1396, 0.0
      %1399 = vst.msk [vmem:[%s192] sm:$0xff] %vm753, %v1397
      %vm1400 = vcmask 44032
      %1401 = vst.msk [vmem:[%s192 + $0x8] sm:$0xf] %vm1400, %v1398
      %p1402 = scmp.lt.s32.totalorder %s18, 1
      %s1403 = scalar_select %p1402, %s18, 1
      %p1404 = scmp.lt.s32.totalorder %s19, 11
      %s1405 = scalar_select %p1404, %s19, 11
      %s1406 = smul.addr %s1405, 2
      %s1407 = smul.addr %s1403, 24
      %s1408 = sadd.s32 %s1406, %s1407
      %s1409 = smul.addr %s1408, 8
      %s1410 = scalar_lea.vmem %s3, %s1409
      // Predicated region
      $region33: #{lenet_forward.3} parent=31 // pred_check
        %p1411 = pneg %p114
      $region34: #{lenet_forward.3} parent=31 // pred_check_branch
        %1413 = sbr.rel (%p1411) target = $region36
      $region35: #{lenet_forward.3} parent=31 // pred_region
        _
      $region36: #{lenet_forward.3} parent=31 // pred_fallthru
        _
    $region32: #{lenet_forward.3} parent=5 // pred_fallthru
      _
    %p1414 = scmp.le.s32.totalorder 2, %s9
    // Predicated region
    $region37: #{lenet_forward.3} parent=5 // pred_check
      %p1415 = pneg %p1414
    $region38: #{lenet_forward.3} parent=5 // pred_check_branch
      %1417 = sbr.rel (%p1415) target = $region40
    $region39: #{lenet_forward.3} parent=5 // pred_region
      %s1418 = ssub.s32 %s9, 2
      // Predicated region
      $region41: #{lenet_forward.3} parent=39 // pred_check
        %p1419 = pneg %p120
      $region42: #{lenet_forward.3} parent=39 // pred_check_branch
        %1421 = sbr.rel (%p1419) target = $region44
      $region43: #{lenet_forward.3} parent=39 // pred_region
        %p1422 = scmp.lt.s32.totalorder %s20, 1
        %s1423 = scalar_select %p1422, %s20, 1
        %p1424 = scmp.lt.s32.totalorder %s21, 11
        %s1425 = scalar_select %p1424, %s21, 11
        %s1426 = smul.addr %s1425, 2
        %s1427 = smul.addr %s1423, 24
        %s1428 = sadd.s32 %s1426, %s1427
        %s1429 = smul.addr %s1428, 8
        %s1430 = scalar_lea.vmem %s3, %s1429
      $region44: #{lenet_forward.3} parent=39 // pred_fallthru
        _
    $region40: #{lenet_forward.3} parent=5 // pred_fallthru
      _
  $region6: #{lenet_forward.3} parent=0 // loop_footer
    %s13 = sadd.s32 1, %s9
  $region7: #{lenet_forward.3} parent=0 // loop_footer_branch
    %8 = sbr.rel target = $region3
  $region8: #{lenet_forward.3} parent=0 // loop_exit
    _

</llo_original>
